<compile_context>
chip_gen: v7x
topology: tpu7x:2x2x1
jax: 0.10.0
libtpu: 0.0.40
codegen_flags: <defaults>
</compile_context>

<pallas_src>
import functools

import numpy as np
import jax
import jax.numpy as jnp
from jax import lax
from jax.experimental import pallas as pl
from jax.experimental.pallas import tpu as pltpu


# ----------------------------------------------------------------------------- #
# In-kernel 3x3 "same" conv on a channel-major (Cin, H*W) activation.
# ----------------------------------------------------------------------------- #
def _conv3x3_lane(x, w_ref, b_ref, m_ref, win, act, down_ref=None):
    """y = act(conv3x3(x) [optionally stride-2 via `down_ref`] + b).

    x        : (Cin, Si) activation, spatial row-major flattened on the lane dim.
    w_ref    : (Cout, 9*Cin) im2col weight, columns ordered (tap t=3*ky+kx, cin).
    b_ref    : (Cout, 1) bias (broadcasts over lanes).
    m_ref    : (9, Si) 0/1 border masks (zero padding) per tap.
    down_ref : (Si, So) one-hot matrix selecting the stride-2 output positions
               (bias/activation commute with the selection, so it is applied first).
    """
    cin, si = x.shape
    masks = m_ref[...]                                   # (9, Si)
    cols = []
    for ky in range(3):
        for kx in range(3):
            t = 3 * ky + kx
            off = (ky - 1) * win + (kx - 1)              # flat source offset of this tap
            a = off % si                                 # static python int
            # circular lane shift: shifted[:, d] == x[:, (d + off) mod Si]
            shifted = x if a == 0 else jnp.concatenate([x[:, a:], x[:, :a]], axis=1)
            cols.append(shifted * masks[t:t + 1, :])     # kill out-of-bounds taps
    cols = jnp.concatenate(cols, axis=0)                 # (9*Cin, Si)  in-VMEM im2col
    y = jnp.dot(w_ref[...], cols, preferred_element_type=jnp.float32)      # (Cout, Si)
    if down_ref is not None:                             # fold stride-2 into a matmul
        y = jnp.dot(y, down_ref[...], preferred_element_type=jnp.float32)  # (Cout, So)
    y = y + b_ref[...]
    if act == "leaky_relu":                              # nn.LeakyReLU() default slope
        y = jnp.where(y >= 0.0, y, 0.01 * y)
    elif act == "sigmoid":
        y = pl.reciprocal(1.0 + jnp.exp(-y))             # EUP reciprocal, exact
    return y


# ----------------------------------------------------------------------------- #
# The fused forward kernel (one grid step == one sample, everything in VMEM).
# ----------------------------------------------------------------------------- #
def _fused_ae_kernel(*refs, cfg):
    n_enc, n_dec = len(cfg["enc"]), len(cfg["dec"])
    it = iter(refs)
    x_ref = next(it)
    enc = [(next(it), next(it), next(it), next(it)) for _ in range(n_enc)]   # w,b,m,d
    mu_w, mu_b = next(it), next(it)
    dl_w, dl_b = next(it), next(it)
    dec = [(next(it), next(it), next(it), next(it)) for _ in range(n_dec)]   # u,w,b,m
    recon_ref, mu_ref = next(it), next(it)

    # ---- encoder: Conv2d(3x3, stride=2, pad=1) + LeakyReLU ----
    h = x_ref[0]                                             # (C0, H*W)
    for li, (wr, br, mr, dr) in enumerate(enc):
        h = _conv3x3_lane(h, wr, br, mr, cfg["enc"][li]["win"],
                          "leaky_relu", down_ref=dr)

    # ---- flatten in torch NCHW view order, mu linear ----
    c2, s2 = cfg["c2"], cfg["s2"]
    flat = jnp.concatenate([h[c:c + 1, :] for c in range(c2)], axis=1)       # (1, c2*s2)
    mu = jnp.dot(flat, mu_w[...], preferred_element_type=jnp.float32) + mu_b[...]
    # log_var head is dead in the deterministic forward (returns None) -> skipped.

    # ---- decode(mu): linear, unflatten, (upsample 2x + convT) x N ----
    z = jnp.dot(mu, dl_w[...], preferred_element_type=jnp.float32) + dl_b[...]
    r = jnp.concatenate([z[:, c * s2:(c + 1) * s2] for c in range(c2)], axis=0)  # (c2, s2)
    for li, (ur, wr, br, mr) in enumerate(dec):
        r = jnp.dot(r, ur[...], preferred_element_type=jnp.float32)   # nearest-2x upsample
        act = "sigmoid" if li == n_dec - 1 else "leaky_relu"
        r = _conv3x3_lane(r, wr, br, mr, cfg["dec"][li]["win"], act)

    recon_ref[0] = r                                         # (Cout_last, H*W) lane-dense
    mu_ref[0] = mu                                           # (1, latent)


# ----------------------------------------------------------------------------- #
# Host-side constant construction (weights reshaped for the in-kernel im2col,
# per-tap border masks, stride-2 downsample and nearest-2x upsample selectors).
# ----------------------------------------------------------------------------- #
def _conv_layer_consts(w_oihw, b, hin, win, stride):
    cout, cin = int(w_oihw.shape[0]), int(w_oihw.shape[1])
    si = hin * win
    # (Cout, Cin, 3, 3) -> (Cout, 9*Cin), column order (tap t=3*ky+kx, cin)
    wmat = jnp.transpose(w_oihw, (0, 2, 3, 1)).reshape(cout, 9 * cin)
    ys, xs = np.divmod(np.arange(si), win)
    masks = np.zeros((9, si), np.float32)
    for ky in range(3):
        for kx in range(3):
            sy, sx = ys + ky - 1, xs + kx - 1
            masks[3 * ky + kx, :] = ((sy >= 0) & (sy < hin) &
                                     (sx >= 0) & (sx < win)).astype(np.float32)
    if stride == 2:
        ho, wo = (hin - 1) // 2 + 1, (win - 1) // 2 + 1
        so = ho * wo
        d = np.zeros((si, so), np.float32)
        q = np.arange(so)
        qy, qx = np.divmod(q, wo)
        d[(2 * qy) * win + 2 * qx, q] = 1.0                  # keep even rows/cols
        dmat = jnp.asarray(d)
    else:
        ho, wo, so, dmat = hin, win, si, None
    arrays = dict(w=wmat, b=jnp.reshape(b, (cout, 1)), m=jnp.asarray(masks), d=dmat)
    static = dict(win=win, cout=cout, so=so, ho=ho, wo=wo)
    return arrays, static


def _upsample_consts(hin, win):
    ho, wo = 2 * hin, 2 * win
    u = np.zeros((hin * win, ho * wo), np.float32)
    q = np.arange(ho * wo)
    qy, qx = np.divmod(q, wo)
    u[(qy // 2) * win + (qx // 2), q] = 1.0                  # nearest-neighbour 2x
    return jnp.asarray(u)


def build_kernel_params(p, input_shape, latent_dim):
    """Convert torch-layout params into the flat array list + static cfg for the kernel."""
    C0, H, W = input_shape
    arrays = []
    cfg = {"enc": [], "dec": [], "latent": latent_dim}

    h, w = H, W
    for (wt, bs) in p["enc"]:
        a, s = _conv_layer_consts(wt, bs, h, w, stride=2)
        arrays += [a["w"], a["b"], a["m"], a["d"]]
        cfg["enc"].append(s)
        h, w = s["ho"], s["wo"]

    C2, h2, w2 = p["shape_before_flattening"]
    assert (h2, w2) == (h, w)
    cfg["c2"], cfg["s2"] = C2, h2 * w2
    flat = C2 * h2 * w2

    wmu, bmu = p["mu"]
    wdl, bdl = p["dec_lin"]
    arrays += [jnp.transpose(wmu), jnp.reshape(bmu, (1, latent_dim)),
               jnp.transpose(wdl), jnp.reshape(bdl, (1, flat))]

    hh, ww = h2, w2
    for (wt, bs) in p["dec"]:
        u = _upsample_consts(hh, ww)
        hh, ww = 2 * hh, 2 * ww
        # ConvTranspose2d(k=3, s=1, p=1) == Conv2d with flipped/transposed kernel, p=1
        wconv = jnp.transpose(jnp.flip(wt, (2, 3)), (1, 0, 2, 3))
        a, s = _conv_layer_consts(wconv, bs, hh, ww, stride=1)
        arrays += [u, a["w"], a["b"], a["m"]]
        cfg["dec"].append(s)

    return {"arrays": tuple(arrays), "cfg": cfg}


# ----------------------------------------------------------------------------- #
# Fused forward wrapper: one pallas_call for the whole network.
# ----------------------------------------------------------------------------- #
def conv_ae_forward(x_nchw, kp):
    arrays, cfg = kp["arrays"], kp["cfg"]
    N, C0, H, W = x_nchw.shape
    S0 = H * W
    lat = cfg["latent"]
    c_last = cfg["dec"][-1]["cout"]
    s_last = cfg["dec"][-1]["so"]
    ho_last, wo_last = cfg["dec"][-1]["ho"], cfg["dec"][-1]["wo"]

    x_flat = x_nchw.reshape(N, C0, S0)                        # boundary reshape only

    def const_spec(a):
        return pl.BlockSpec(a.shape, lambda b, _nd=a.ndim: (0,) * _nd)

    in_specs = ([pl.BlockSpec((1, C0, S0), lambda b: (b, 0, 0))]
                + [const_spec(a) for a in arrays])
    out_specs = (pl.BlockSpec((1, c_last, s_last), lambda b: (b, 0, 0)),
                 pl.BlockSpec((1, 1, lat), lambda b: (b, 0, 0)))
    out_shape = (jax.ShapeDtypeStruct((N, c_last, s_last), jnp.float32),
                 jax.ShapeDtypeStruct((N, 1, lat), jnp.float32))

    recon_flat, mu3 = pl.pallas_call(
        functools.partial(_fused_ae_kernel, cfg=cfg),
        out_shape=out_shape,
        grid=(N,),                                            # one sample per grid step
        in_specs=in_specs,
        out_specs=out_specs,
        compiler_params=pltpu.CompilerParams(
            dimension_semantics=("parallel",)),               # v7x: shard batch over 2 TCs
    )(x_flat, *arrays)

    recon = recon_flat.reshape(N, c_last, ho_last, wo_last)
    mu = mu3.reshape(N, lat)
    return recon, mu, None                                    # deterministic path


# ----------------------------------------------------------------------------- #
# Torch-layout parameter init + pure-JAX reference of the module (for validation)
# ----------------------------------------------------------------------------- #
def init_torch_params(key, input_shape, enc_filters, dec_t_filters, latent_dim):
    C0, H, W = input_shape
    keys = iter(jax.random.split(key, 64))
    p = {}
    enc, ch = [], [C0] + enc_filters
    h, w = H, W
    for i in range(len(enc_filters)):
        cin, cout = ch[i], ch[i + 1]
        wt = 0.1 * jax.random.normal(next(keys), (cout, cin, 3, 3), jnp.float32)
        bs = 0.1 * jax.random.normal(next(keys), (cout,), jnp.float32)
        enc.append((wt, bs))
        h, w = (h - 1) // 2 + 1, (w - 1) // 2 + 1
    p["enc"] = enc
    p["shape_before_flattening"] = (enc_filters[-1], h, w)
    flat = enc_filters[-1] * h * w

    def linear(kin, kout):
        wl = 0.1 * jax.random.normal(next(keys), (kout, kin), jnp.float32)  # torch (out,in)
        bl = 0.1 * jax.random.normal(next(keys), (kout,), jnp.float32)
        return wl, bl

    p["mu"] = linear(flat, latent_dim)
    p["log_var"] = linear(flat, latent_dim)      # present in the module, unused when deterministic
    p["dec_lin"] = linear(latent_dim, flat)

    dec, tch = [], [enc_filters[-1]] + dec_t_filters
    for i in range(len(dec_t_filters)):
        cin, cout = tch[i], tch[i + 1]
        wt = 0.1 * jax.random.normal(next(keys), (cin, cout, 3, 3), jnp.float32)  # (Cin,Cout,kh,kw)
        bs = 0.1 * jax.random.normal(next(keys), (cout,), jnp.float32)
        dec.append((wt, bs))
    p["dec"] = dec
    return p


def reference_forward(x, p):
    """Pure-JAX (XLA conv) replica of ConvAEModule.forward with deterministic=True."""
    leaky = lambda t: jnp.where(t >= 0.0, t, 0.01 * t)
    h = x
    for (wt, bs) in p["enc"]:
        h = lax.conv_general_dilated(h, wt, (2, 2), ((1, 1), (1, 1)),
                                     dimension_numbers=("NCHW", "OIHW", "NCHW"))
        h = leaky(h + bs[None, :, None, None])
    flat = h.reshape(h.shape[0], -1)
    wmu, bmu = p["mu"]
    mu = flat @ wmu.T + bmu
    wdl, bdl = p["dec_lin"]
    z = mu @ wdl.T + bdl
    r = z.reshape(z.shape[0], *p["shape_before_flattening"])
    ndec = len(p["dec"])
    for i, (wt, bs) in enumerate(p["dec"]):
        r = jnp.repeat(jnp.repeat(r, 2, axis=2), 2, axis=3)   # UpsamplingNearest2d(2)
        wconv = jnp.transpose(jnp.flip(wt, (2, 3)), (1, 0, 2, 3))
        r = lax.conv_general_dilated(r, wconv, (1, 1), ((1, 1), (1, 1)),
                                     dimension_numbers=("NCHW", "OIHW", "NCHW"))
        r = r + bs[None, :, None, None]
        r = leaky(r) if i < ndec - 1 else 1.0 / (1.0 + jnp.exp(-r))
    return r, mu, None


# ----------------------------------------------------------------------------- #
if __name__ == "__main__":
    key = jax.random.PRNGKey(0)
    k_param, k_x = jax.random.split(key)

    input_shape = (1, 16, 16)            # (C, H, W)
    encoder_conv_filters = [4, 8]
    decoder_conv_t_filters = [4, 1]
    latent_dim = 2                       # -> no BatchNorm / Dropout in the torch module
    batch = 2

    tparams = init_torch_params(k_param, input_shape, encoder_conv_filters,
                                decoder_conv_t_filters, latent_dim)
    kparams = build_kernel_params(tparams, input_shape, latent_dim)
    x = jax.random.normal(k_x, (batch,) + input_shape, jnp.float32)

    recon, mu, log_var = conv_ae_forward(x, kparams)
    recon = jax.block_until_ready(recon)
    mu = jax.block_until_ready(mu)

    assert recon.shape == (batch,) + input_shape, recon.shape
    assert mu.shape == (batch, latent_dim), mu.shape
    assert log_var is None

    # validate against the pure-JAX reference of the torch module
    ref_recon, ref_mu, _ = reference_forward(x, tparams)
    np.testing.assert_allclose(np.asarray(recon), np.asarray(ref_recon),
                               rtol=1e-4, atol=1e-4)
    np.testing.assert_allclose(np.asarray(mu), np.asarray(ref_mu),
                               rtol=1e-4, atol=1e-4)

    print("KERNEL_OK")
</pallas_src>

<mosaic_0001>
module attributes {stable_mosaic.version = 11 : i64} {
  func.func @_fused_ae_kernel(%arg0: i32, %arg1: memref<1x1x256xf32, #tpu.memory_space<vmem>>, %arg2: memref<4x9xf32, #tpu.memory_space<vmem>>, %arg3: memref<4x1xf32, #tpu.memory_space<vmem>>, %arg4: memref<9x256xf32, #tpu.memory_space<vmem>>, %arg5: memref<256x64xf32, #tpu.memory_space<vmem>>, %arg6: memref<8x36xf32, #tpu.memory_space<vmem>>, %arg7: memref<8x1xf32, #tpu.memory_space<vmem>>, %arg8: memref<9x64xf32, #tpu.memory_space<vmem>>, %arg9: memref<64x16xf32, #tpu.memory_space<vmem>>, %arg10: memref<128x2xf32, #tpu.memory_space<vmem>>, %arg11: memref<1x2xf32, #tpu.memory_space<vmem>>, %arg12: memref<2x128xf32, #tpu.memory_space<vmem>>, %arg13: memref<1x128xf32, #tpu.memory_space<vmem>>, %arg14: memref<16x64xf32, #tpu.memory_space<vmem>>, %arg15: memref<4x72xf32, #tpu.memory_space<vmem>>, %arg16: memref<4x1xf32, #tpu.memory_space<vmem>>, %arg17: memref<9x64xf32, #tpu.memory_space<vmem>>, %arg18: memref<64x256xf32, #tpu.memory_space<vmem>>, %arg19: memref<1x36xf32, #tpu.memory_space<vmem>>, %arg20: memref<1x1xf32, #tpu.memory_space<vmem>>, %arg21: memref<9x256xf32, #tpu.memory_space<vmem>>, %arg22: memref<1x1x256xf32, #tpu.memory_space<vmem>>, %arg23: memref<1x1x2xf32, #tpu.memory_space<vmem>>) attributes {dimension_semantics = [#tpu.dimension_semantics<parallel>], iteration_bounds = array<i64: 2>, scalar_prefetch = 0 : i64, scratch_operands = 0 : i64, tpu.core_type = #tpu.core_type<tc>, window_params = [{transform_indices = @transform_0, window_bounds = array<i64: 1, 1, 256>}, {pipeline_mode = #tpu.pipeline_mode<synchronous>, transform_indices = @transform_1, window_bounds = array<i64: 4, 9>}, {pipeline_mode = #tpu.pipeline_mode<synchronous>, transform_indices = @transform_2, window_bounds = array<i64: 4, 1>}, {pipeline_mode = #tpu.pipeline_mode<synchronous>, transform_indices = @transform_3, window_bounds = array<i64: 9, 256>}, {pipeline_mode = #tpu.pipeline_mode<synchronous>, transform_indices = @transform_4, window_bounds = array<i64: 256, 64>}, {pipeline_mode = #tpu.pipeline_mode<synchronous>, transform_indices = @transform_5, window_bounds = array<i64: 8, 36>}, {pipeline_mode = #tpu.pipeline_mode<synchronous>, transform_indices = @transform_6, window_bounds = array<i64: 8, 1>}, {pipeline_mode = #tpu.pipeline_mode<synchronous>, transform_indices = @transform_7, window_bounds = array<i64: 9, 64>}, {pipeline_mode = #tpu.pipeline_mode<synchronous>, transform_indices = @transform_8, window_bounds = array<i64: 64, 16>}, {pipeline_mode = #tpu.pipeline_mode<synchronous>, transform_indices = @transform_9, window_bounds = array<i64: 128, 2>}, {pipeline_mode = #tpu.pipeline_mode<synchronous>, transform_indices = @transform_10, window_bounds = array<i64: 1, 2>}, {pipeline_mode = #tpu.pipeline_mode<synchronous>, transform_indices = @transform_11, window_bounds = array<i64: 2, 128>}, {pipeline_mode = #tpu.pipeline_mode<synchronous>, transform_indices = @transform_12, window_bounds = array<i64: 1, 128>}, {pipeline_mode = #tpu.pipeline_mode<synchronous>, transform_indices = @transform_13, window_bounds = array<i64: 16, 64>}, {pipeline_mode = #tpu.pipeline_mode<synchronous>, transform_indices = @transform_14, window_bounds = array<i64: 4, 72>}, {pipeline_mode = #tpu.pipeline_mode<synchronous>, transform_indices = @transform_15, window_bounds = array<i64: 4, 1>}, {pipeline_mode = #tpu.pipeline_mode<synchronous>, transform_indices = @transform_16, window_bounds = array<i64: 9, 64>}, {pipeline_mode = #tpu.pipeline_mode<synchronous>, transform_indices = @transform_17, window_bounds = array<i64: 64, 256>}, {pipeline_mode = #tpu.pipeline_mode<synchronous>, transform_indices = @transform_18, window_bounds = array<i64: 1, 36>}, {pipeline_mode = #tpu.pipeline_mode<synchronous>, transform_indices = @transform_19, window_bounds = array<i64: 1, 1>}, {pipeline_mode = #tpu.pipeline_mode<synchronous>, transform_indices = @transform_20, window_bounds = array<i64: 9, 256>}, {transform_indices = @transform_21, window_bounds = array<i64: 1, 1, 256>}, {transform_indices = @transform_22, window_bounds = array<i64: 1, 1, 2>}]} {
    %c0 = arith.constant 0 : index
    %c0_0 = arith.constant 0 : index
    %c0_1 = arith.constant 0 : index
    %0 = vector.load %arg1[%c0, %c0_0, %c0_1] : memref<1x1x256xf32, #tpu.memory_space<vmem>>, vector<1x1x256xf32>
    %1 = vector.shape_cast %0 : vector<1x1x256xf32> to vector<1x256xf32>
    %c0_2 = arith.constant 0 : index
    %c0_3 = arith.constant 0 : index
    %2 = vector.load %arg4[%c0_2, %c0_3] : memref<9x256xf32, #tpu.memory_space<vmem>>, vector<9x256xf32>
    %3 = vector.extract_strided_slice %1 {offsets = [0, 239], sizes = [1, 17], strides = [1, 1]} : vector<1x256xf32> to vector<1x17xf32>
    %4 = vector.extract_strided_slice %1 {offsets = [0, 0], sizes = [1, 239], strides = [1, 1]} : vector<1x256xf32> to vector<1x239xf32>
    %5 = tpu.concatenate %3, %4 in 1 : vector<1x17xf32>, vector<1x239xf32> -> vector<1x256xf32>
    %6 = vector.extract_strided_slice %2 {offsets = [0, 0], sizes = [1, 256], strides = [1, 1]} : vector<9x256xf32> to vector<1x256xf32>
    %7 = arith.mulf %5, %6 : vector<1x256xf32>
    %8 = vector.extract_strided_slice %1 {offsets = [0, 240], sizes = [1, 16], strides = [1, 1]} : vector<1x256xf32> to vector<1x16xf32>
    %9 = vector.extract_strided_slice %1 {offsets = [0, 0], sizes = [1, 240], strides = [1, 1]} : vector<1x256xf32> to vector<1x240xf32>
    %10 = tpu.concatenate %8, %9 in 1 : vector<1x16xf32>, vector<1x240xf32> -> vector<1x256xf32>
    %11 = vector.extract_strided_slice %2 {offsets = [1, 0], sizes = [1, 256], strides = [1, 1]} : vector<9x256xf32> to vector<1x256xf32>
    %12 = arith.mulf %10, %11 : vector<1x256xf32>
    %13 = vector.extract_strided_slice %1 {offsets = [0, 241], sizes = [1, 15], strides = [1, 1]} : vector<1x256xf32> to vector<1x15xf32>
    %14 = vector.extract_strided_slice %1 {offsets = [0, 0], sizes = [1, 241], strides = [1, 1]} : vector<1x256xf32> to vector<1x241xf32>
    %15 = tpu.concatenate %13, %14 in 1 : vector<1x15xf32>, vector<1x241xf32> -> vector<1x256xf32>
    %16 = vector.extract_strided_slice %2 {offsets = [2, 0], sizes = [1, 256], strides = [1, 1]} : vector<9x256xf32> to vector<1x256xf32>
    %17 = arith.mulf %15, %16 : vector<1x256xf32>
    %18 = vector.extract_strided_slice %1 {offsets = [0, 255], sizes = [1, 1], strides = [1, 1]} : vector<1x256xf32> to vector<1x1xf32>
    %19 = vector.extract_strided_slice %1 {offsets = [0, 0], sizes = [1, 255], strides = [1, 1]} : vector<1x256xf32> to vector<1x255xf32>
    %20 = tpu.concatenate %18, %19 in 1 : vector<1x1xf32>, vector<1x255xf32> -> vector<1x256xf32>
    %21 = vector.extract_strided_slice %2 {offsets = [3, 0], sizes = [1, 256], strides = [1, 1]} : vector<9x256xf32> to vector<1x256xf32>
    %22 = arith.mulf %20, %21 : vector<1x256xf32>
    %23 = vector.extract_strided_slice %2 {offsets = [4, 0], sizes = [1, 256], strides = [1, 1]} : vector<9x256xf32> to vector<1x256xf32>
    %24 = arith.mulf %1, %23 : vector<1x256xf32>
    %25 = vector.extract_strided_slice %1 {offsets = [0, 1], sizes = [1, 255], strides = [1, 1]} : vector<1x256xf32> to vector<1x255xf32>
    %26 = vector.extract_strided_slice %1 {offsets = [0, 0], sizes = [1, 1], strides = [1, 1]} : vector<1x256xf32> to vector<1x1xf32>
    %27 = tpu.concatenate %25, %26 in 1 : vector<1x255xf32>, vector<1x1xf32> -> vector<1x256xf32>
    %28 = vector.extract_strided_slice %2 {offsets = [5, 0], sizes = [1, 256], strides = [1, 1]} : vector<9x256xf32> to vector<1x256xf32>
    %29 = arith.mulf %27, %28 : vector<1x256xf32>
    %30 = vector.extract_strided_slice %1 {offsets = [0, 15], sizes = [1, 241], strides = [1, 1]} : vector<1x256xf32> to vector<1x241xf32>
    %31 = vector.extract_strided_slice %1 {offsets = [0, 0], sizes = [1, 15], strides = [1, 1]} : vector<1x256xf32> to vector<1x15xf32>
    %32 = tpu.concatenate %30, %31 in 1 : vector<1x241xf32>, vector<1x15xf32> -> vector<1x256xf32>
    %33 = vector.extract_strided_slice %2 {offsets = [6, 0], sizes = [1, 256], strides = [1, 1]} : vector<9x256xf32> to vector<1x256xf32>
    %34 = arith.mulf %32, %33 : vector<1x256xf32>
    %35 = vector.extract_strided_slice %1 {offsets = [0, 16], sizes = [1, 240], strides = [1, 1]} : vector<1x256xf32> to vector<1x240xf32>
    %36 = vector.extract_strided_slice %1 {offsets = [0, 0], sizes = [1, 16], strides = [1, 1]} : vector<1x256xf32> to vector<1x16xf32>
    %37 = tpu.concatenate %35, %36 in 1 : vector<1x240xf32>, vector<1x16xf32> -> vector<1x256xf32>
    %38 = vector.extract_strided_slice %2 {offsets = [7, 0], sizes = [1, 256], strides = [1, 1]} : vector<9x256xf32> to vector<1x256xf32>
    %39 = arith.mulf %37, %38 : vector<1x256xf32>
    %40 = vector.extract_strided_slice %1 {offsets = [0, 17], sizes = [1, 239], strides = [1, 1]} : vector<1x256xf32> to vector<1x239xf32>
    %41 = vector.extract_strided_slice %1 {offsets = [0, 0], sizes = [1, 17], strides = [1, 1]} : vector<1x256xf32> to vector<1x17xf32>
    %42 = tpu.concatenate %40, %41 in 1 : vector<1x239xf32>, vector<1x17xf32> -> vector<1x256xf32>
    %43 = vector.extract_strided_slice %2 {offsets = [8, 0], sizes = [1, 256], strides = [1, 1]} : vector<9x256xf32> to vector<1x256xf32>
    %44 = arith.mulf %42, %43 : vector<1x256xf32>
    %45 = tpu.concatenate %7, %12, %17, %22, %24, %29, %34, %39, %44 in 0 : vector<1x256xf32>, vector<1x256xf32>, vector<1x256xf32>, vector<1x256xf32>, vector<1x256xf32>, vector<1x256xf32>, vector<1x256xf32>, vector<1x256xf32>, vector<1x256xf32> -> vector<9x256xf32>
    %c0_4 = arith.constant 0 : index
    %c0_5 = arith.constant 0 : index
    %46 = vector.load %arg2[%c0_4, %c0_5] : memref<4x9xf32, #tpu.memory_space<vmem>>, vector<4x9xf32>
    %cst = arith.constant dense<0.000000e+00> : vector<4x256xf32>
    %47 = tpu.matmul %46, %45, %cst {dimension_numbers = #tpu.dot_dimension_numbers<[1], [0], [0], [1], [0, 0, 1, 1], [], []>} : vector<4x9xf32>, vector<9x256xf32>, vector<4x256xf32> -> vector<4x256xf32>
    %c0_6 = arith.constant 0 : index
    %c0_7 = arith.constant 0 : index
    %48 = vector.load %arg5[%c0_6, %c0_7] : memref<256x64xf32, #tpu.memory_space<vmem>>, vector<256x64xf32>
    %cst_8 = arith.constant dense<0.000000e+00> : vector<4x64xf32>
    %49 = tpu.matmul %47, %48, %cst_8 {dimension_numbers = #tpu.dot_dimension_numbers<[1], [0], [0], [1], [0, 0, 1, 1], [], []>} : vector<4x256xf32>, vector<256x64xf32>, vector<4x64xf32> -> vector<4x64xf32>
    %c0_9 = arith.constant 0 : index
    %c0_10 = arith.constant 0 : index
    %50 = vector.load %arg3[%c0_9, %c0_10] : memref<4x1xf32, #tpu.memory_space<vmem>>, vector<4x1xf32>
    %51 = vector.broadcast %50 : vector<4x1xf32> to vector<4x64xf32>
    %52 = arith.addf %49, %51 : vector<4x64xf32>
    %cst_11 = arith.constant 0.000000e+00 : f32
    %53 = vector.broadcast %cst_11 : f32 to vector<4x64xf32>
    %54 = arith.cmpf oge, %52, %53 : vector<4x64xf32>
    %cst_12 = arith.constant 0.00999999977 : f32
    %55 = vector.broadcast %cst_12 : f32 to vector<4x64xf32>
    %56 = arith.mulf %55, %52 : vector<4x64xf32>
    %57 = arith.select %54, %52, %56 : vector<4x64xi1>, vector<4x64xf32>
    %c0_13 = arith.constant 0 : index
    %c0_14 = arith.constant 0 : index
    %58 = vector.load %arg8[%c0_13, %c0_14] : memref<9x64xf32, #tpu.memory_space<vmem>>, vector<9x64xf32>
    %59 = vector.extract_strided_slice %57 {offsets = [0, 55], sizes = [4, 9], strides = [1, 1]} : vector<4x64xf32> to vector<4x9xf32>
    %60 = vector.extract_strided_slice %57 {offsets = [0, 0], sizes = [4, 55], strides = [1, 1]} : vector<4x64xf32> to vector<4x55xf32>
    %61 = tpu.concatenate %59, %60 in 1 : vector<4x9xf32>, vector<4x55xf32> -> vector<4x64xf32>
    %62 = vector.extract_strided_slice %58 {offsets = [0, 0], sizes = [1, 64], strides = [1, 1]} : vector<9x64xf32> to vector<1x64xf32>
    %63 = vector.broadcast %62 : vector<1x64xf32> to vector<4x64xf32>
    %64 = arith.mulf %61, %63 : vector<4x64xf32>
    %65 = vector.extract_strided_slice %57 {offsets = [0, 56], sizes = [4, 8], strides = [1, 1]} : vector<4x64xf32> to vector<4x8xf32>
    %66 = vector.extract_strided_slice %57 {offsets = [0, 0], sizes = [4, 56], strides = [1, 1]} : vector<4x64xf32> to vector<4x56xf32>
    %67 = tpu.concatenate %65, %66 in 1 : vector<4x8xf32>, vector<4x56xf32> -> vector<4x64xf32>
    %68 = vector.extract_strided_slice %58 {offsets = [1, 0], sizes = [1, 64], strides = [1, 1]} : vector<9x64xf32> to vector<1x64xf32>
    %69 = vector.broadcast %68 : vector<1x64xf32> to vector<4x64xf32>
    %70 = arith.mulf %67, %69 : vector<4x64xf32>
    %71 = vector.extract_strided_slice %57 {offsets = [0, 57], sizes = [4, 7], strides = [1, 1]} : vector<4x64xf32> to vector<4x7xf32>
    %72 = vector.extract_strided_slice %57 {offsets = [0, 0], sizes = [4, 57], strides = [1, 1]} : vector<4x64xf32> to vector<4x57xf32>
    %73 = tpu.concatenate %71, %72 in 1 : vector<4x7xf32>, vector<4x57xf32> -> vector<4x64xf32>
    %74 = vector.extract_strided_slice %58 {offsets = [2, 0], sizes = [1, 64], strides = [1, 1]} : vector<9x64xf32> to vector<1x64xf32>
    %75 = vector.broadcast %74 : vector<1x64xf32> to vector<4x64xf32>
    %76 = arith.mulf %73, %75 : vector<4x64xf32>
    %77 = vector.extract_strided_slice %57 {offsets = [0, 63], sizes = [4, 1], strides = [1, 1]} : vector<4x64xf32> to vector<4x1xf32>
    %78 = vector.extract_strided_slice %57 {offsets = [0, 0], sizes = [4, 63], strides = [1, 1]} : vector<4x64xf32> to vector<4x63xf32>
    %79 = tpu.concatenate %77, %78 in 1 : vector<4x1xf32>, vector<4x63xf32> -> vector<4x64xf32>
    %80 = vector.extract_strided_slice %58 {offsets = [3, 0], sizes = [1, 64], strides = [1, 1]} : vector<9x64xf32> to vector<1x64xf32>
    %81 = vector.broadcast %80 : vector<1x64xf32> to vector<4x64xf32>
    %82 = arith.mulf %79, %81 : vector<4x64xf32>
    %83 = vector.extract_strided_slice %58 {offsets = [4, 0], sizes = [1, 64], strides = [1, 1]} : vector<9x64xf32> to vector<1x64xf32>
    %84 = vector.broadcast %83 : vector<1x64xf32> to vector<4x64xf32>
    %85 = arith.mulf %57, %84 : vector<4x64xf32>
    %86 = vector.extract_strided_slice %57 {offsets = [0, 1], sizes = [4, 63], strides = [1, 1]} : vector<4x64xf32> to vector<4x63xf32>
    %87 = vector.extract_strided_slice %57 {offsets = [0, 0], sizes = [4, 1], strides = [1, 1]} : vector<4x64xf32> to vector<4x1xf32>
    %88 = tpu.concatenate %86, %87 in 1 : vector<4x63xf32>, vector<4x1xf32> -> vector<4x64xf32>
    %89 = vector.extract_strided_slice %58 {offsets = [5, 0], sizes = [1, 64], strides = [1, 1]} : vector<9x64xf32> to vector<1x64xf32>
    %90 = vector.broadcast %89 : vector<1x64xf32> to vector<4x64xf32>
    %91 = arith.mulf %88, %90 : vector<4x64xf32>
    %92 = vector.extract_strided_slice %57 {offsets = [0, 7], sizes = [4, 57], strides = [1, 1]} : vector<4x64xf32> to vector<4x57xf32>
    %93 = vector.extract_strided_slice %57 {offsets = [0, 0], sizes = [4, 7], strides = [1, 1]} : vector<4x64xf32> to vector<4x7xf32>
    %94 = tpu.concatenate %92, %93 in 1 : vector<4x57xf32>, vector<4x7xf32> -> vector<4x64xf32>
    %95 = vector.extract_strided_slice %58 {offsets = [6, 0], sizes = [1, 64], strides = [1, 1]} : vector<9x64xf32> to vector<1x64xf32>
    %96 = vector.broadcast %95 : vector<1x64xf32> to vector<4x64xf32>
    %97 = arith.mulf %94, %96 : vector<4x64xf32>
    %98 = vector.extract_strided_slice %57 {offsets = [0, 8], sizes = [4, 56], strides = [1, 1]} : vector<4x64xf32> to vector<4x56xf32>
    %99 = vector.extract_strided_slice %57 {offsets = [0, 0], sizes = [4, 8], strides = [1, 1]} : vector<4x64xf32> to vector<4x8xf32>
    %100 = tpu.concatenate %98, %99 in 1 : vector<4x56xf32>, vector<4x8xf32> -> vector<4x64xf32>
    %101 = vector.extract_strided_slice %58 {offsets = [7, 0], sizes = [1, 64], strides = [1, 1]} : vector<9x64xf32> to vector<1x64xf32>
    %102 = vector.broadcast %101 : vector<1x64xf32> to vector<4x64xf32>
    %103 = arith.mulf %100, %102 : vector<4x64xf32>
    %104 = vector.extract_strided_slice %57 {offsets = [0, 9], sizes = [4, 55], strides = [1, 1]} : vector<4x64xf32> to vector<4x55xf32>
    %105 = vector.extract_strided_slice %57 {offsets = [0, 0], sizes = [4, 9], strides = [1, 1]} : vector<4x64xf32> to vector<4x9xf32>
    %106 = tpu.concatenate %104, %105 in 1 : vector<4x55xf32>, vector<4x9xf32> -> vector<4x64xf32>
    %107 = vector.extract_strided_slice %58 {offsets = [8, 0], sizes = [1, 64], strides = [1, 1]} : vector<9x64xf32> to vector<1x64xf32>
    %108 = vector.broadcast %107 : vector<1x64xf32> to vector<4x64xf32>
    %109 = arith.mulf %106, %108 : vector<4x64xf32>
    %110 = tpu.concatenate %64, %70, %76, %82, %85, %91, %97, %103, %109 in 0 : vector<4x64xf32>, vector<4x64xf32>, vector<4x64xf32>, vector<4x64xf32>, vector<4x64xf32>, vector<4x64xf32>, vector<4x64xf32>, vector<4x64xf32>, vector<4x64xf32> -> vector<36x64xf32>
    %c0_15 = arith.constant 0 : index
    %c0_16 = arith.constant 0 : index
    %111 = vector.load %arg6[%c0_15, %c0_16] : memref<8x36xf32, #tpu.memory_space<vmem>>, vector<8x36xf32>
    %cst_17 = arith.constant dense<0.000000e+00> : vector<8x64xf32>
    %112 = tpu.matmul %111, %110, %cst_17 {dimension_numbers = #tpu.dot_dimension_numbers<[1], [0], [0], [1], [0, 0, 1, 1], [], []>} : vector<8x36xf32>, vector<36x64xf32>, vector<8x64xf32> -> vector<8x64xf32>
    %c0_18 = arith.constant 0 : index
    %c0_19 = arith.constant 0 : index
    %113 = vector.load %arg9[%c0_18, %c0_19] : memref<64x16xf32, #tpu.memory_space<vmem>>, vector<64x16xf32>
    %cst_20 = arith.constant dense<0.000000e+00> : vector<8x16xf32>
    %114 = tpu.matmul %112, %113, %cst_20 {dimension_numbers = #tpu.dot_dimension_numbers<[1], [0], [0], [1], [0, 0, 1, 1], [], []>} : vector<8x64xf32>, vector<64x16xf32>, vector<8x16xf32> -> vector<8x16xf32>
    %c0_21 = arith.constant 0 : index
    %c0_22 = arith.constant 0 : index
    %115 = vector.load %arg7[%c0_21, %c0_22] : memref<8x1xf32, #tpu.memory_space<vmem>>, vector<8x1xf32>
    %116 = vector.broadcast %115 : vector<8x1xf32> to vector<8x16xf32>
    %117 = arith.addf %114, %116 : vector<8x16xf32>
    %cst_23 = arith.constant 0.000000e+00 : f32
    %118 = vector.broadcast %cst_23 : f32 to vector<8x16xf32>
    %119 = arith.cmpf oge, %117, %118 : vector<8x16xf32>
    %cst_24 = arith.constant 0.00999999977 : f32
    %120 = vector.broadcast %cst_24 : f32 to vector<8x16xf32>
    %121 = arith.mulf %120, %117 : vector<8x16xf32>
    %122 = arith.select %119, %117, %121 : vector<8x16xi1>, vector<8x16xf32>
    %123 = vector.extract_strided_slice %122 {offsets = [0, 0], sizes = [1, 16], strides = [1, 1]} : vector<8x16xf32> to vector<1x16xf32>
    %124 = vector.extract_strided_slice %122 {offsets = [1, 0], sizes = [1, 16], strides = [1, 1]} : vector<8x16xf32> to vector<1x16xf32>
    %125 = vector.extract_strided_slice %122 {offsets = [2, 0], sizes = [1, 16], strides = [1, 1]} : vector<8x16xf32> to vector<1x16xf32>
    %126 = vector.extract_strided_slice %122 {offsets = [3, 0], sizes = [1, 16], strides = [1, 1]} : vector<8x16xf32> to vector<1x16xf32>
    %127 = vector.extract_strided_slice %122 {offsets = [4, 0], sizes = [1, 16], strides = [1, 1]} : vector<8x16xf32> to vector<1x16xf32>
    %128 = vector.extract_strided_slice %122 {offsets = [5, 0], sizes = [1, 16], strides = [1, 1]} : vector<8x16xf32> to vector<1x16xf32>
    %129 = vector.extract_strided_slice %122 {offsets = [6, 0], sizes = [1, 16], strides = [1, 1]} : vector<8x16xf32> to vector<1x16xf32>
    %130 = vector.extract_strided_slice %122 {offsets = [7, 0], sizes = [1, 16], strides = [1, 1]} : vector<8x16xf32> to vector<1x16xf32>
    %131 = tpu.concatenate %123, %124, %125, %126, %127, %128, %129, %130 in 1 : vector<1x16xf32>, vector<1x16xf32>, vector<1x16xf32>, vector<1x16xf32>, vector<1x16xf32>, vector<1x16xf32>, vector<1x16xf32>, vector<1x16xf32> -> vector<1x128xf32>
    %c0_25 = arith.constant 0 : index
    %c0_26 = arith.constant 0 : index
    %132 = vector.load %arg10[%c0_25, %c0_26] : memref<128x2xf32, #tpu.memory_space<vmem>>, vector<128x2xf32>
    %cst_27 = arith.constant dense<0.000000e+00> : vector<1x2xf32>
    %133 = tpu.matmul %131, %132, %cst_27 {dimension_numbers = #tpu.dot_dimension_numbers<[1], [0], [0], [1], [0, 0, 1, 1], [], []>} : vector<1x128xf32>, vector<128x2xf32>, vector<1x2xf32> -> vector<1x2xf32>
    %c0_28 = arith.constant 0 : index
    %c0_29 = arith.constant 0 : index
    %134 = vector.load %arg11[%c0_28, %c0_29] : memref<1x2xf32, #tpu.memory_space<vmem>>, vector<1x2xf32>
    %135 = arith.addf %133, %134 : vector<1x2xf32>
    %c0_30 = arith.constant 0 : index
    %c0_31 = arith.constant 0 : index
    %136 = vector.load %arg12[%c0_30, %c0_31] : memref<2x128xf32, #tpu.memory_space<vmem>>, vector<2x128xf32>
    %cst_32 = arith.constant dense<0.000000e+00> : vector<1x128xf32>
    %137 = tpu.matmul %135, %136, %cst_32 {dimension_numbers = #tpu.dot_dimension_numbers<[1], [0], [0], [1], [0, 0, 1, 1], [], []>} : vector<1x2xf32>, vector<2x128xf32>, vector<1x128xf32> -> vector<1x128xf32>
    %c0_33 = arith.constant 0 : index
    %c0_34 = arith.constant 0 : index
    %138 = vector.load %arg13[%c0_33, %c0_34] : memref<1x128xf32, #tpu.memory_space<vmem>>, vector<1x128xf32>
    %139 = arith.addf %137, %138 : vector<1x128xf32>
    %140 = vector.extract_strided_slice %139 {offsets = [0, 0], sizes = [1, 16], strides = [1, 1]} : vector<1x128xf32> to vector<1x16xf32>
    %141 = vector.extract_strided_slice %139 {offsets = [0, 16], sizes = [1, 16], strides = [1, 1]} : vector<1x128xf32> to vector<1x16xf32>
    %142 = vector.extract_strided_slice %139 {offsets = [0, 32], sizes = [1, 16], strides = [1, 1]} : vector<1x128xf32> to vector<1x16xf32>
    %143 = vector.extract_strided_slice %139 {offsets = [0, 48], sizes = [1, 16], strides = [1, 1]} : vector<1x128xf32> to vector<1x16xf32>
    %144 = vector.extract_strided_slice %139 {offsets = [0, 64], sizes = [1, 16], strides = [1, 1]} : vector<1x128xf32> to vector<1x16xf32>
    %145 = vector.extract_strided_slice %139 {offsets = [0, 80], sizes = [1, 16], strides = [1, 1]} : vector<1x128xf32> to vector<1x16xf32>
    %146 = vector.extract_strided_slice %139 {offsets = [0, 96], sizes = [1, 16], strides = [1, 1]} : vector<1x128xf32> to vector<1x16xf32>
    %147 = vector.extract_strided_slice %139 {offsets = [0, 112], sizes = [1, 16], strides = [1, 1]} : vector<1x128xf32> to vector<1x16xf32>
    %148 = tpu.concatenate %140, %141, %142, %143, %144, %145, %146, %147 in 0 : vector<1x16xf32>, vector<1x16xf32>, vector<1x16xf32>, vector<1x16xf32>, vector<1x16xf32>, vector<1x16xf32>, vector<1x16xf32>, vector<1x16xf32> -> vector<8x16xf32>
    %c0_35 = arith.constant 0 : index
    %c0_36 = arith.constant 0 : index
    %149 = vector.load %arg14[%c0_35, %c0_36] : memref<16x64xf32, #tpu.memory_space<vmem>>, vector<16x64xf32>
    %cst_37 = arith.constant dense<0.000000e+00> : vector<8x64xf32>
    %150 = tpu.matmul %148, %149, %cst_37 {dimension_numbers = #tpu.dot_dimension_numbers<[1], [0], [0], [1], [0, 0, 1, 1], [], []>} : vector<8x16xf32>, vector<16x64xf32>, vector<8x64xf32> -> vector<8x64xf32>
    %c0_38 = arith.constant 0 : index
    %c0_39 = arith.constant 0 : index
    %151 = vector.load %arg17[%c0_38, %c0_39] : memref<9x64xf32, #tpu.memory_space<vmem>>, vector<9x64xf32>
    %152 = vector.extract_strided_slice %150 {offsets = [0, 55], sizes = [8, 9], strides = [1, 1]} : vector<8x64xf32> to vector<8x9xf32>
    %153 = vector.extract_strided_slice %150 {offsets = [0, 0], sizes = [8, 55], strides = [1, 1]} : vector<8x64xf32> to vector<8x55xf32>
    %154 = tpu.concatenate %152, %153 in 1 : vector<8x9xf32>, vector<8x55xf32> -> vector<8x64xf32>
    %155 = vector.extract_strided_slice %151 {offsets = [0, 0], sizes = [1, 64], strides = [1, 1]} : vector<9x64xf32> to vector<1x64xf32>
    %156 = vector.broadcast %155 : vector<1x64xf32> to vector<8x64xf32>
    %157 = arith.mulf %154, %156 : vector<8x64xf32>
    %158 = vector.extract_strided_slice %150 {offsets = [0, 56], sizes = [8, 8], strides = [1, 1]} : vector<8x64xf32> to vector<8x8xf32>
    %159 = vector.extract_strided_slice %150 {offsets = [0, 0], sizes = [8, 56], strides = [1, 1]} : vector<8x64xf32> to vector<8x56xf32>
    %160 = tpu.concatenate %158, %159 in 1 : vector<8x8xf32>, vector<8x56xf32> -> vector<8x64xf32>
    %161 = vector.extract_strided_slice %151 {offsets = [1, 0], sizes = [1, 64], strides = [1, 1]} : vector<9x64xf32> to vector<1x64xf32>
    %162 = vector.broadcast %161 : vector<1x64xf32> to vector<8x64xf32>
    %163 = arith.mulf %160, %162 : vector<8x64xf32>
    %164 = vector.extract_strided_slice %150 {offsets = [0, 57], sizes = [8, 7], strides = [1, 1]} : vector<8x64xf32> to vector<8x7xf32>
    %165 = vector.extract_strided_slice %150 {offsets = [0, 0], sizes = [8, 57], strides = [1, 1]} : vector<8x64xf32> to vector<8x57xf32>
    %166 = tpu.concatenate %164, %165 in 1 : vector<8x7xf32>, vector<8x57xf32> -> vector<8x64xf32>
    %167 = vector.extract_strided_slice %151 {offsets = [2, 0], sizes = [1, 64], strides = [1, 1]} : vector<9x64xf32> to vector<1x64xf32>
    %168 = vector.broadcast %167 : vector<1x64xf32> to vector<8x64xf32>
    %169 = arith.mulf %166, %168 : vector<8x64xf32>
    %170 = vector.extract_strided_slice %150 {offsets = [0, 63], sizes = [8, 1], strides = [1, 1]} : vector<8x64xf32> to vector<8x1xf32>
    %171 = vector.extract_strided_slice %150 {offsets = [0, 0], sizes = [8, 63], strides = [1, 1]} : vector<8x64xf32> to vector<8x63xf32>
    %172 = tpu.concatenate %170, %171 in 1 : vector<8x1xf32>, vector<8x63xf32> -> vector<8x64xf32>
    %173 = vector.extract_strided_slice %151 {offsets = [3, 0], sizes = [1, 64], strides = [1, 1]} : vector<9x64xf32> to vector<1x64xf32>
    %174 = vector.broadcast %173 : vector<1x64xf32> to vector<8x64xf32>
    %175 = arith.mulf %172, %174 : vector<8x64xf32>
    %176 = vector.extract_strided_slice %151 {offsets = [4, 0], sizes = [1, 64], strides = [1, 1]} : vector<9x64xf32> to vector<1x64xf32>
    %177 = vector.broadcast %176 : vector<1x64xf32> to vector<8x64xf32>
    %178 = arith.mulf %150, %177 : vector<8x64xf32>
    %179 = vector.extract_strided_slice %150 {offsets = [0, 1], sizes = [8, 63], strides = [1, 1]} : vector<8x64xf32> to vector<8x63xf32>
    %180 = vector.extract_strided_slice %150 {offsets = [0, 0], sizes = [8, 1], strides = [1, 1]} : vector<8x64xf32> to vector<8x1xf32>
    %181 = tpu.concatenate %179, %180 in 1 : vector<8x63xf32>, vector<8x1xf32> -> vector<8x64xf32>
    %182 = vector.extract_strided_slice %151 {offsets = [5, 0], sizes = [1, 64], strides = [1, 1]} : vector<9x64xf32> to vector<1x64xf32>
    %183 = vector.broadcast %182 : vector<1x64xf32> to vector<8x64xf32>
    %184 = arith.mulf %181, %183 : vector<8x64xf32>
    %185 = vector.extract_strided_slice %150 {offsets = [0, 7], sizes = [8, 57], strides = [1, 1]} : vector<8x64xf32> to vector<8x57xf32>
    %186 = vector.extract_strided_slice %150 {offsets = [0, 0], sizes = [8, 7], strides = [1, 1]} : vector<8x64xf32> to vector<8x7xf32>
    %187 = tpu.concatenate %185, %186 in 1 : vector<8x57xf32>, vector<8x7xf32> -> vector<8x64xf32>
    %188 = vector.extract_strided_slice %151 {offsets = [6, 0], sizes = [1, 64], strides = [1, 1]} : vector<9x64xf32> to vector<1x64xf32>
    %189 = vector.broadcast %188 : vector<1x64xf32> to vector<8x64xf32>
    %190 = arith.mulf %187, %189 : vector<8x64xf32>
    %191 = vector.extract_strided_slice %150 {offsets = [0, 8], sizes = [8, 56], strides = [1, 1]} : vector<8x64xf32> to vector<8x56xf32>
    %192 = vector.extract_strided_slice %150 {offsets = [0, 0], sizes = [8, 8], strides = [1, 1]} : vector<8x64xf32> to vector<8x8xf32>
    %193 = tpu.concatenate %191, %192 in 1 : vector<8x56xf32>, vector<8x8xf32> -> vector<8x64xf32>
    %194 = vector.extract_strided_slice %151 {offsets = [7, 0], sizes = [1, 64], strides = [1, 1]} : vector<9x64xf32> to vector<1x64xf32>
    %195 = vector.broadcast %194 : vector<1x64xf32> to vector<8x64xf32>
    %196 = arith.mulf %193, %195 : vector<8x64xf32>
    %197 = vector.extract_strided_slice %150 {offsets = [0, 9], sizes = [8, 55], strides = [1, 1]} : vector<8x64xf32> to vector<8x55xf32>
    %198 = vector.extract_strided_slice %150 {offsets = [0, 0], sizes = [8, 9], strides = [1, 1]} : vector<8x64xf32> to vector<8x9xf32>
    %199 = tpu.concatenate %197, %198 in 1 : vector<8x55xf32>, vector<8x9xf32> -> vector<8x64xf32>
    %200 = vector.extract_strided_slice %151 {offsets = [8, 0], sizes = [1, 64], strides = [1, 1]} : vector<9x64xf32> to vector<1x64xf32>
    %201 = vector.broadcast %200 : vector<1x64xf32> to vector<8x64xf32>
    %202 = arith.mulf %199, %201 : vector<8x64xf32>
    %203 = tpu.concatenate %157, %163, %169, %175, %178, %184, %190, %196, %202 in 0 : vector<8x64xf32>, vector<8x64xf32>, vector<8x64xf32>, vector<8x64xf32>, vector<8x64xf32>, vector<8x64xf32>, vector<8x64xf32>, vector<8x64xf32>, vector<8x64xf32> -> vector<72x64xf32>
    %c0_40 = arith.constant 0 : index
    %c0_41 = arith.constant 0 : index
    %204 = vector.load %arg15[%c0_40, %c0_41] : memref<4x72xf32, #tpu.memory_space<vmem>>, vector<4x72xf32>
    %cst_42 = arith.constant dense<0.000000e+00> : vector<4x64xf32>
    %205 = tpu.matmul %204, %203, %cst_42 {dimension_numbers = #tpu.dot_dimension_numbers<[1], [0], [0], [1], [0, 0, 1, 1], [], []>} : vector<4x72xf32>, vector<72x64xf32>, vector<4x64xf32> -> vector<4x64xf32>
    %c0_43 = arith.constant 0 : index
    %c0_44 = arith.constant 0 : index
    %206 = vector.load %arg16[%c0_43, %c0_44] : memref<4x1xf32, #tpu.memory_space<vmem>>, vector<4x1xf32>
    %207 = vector.broadcast %206 : vector<4x1xf32> to vector<4x64xf32>
    %208 = arith.addf %205, %207 : vector<4x64xf32>
    %cst_45 = arith.constant 0.000000e+00 : f32
    %209 = vector.broadcast %cst_45 : f32 to vector<4x64xf32>
    %210 = arith.cmpf oge, %208, %209 : vector<4x64xf32>
    %cst_46 = arith.constant 0.00999999977 : f32
    %211 = vector.broadcast %cst_46 : f32 to vector<4x64xf32>
    %212 = arith.mulf %211, %208 : vector<4x64xf32>
    %213 = arith.select %210, %208, %212 : vector<4x64xi1>, vector<4x64xf32>
    %c0_47 = arith.constant 0 : index
    %c0_48 = arith.constant 0 : index
    %214 = vector.load %arg18[%c0_47, %c0_48] : memref<64x256xf32, #tpu.memory_space<vmem>>, vector<64x256xf32>
    %cst_49 = arith.constant dense<0.000000e+00> : vector<4x256xf32>
    %215 = tpu.matmul %213, %214, %cst_49 {dimension_numbers = #tpu.dot_dimension_numbers<[1], [0], [0], [1], [0, 0, 1, 1], [], []>} : vector<4x64xf32>, vector<64x256xf32>, vector<4x256xf32> -> vector<4x256xf32>
    %c0_50 = arith.constant 0 : index
    %c0_51 = arith.constant 0 : index
    %216 = vector.load %arg21[%c0_50, %c0_51] : memref<9x256xf32, #tpu.memory_space<vmem>>, vector<9x256xf32>
    %217 = vector.extract_strided_slice %215 {offsets = [0, 239], sizes = [4, 17], strides = [1, 1]} : vector<4x256xf32> to vector<4x17xf32>
    %218 = vector.extract_strided_slice %215 {offsets = [0, 0], sizes = [4, 239], strides = [1, 1]} : vector<4x256xf32> to vector<4x239xf32>
    %219 = tpu.concatenate %217, %218 in 1 : vector<4x17xf32>, vector<4x239xf32> -> vector<4x256xf32>
    %220 = vector.extract_strided_slice %216 {offsets = [0, 0], sizes = [1, 256], strides = [1, 1]} : vector<9x256xf32> to vector<1x256xf32>
    %221 = vector.broadcast %220 : vector<1x256xf32> to vector<4x256xf32>
    %222 = arith.mulf %219, %221 : vector<4x256xf32>
    %223 = vector.extract_strided_slice %215 {offsets = [0, 240], sizes = [4, 16], strides = [1, 1]} : vector<4x256xf32> to vector<4x16xf32>
    %224 = vector.extract_strided_slice %215 {offsets = [0, 0], sizes = [4, 240], strides = [1, 1]} : vector<4x256xf32> to vector<4x240xf32>
    %225 = tpu.concatenate %223, %224 in 1 : vector<4x16xf32>, vector<4x240xf32> -> vector<4x256xf32>
    %226 = vector.extract_strided_slice %216 {offsets = [1, 0], sizes = [1, 256], strides = [1, 1]} : vector<9x256xf32> to vector<1x256xf32>
    %227 = vector.broadcast %226 : vector<1x256xf32> to vector<4x256xf32>
    %228 = arith.mulf %225, %227 : vector<4x256xf32>
    %229 = vector.extract_strided_slice %215 {offsets = [0, 241], sizes = [4, 15], strides = [1, 1]} : vector<4x256xf32> to vector<4x15xf32>
    %230 = vector.extract_strided_slice %215 {offsets = [0, 0], sizes = [4, 241], strides = [1, 1]} : vector<4x256xf32> to vector<4x241xf32>
    %231 = tpu.concatenate %229, %230 in 1 : vector<4x15xf32>, vector<4x241xf32> -> vector<4x256xf32>
    %232 = vector.extract_strided_slice %216 {offsets = [2, 0], sizes = [1, 256], strides = [1, 1]} : vector<9x256xf32> to vector<1x256xf32>
    %233 = vector.broadcast %232 : vector<1x256xf32> to vector<4x256xf32>
    %234 = arith.mulf %231, %233 : vector<4x256xf32>
    %235 = vector.extract_strided_slice %215 {offsets = [0, 255], sizes = [4, 1], strides = [1, 1]} : vector<4x256xf32> to vector<4x1xf32>
    %236 = vector.extract_strided_slice %215 {offsets = [0, 0], sizes = [4, 255], strides = [1, 1]} : vector<4x256xf32> to vector<4x255xf32>
    %237 = tpu.concatenate %235, %236 in 1 : vector<4x1xf32>, vector<4x255xf32> -> vector<4x256xf32>
    %238 = vector.extract_strided_slice %216 {offsets = [3, 0], sizes = [1, 256], strides = [1, 1]} : vector<9x256xf32> to vector<1x256xf32>
    %239 = vector.broadcast %238 : vector<1x256xf32> to vector<4x256xf32>
    %240 = arith.mulf %237, %239 : vector<4x256xf32>
    %241 = vector.extract_strided_slice %216 {offsets = [4, 0], sizes = [1, 256], strides = [1, 1]} : vector<9x256xf32> to vector<1x256xf32>
    %242 = vector.broadcast %241 : vector<1x256xf32> to vector<4x256xf32>
    %243 = arith.mulf %215, %242 : vector<4x256xf32>
    %244 = vector.extract_strided_slice %215 {offsets = [0, 1], sizes = [4, 255], strides = [1, 1]} : vector<4x256xf32> to vector<4x255xf32>
    %245 = vector.extract_strided_slice %215 {offsets = [0, 0], sizes = [4, 1], strides = [1, 1]} : vector<4x256xf32> to vector<4x1xf32>
    %246 = tpu.concatenate %244, %245 in 1 : vector<4x255xf32>, vector<4x1xf32> -> vector<4x256xf32>
    %247 = vector.extract_strided_slice %216 {offsets = [5, 0], sizes = [1, 256], strides = [1, 1]} : vector<9x256xf32> to vector<1x256xf32>
    %248 = vector.broadcast %247 : vector<1x256xf32> to vector<4x256xf32>
    %249 = arith.mulf %246, %248 : vector<4x256xf32>
    %250 = vector.extract_strided_slice %215 {offsets = [0, 15], sizes = [4, 241], strides = [1, 1]} : vector<4x256xf32> to vector<4x241xf32>
    %251 = vector.extract_strided_slice %215 {offsets = [0, 0], sizes = [4, 15], strides = [1, 1]} : vector<4x256xf32> to vector<4x15xf32>
    %252 = tpu.concatenate %250, %251 in 1 : vector<4x241xf32>, vector<4x15xf32> -> vector<4x256xf32>
    %253 = vector.extract_strided_slice %216 {offsets = [6, 0], sizes = [1, 256], strides = [1, 1]} : vector<9x256xf32> to vector<1x256xf32>
    %254 = vector.broadcast %253 : vector<1x256xf32> to vector<4x256xf32>
    %255 = arith.mulf %252, %254 : vector<4x256xf32>
    %256 = vector.extract_strided_slice %215 {offsets = [0, 16], sizes = [4, 240], strides = [1, 1]} : vector<4x256xf32> to vector<4x240xf32>
    %257 = vector.extract_strided_slice %215 {offsets = [0, 0], sizes = [4, 16], strides = [1, 1]} : vector<4x256xf32> to vector<4x16xf32>
    %258 = tpu.concatenate %256, %257 in 1 : vector<4x240xf32>, vector<4x16xf32> -> vector<4x256xf32>
    %259 = vector.extract_strided_slice %216 {offsets = [7, 0], sizes = [1, 256], strides = [1, 1]} : vector<9x256xf32> to vector<1x256xf32>
    %260 = vector.broadcast %259 : vector<1x256xf32> to vector<4x256xf32>
    %261 = arith.mulf %258, %260 : vector<4x256xf32>
    %262 = vector.extract_strided_slice %215 {offsets = [0, 17], sizes = [4, 239], strides = [1, 1]} : vector<4x256xf32> to vector<4x239xf32>
    %263 = vector.extract_strided_slice %215 {offsets = [0, 0], sizes = [4, 17], strides = [1, 1]} : vector<4x256xf32> to vector<4x17xf32>
    %264 = tpu.concatenate %262, %263 in 1 : vector<4x239xf32>, vector<4x17xf32> -> vector<4x256xf32>
    %265 = vector.extract_strided_slice %216 {offsets = [8, 0], sizes = [1, 256], strides = [1, 1]} : vector<9x256xf32> to vector<1x256xf32>
    %266 = vector.broadcast %265 : vector<1x256xf32> to vector<4x256xf32>
    %267 = arith.mulf %264, %266 : vector<4x256xf32>
    %268 = tpu.concatenate %222, %228, %234, %240, %243, %249, %255, %261, %267 in 0 : vector<4x256xf32>, vector<4x256xf32>, vector<4x256xf32>, vector<4x256xf32>, vector<4x256xf32>, vector<4x256xf32>, vector<4x256xf32>, vector<4x256xf32>, vector<4x256xf32> -> vector<36x256xf32>
    %c0_52 = arith.constant 0 : index
    %c0_53 = arith.constant 0 : index
    %269 = vector.load %arg19[%c0_52, %c0_53] : memref<1x36xf32, #tpu.memory_space<vmem>>, vector<1x36xf32>
    %cst_54 = arith.constant dense<0.000000e+00> : vector<1x256xf32>
    %270 = tpu.matmul %269, %268, %cst_54 {dimension_numbers = #tpu.dot_dimension_numbers<[1], [0], [0], [1], [0, 0, 1, 1], [], []>} : vector<1x36xf32>, vector<36x256xf32>, vector<1x256xf32> -> vector<1x256xf32>
    %c0_55 = arith.constant 0 : index
    %c0_56 = arith.constant 0 : index
    %271 = vector.load %arg20[%c0_55, %c0_56] : memref<1x1xf32, #tpu.memory_space<vmem>>, vector<1x1xf32>
    %272 = vector.broadcast %271 : vector<1x1xf32> to vector<1x256xf32>
    %273 = arith.addf %270, %272 : vector<1x256xf32>
    %cst_57 = arith.constant 0.000000e+00 : f32
    %274 = vector.broadcast %cst_57 : f32 to vector<1x256xf32>
    %275 = arith.subf %274, %273 : vector<1x256xf32>
    %276 = math.exp %275 : vector<1x256xf32>
    %cst_58 = arith.constant 1.000000e+00 : f32
    %277 = vector.broadcast %cst_58 : f32 to vector<1x256xf32>
    %278 = arith.addf %277, %276 : vector<1x256xf32>
    %279 = tpu.reciprocal %278 : vector<1x256xf32> -> vector<1x256xf32>
    %c0_59 = arith.constant 0 : index
    %c0_60 = arith.constant 0 : index
    %c0_61 = arith.constant 0 : index
    %280 = vector.load %arg22[%c0_59, %c0_60, %c0_61] : memref<1x1x256xf32, #tpu.memory_space<vmem>>, vector<1x1x256xf32>
    %281 = vector.shape_cast %280 : vector<1x1x256xf32> to vector<1x256xf32>
    %282 = vector.shape_cast %279 : vector<1x256xf32> to vector<1x1x256xf32>
    tpu.vector_store %arg22[%c0_59, %c0_60, %c0_61], %282 {strides = array<i32>} : memref<1x1x256xf32, #tpu.memory_space<vmem>>, vector<1x1x256xf32>,
    %c0_62 = arith.constant 0 : index
    %c0_63 = arith.constant 0 : index
    %c0_64 = arith.constant 0 : index
    %283 = vector.load %arg23[%c0_62, %c0_63, %c0_64] : memref<1x1x2xf32, #tpu.memory_space<vmem>>, vector<1x1x2xf32>
    %284 = vector.shape_cast %283 : vector<1x1x2xf32> to vector<1x2xf32>
    %285 = vector.shape_cast %135 : vector<1x2xf32> to vector<1x1x2xf32>
    tpu.vector_store %arg23[%c0_62, %c0_63, %c0_64], %285 {strides = array<i32>} : memref<1x1x2xf32, #tpu.memory_space<vmem>>, vector<1x1x2xf32>,
    return
  }
  func.func @transform_0(%arg0: i32) -> (i32, i32, i32) {
    %c0_i32 = arith.constant 0 : i32
    %c0_i32_0 = arith.constant 0 : i32
    %c0_i32_1 = arith.constant 0 : i32
    return %arg0, %c0_i32, %c0_i32_0 : i32, i32, i32
  }
  func.func @transform_1(%arg0: i32) -> (i32, i32) {
    %c0_i32 = arith.constant 0 : i32
    %c0_i32_0 = arith.constant 0 : i32
    %c0_i32_1 = arith.constant 0 : i32
    return %c0_i32, %c0_i32_0 : i32, i32
  }
  func.func @transform_2(%arg0: i32) -> (i32, i32) {
    %c0_i32 = arith.constant 0 : i32
    %c0_i32_0 = arith.constant 0 : i32
    %c0_i32_1 = arith.constant 0 : i32
    return %c0_i32, %c0_i32_0 : i32, i32
  }
  func.func @transform_3(%arg0: i32) -> (i32, i32) {
    %c0_i32 = arith.constant 0 : i32
    %c0_i32_0 = arith.constant 0 : i32
    %c0_i32_1 = arith.constant 0 : i32
    return %c0_i32, %c0_i32_0 : i32, i32
  }
  func.func @transform_4(%arg0: i32) -> (i32, i32) {
    %c0_i32 = arith.constant 0 : i32
    %c0_i32_0 = arith.constant 0 : i32
    %c0_i32_1 = arith.constant 0 : i32
    return %c0_i32, %c0_i32_0 : i32, i32
  }
  func.func @transform_5(%arg0: i32) -> (i32, i32) {
    %c0_i32 = arith.constant 0 : i32
    %c0_i32_0 = arith.constant 0 : i32
    %c0_i32_1 = arith.constant 0 : i32
    return %c0_i32, %c0_i32_0 : i32, i32
  }
  func.func @transform_6(%arg0: i32) -> (i32, i32) {
    %c0_i32 = arith.constant 0 : i32
    %c0_i32_0 = arith.constant 0 : i32
    %c0_i32_1 = arith.constant 0 : i32
    return %c0_i32, %c0_i32_0 : i32, i32
  }
  func.func @transform_7(%arg0: i32) -> (i32, i32) {
    %c0_i32 = arith.constant 0 : i32
    %c0_i32_0 = arith.constant 0 : i32
    %c0_i32_1 = arith.constant 0 : i32
    return %c0_i32, %c0_i32_0 : i32, i32
  }
  func.func @transform_8(%arg0: i32) -> (i32, i32) {
    %c0_i32 = arith.constant 0 : i32
    %c0_i32_0 = arith.constant 0 : i32
    %c0_i32_1 = arith.constant 0 : i32
    return %c0_i32, %c0_i32_0 : i32, i32
  }
  func.func @transform_9(%arg0: i32) -> (i32, i32) {
    %c0_i32 = arith.constant 0 : i32
    %c0_i32_0 = arith.constant 0 : i32
    %c0_i32_1 = arith.constant 0 : i32
    return %c0_i32, %c0_i32_0 : i32, i32
  }
  func.func @transform_10(%arg0: i32) -> (i32, i32) {
    %c0_i32 = arith.constant 0 : i32
    %c0_i32_0 = arith.constant 0 : i32
    %c0_i32_1 = arith.constant 0 : i32
    return %c0_i32, %c0_i32_0 : i32, i32
  }
  func.func @transform_11(%arg0: i32) -> (i32, i32) {
    %c0_i32 = arith.constant 0 : i32
    %c0_i32_0 = arith.constant 0 : i32
    %c0_i32_1 = arith.constant 0 : i32
    return %c0_i32, %c0_i32_0 : i32, i32
  }
  func.func @transform_12(%arg0: i32) -> (i32, i32) {
    %c0_i32 = arith.constant 0 : i32
    %c0_i32_0 = arith.constant 0 : i32
    %c0_i32_1 = arith.constant 0 : i32
    return %c0_i32, %c0_i32_0 : i32, i32
  }
  func.func @transform_13(%arg0: i32) -> (i32, i32) {
    %c0_i32 = arith.constant 0 : i32
    %c0_i32_0 = arith.constant 0 : i32
    %c0_i32_1 = arith.constant 0 : i32
    return %c0_i32, %c0_i32_0 : i32, i32
  }
  func.func @transform_14(%arg0: i32) -> (i32, i32) {
    %c0_i32 = arith.constant 0 : i32
    %c0_i32_0 = arith.constant 0 : i32
    %c0_i32_1 = arith.constant 0 : i32
    return %c0_i32, %c0_i32_0 : i32, i32
  }
  func.func @transform_15(%arg0: i32) -> (i32, i32) {
    %c0_i32 = arith.constant 0 : i32
    %c0_i32_0 = arith.constant 0 : i32
    %c0_i32_1 = arith.constant 0 : i32
    return %c0_i32, %c0_i32_0 : i32, i32
  }
  func.func @transform_16(%arg0: i32) -> (i32, i32) {
    %c0_i32 = arith.constant 0 : i32
    %c0_i32_0 = arith.constant 0 : i32
    %c0_i32_1 = arith.constant 0 : i32
    return %c0_i32, %c0_i32_0 : i32, i32
  }
  func.func @transform_17(%arg0: i32) -> (i32, i32) {
    %c0_i32 = arith.constant 0 : i32
    %c0_i32_0 = arith.constant 0 : i32
    %c0_i32_1 = arith.constant 0 : i32
    return %c0_i32, %c0_i32_0 : i32, i32
  }
  func.func @transform_18(%arg0: i32) -> (i32, i32) {
    %c0_i32 = arith.constant 0 : i32
    %c0_i32_0 = arith.constant 0 : i32
    %c0_i32_1 = arith.constant 0 : i32
    return %c0_i32, %c0_i32_0 : i32, i32
  }
  func.func @transform_19(%arg0: i32) -> (i32, i32) {
    %c0_i32 = arith.constant 0 : i32
    %c0_i32_0 = arith.constant 0 : i32
    %c0_i32_1 = arith.constant 0 : i32
    return %c0_i32, %c0_i32_0 : i32, i32
  }
  func.func @transform_20(%arg0: i32) -> (i32, i32) {
    %c0_i32 = arith.constant 0 : i32
    %c0_i32_0 = arith.constant 0 : i32
    %c0_i32_1 = arith.constant 0 : i32
    return %c0_i32, %c0_i32_0 : i32, i32
  }
  func.func @transform_21(%arg0: i32) -> (i32, i32, i32) {
    %c0_i32 = arith.constant 0 : i32
    %c0_i32_0 = arith.constant 0 : i32
    %c0_i32_1 = arith.constant 0 : i32
    return %arg0, %c0_i32, %c0_i32_0 : i32, i32, i32
  }
  func.func @transform_22(%arg0: i32) -> (i32, i32, i32) {
    %c0_i32 = arith.constant 0 : i32
    %c0_i32_0 = arith.constant 0 : i32
    %c0_i32_1 = arith.constant 0 : i32
    return %arg0, %c0_i32, %c0_i32_0 : i32, i32, i32
  }
}

</mosaic_0001>

<llo_original>
// kernel: tpu_custom_call.1
$region0: #{tpu_custom_call.1}
  #allocation0 [shape = 'u32[]', space=smem, size = 0x4, offset = 0x4, fixed_abs, tag = 'smem constant byte address 0x4 - core index']
  #allocation1 [shape = 'u32[144,128]{1,0:T(1,128)}', space=vmem, size = 0x12000, scoped, tag = 'internal scratch']
  #allocation2 [shape = 'f32[1,1]{1,0:T(1,128)S(1)}', space=vmem, size = 0x200, scoped, tag = 'scoped memory for tpu_custom_call.1']
  %s0 = inlined_call_operand.vmem [shape: f32[2,1,256], index: 0, kind: input, shape index: {}]
  %s1 = inlined_call_operand.vmem [shape: f32[4,9], index: 1, kind: input, shape index: {}]
  %s2 = inlined_call_operand.vmem [shape: f32[4,1], index: 2, kind: input, shape index: {}]
  %s3 = inlined_call_operand.vmem [shape: f32[9,256], index: 3, kind: input, shape index: {}]
  %s4 = inlined_call_operand.vmem [shape: f32[256,64], index: 4, kind: input, shape index: {}]
  %s5 = inlined_call_operand.vmem [shape: f32[8,36], index: 5, kind: input, shape index: {}]
  %s6 = inlined_call_operand.vmem [shape: f32[8,1], index: 6, kind: input, shape index: {}]
  %s7 = inlined_call_operand.vmem [shape: f32[9,64], index: 7, kind: input, shape index: {}]
  %s8 = inlined_call_operand.vmem [shape: f32[64,16], index: 8, kind: input, shape index: {}]
  %s9 = inlined_call_operand.vmem [shape: f32[128,2], index: 9, kind: input, shape index: {}]
  %s10 = inlined_call_operand.vmem [shape: f32[1,2], index: 10, kind: input, shape index: {}]
  %s11 = inlined_call_operand.vmem [shape: f32[2,128], index: 11, kind: input, shape index: {}]
  %s12 = inlined_call_operand.vmem [shape: f32[1,128], index: 12, kind: input, shape index: {}]
  %s13 = inlined_call_operand.vmem [shape: f32[16,64], index: 13, kind: input, shape index: {}]
  %s14 = inlined_call_operand.vmem [shape: f32[4,72], index: 14, kind: input, shape index: {}]
  %s15 = inlined_call_operand.vmem [shape: f32[4,1], index: 15, kind: input, shape index: {}]
  %s16 = inlined_call_operand.vmem [shape: f32[9,64], index: 16, kind: input, shape index: {}]
  %s17 = inlined_call_operand.vmem [shape: f32[64,256], index: 17, kind: input, shape index: {}]
  %s18 = inlined_call_operand.vmem [shape: f32[1,36], index: 18, kind: input, shape index: {}]
  %s19 = inlined_call_operand.<no memory space> [shape: f32[1,1], index: 19, kind: input, shape index: {}]
  %s20 = inlined_call_operand.vmem [shape: f32[9,256], index: 20, kind: input, shape index: {}]
  %s21 = inlined_call_operand.hbm [shape: f32[2,1,256], index: 21, kind: output, shape index: {0}]
  %s22 = inlined_call_operand.hbm [shape: f32[2,1,2], index: 22, kind: output, shape index: {1}]
  %23 = xla_tuple %s21, %s22
  %s24 = sld [smem:[#allocation0]]
  $region125: #{tpu_custom_call.1} parent=0
    _
  %s26 = ssub.s32 1, %s24
  %s27 = scalar_select 0, %s26, %s24
  %v28 = vstv %s19
  %29 = vst [vmem:[#allocation2] sm:$0x1] %v28
  $region1: #{tpu_custom_call.1} parent=0
    #allocation3 [shape = 'u8[2048]{0}', space=vmem, size = 0x800, scoped, tag = 'output window, operand 0']
    #allocation4 [shape = 's32[2]{0}', space=sflag, size = 0x8, scoped, tag = 'scoped memory for tpu_custom_call.1']
    #allocation5 [shape = 'u8[1024]{0}', space=vmem, size = 0x400, scoped, tag = 'output window, operand 1']
    #allocation6 [shape = 's32[2]{0}', space=sflag, size = 0x8, scoped, tag = 'scoped memory for tpu_custom_call.1']
    %30 = vsyncpa [#allocation4], 0
    %s31 = scalar_lea.sflag [#allocation4], 1
    %32 = vsyncpa %s31, 0
    %33 = vsyncpa [#allocation6], 0
    %s34 = scalar_lea.sflag [#allocation6], 1
    %35 = vsyncpa %s34, 0
    loop: start=0, step=1, limit=4
    $region2: #{tpu_custom_call.1} parent=1 // loop_pre_header
      _
    $region3: #{tpu_custom_call.1} parent=1 // loop_header
      %s37 = sphi 0, %s41
      %p38 = scmp.ge.s32.totalorder %s37, 4
      %s47 = sphi 0, %s49
      %s50 = sphi 0, %s47
      %s51 = sphi 0, %s50
      %s67 = sphi 0, %s51
      %s71 = sphi 0, %s71
      %s73 = sphi 0, %s71
      %s74 = sphi 0, %s73
      %s88 = sphi 0, %s74
      %s92 = sphi 0, %s92
      %s94 = sphi 0, %s92
      %s95 = sphi 0, %s94
      %s109 = sphi 0, %s95
      %s113 = sphi 0, %s113
      %s115 = sphi 0, %s113
      %s116 = sphi 0, %s115
      %s130 = sphi 0, %s116
      %s134 = sphi 0, %s134
      %s136 = sphi 0, %s134
      %s137 = sphi 0, %s136
      %s151 = sphi 0, %s137
      %s155 = sphi 0, %s155
      %s157 = sphi 0, %s155
      %s158 = sphi 0, %s157
      %s172 = sphi 0, %s158
      %s176 = sphi 0, %s176
      %s178 = sphi 0, %s176
      %s179 = sphi 0, %s178
      %s193 = sphi 0, %s179
      %s197 = sphi 0, %s197
      %s199 = sphi 0, %s197
      %s200 = sphi 0, %s199
      %s214 = sphi 0, %s200
      %s218 = sphi 0, %s218
      %s220 = sphi 0, %s218
      %s221 = sphi 0, %s220
      %s235 = sphi 0, %s221
      %s239 = sphi 0, %s239
      %s241 = sphi 0, %s239
      %s242 = sphi 0, %s241
      %s256 = sphi 0, %s242
      %s260 = sphi 0, %s260
      %s262 = sphi 0, %s260
      %s263 = sphi 0, %s262
      %s277 = sphi 0, %s263
      %s281 = sphi 0, %s281
      %s283 = sphi 0, %s281
      %s284 = sphi 0, %s283
      %s298 = sphi 0, %s284
      %s302 = sphi 0, %s302
      %s304 = sphi 0, %s302
      %s305 = sphi 0, %s304
      %s319 = sphi 0, %s305
      %s323 = sphi 0, %s323
      %s325 = sphi 0, %s323
      %s326 = sphi 0, %s325
      %s340 = sphi 0, %s326
      %s344 = sphi 0, %s344
      %s346 = sphi 0, %s344
      %s347 = sphi 0, %s346
      %s361 = sphi 0, %s347
      %s365 = sphi 0, %s365
      %s367 = sphi 0, %s365
      %s368 = sphi 0, %s367
      %s382 = sphi 0, %s368
      %s386 = sphi 0, %s386
      %s388 = sphi 0, %s386
      %s389 = sphi 0, %s388
      %s403 = sphi 0, %s389
      %s407 = sphi 0, %s407
      %s409 = sphi 0, %s407
      %s410 = sphi 0, %s409
      %s424 = sphi 0, %s410
      %s428 = sphi 0, %s428
      %s430 = sphi 0, %s428
      %s431 = sphi 0, %s430
      %s445 = sphi 0, %s431
      %s449 = sphi 0, %s449
      %s451 = sphi 0, %s449
      %s452 = sphi 0, %s451
      %s466 = sphi 0, %s452
      %s470 = sphi 0, %s470
      %s472 = sphi 0, %s470
      %s473 = sphi 0, %s472
      %s487 = sphi 0, %s473
      %s493 = sphi 0, %s495
      %s496 = sphi 0, %s493
      %s497 = sphi 0, %s496
      %s513 = sphi 0, %s497
      %s519 = sphi 0, %s521
      %s522 = sphi 0, %s519
      %s523 = sphi 0, %s522
      %s539 = sphi 0, %s523
    $region4: #{tpu_custom_call.1} parent=1 // loop_header_branch
      %40 = sbr.rel (%p38) target = $region8
    $region5: #{tpu_custom_call.1} parent=1 // loop_body
      %s42 = ssub.s32 %s37, 1
      %s43 = ssub.s32 %s37, 2
      %s44 = sadd.s32 %s37, 1
      %s45 = ssub.s32 %s37, %s44
      %p46 = scmp.eq.s32.totalorder %s45, 0
      %s48 = sadd.s32 %s47, 1
      %s49 = scalar_select %p46, %s47, %s48
      %p52 = pneg %p46
      %p53 = scmp.eq.s32.totalorder %s37, 1
      %p54 = por %p52, %p53
      %p55 = scmp.ne.s32.totalorder %s47, %s50
      %p56 = scmp.eq.s32.totalorder %s37, 0
      %p57 = por %p55, %p56
      %p58 = scmp.ne.s32.totalorder %s47, %s50
      %p59 = scmp.eq.s32.totalorder %s42, 1
      %p60 = por %p58, %p59
      %p61 = scmp.ne.s32.totalorder %s50, %s51
      %p62 = scmp.eq.s32.totalorder %s42, 0
      %p63 = por %p61, %p62
      %p64 = scmp.ne.s32.totalorder %s50, %s51
      %p65 = scmp.eq.s32.totalorder %s43, 1
      %p66 = por %p64, %p65
      %p68 = scmp.ne.s32.totalorder %s51, %s67
      %p69 = scmp.eq.s32.totalorder %s43, 0
      %p70 = por %p68, %p69
      %s72 = sadd.s32 %s71, 1
      %p75 = scmp.eq.s32.totalorder %s37, 1
      %p76 = scmp.ne.s32.totalorder %s71, %s73
      %p77 = scmp.eq.s32.totalorder %s37, 0
      %p78 = por %p76, %p77
      %p79 = scmp.ne.s32.totalorder %s71, %s73
      %p80 = scmp.eq.s32.totalorder %s42, 1
      %p81 = por %p79, %p80
      %p82 = scmp.ne.s32.totalorder %s73, %s74
      %p83 = scmp.eq.s32.totalorder %s42, 0
      %p84 = por %p82, %p83
      %p85 = scmp.ne.s32.totalorder %s73, %s74
      %p86 = scmp.eq.s32.totalorder %s43, 1
      %p87 = por %p85, %p86
      %p89 = scmp.ne.s32.totalorder %s74, %s88
      %p90 = scmp.eq.s32.totalorder %s43, 0
      %p91 = por %p89, %p90
      %s93 = sadd.s32 %s92, 1
      %p96 = scmp.eq.s32.totalorder %s37, 1
      %p97 = scmp.ne.s32.totalorder %s92, %s94
      %p98 = scmp.eq.s32.totalorder %s37, 0
      %p99 = por %p97, %p98
      %p100 = scmp.ne.s32.totalorder %s92, %s94
      %p101 = scmp.eq.s32.totalorder %s42, 1
      %p102 = por %p100, %p101
      %p103 = scmp.ne.s32.totalorder %s94, %s95
      %p104 = scmp.eq.s32.totalorder %s42, 0
      %p105 = por %p103, %p104
      %p106 = scmp.ne.s32.totalorder %s94, %s95
      %p107 = scmp.eq.s32.totalorder %s43, 1
      %p108 = por %p106, %p107
      %p110 = scmp.ne.s32.totalorder %s95, %s109
      %p111 = scmp.eq.s32.totalorder %s43, 0
      %p112 = por %p110, %p111
      %s114 = sadd.s32 %s113, 1
      %p117 = scmp.eq.s32.totalorder %s37, 1
      %p118 = scmp.ne.s32.totalorder %s113, %s115
      %p119 = scmp.eq.s32.totalorder %s37, 0
      %p120 = por %p118, %p119
      %p121 = scmp.ne.s32.totalorder %s113, %s115
      %p122 = scmp.eq.s32.totalorder %s42, 1
      %p123 = por %p121, %p122
      %p124 = scmp.ne.s32.totalorder %s115, %s116
      %p125 = scmp.eq.s32.totalorder %s42, 0
      %p126 = por %p124, %p125
      %p127 = scmp.ne.s32.totalorder %s115, %s116
      %p128 = scmp.eq.s32.totalorder %s43, 1
      %p129 = por %p127, %p128
      %p131 = scmp.ne.s32.totalorder %s116, %s130
      %p132 = scmp.eq.s32.totalorder %s43, 0
      %p133 = por %p131, %p132
      %s135 = sadd.s32 %s134, 1
      %p138 = scmp.eq.s32.totalorder %s37, 1
      %p139 = scmp.ne.s32.totalorder %s134, %s136
      %p140 = scmp.eq.s32.totalorder %s37, 0
      %p141 = por %p139, %p140
      %p142 = scmp.ne.s32.totalorder %s134, %s136
      %p143 = scmp.eq.s32.totalorder %s42, 1
      %p144 = por %p142, %p143
      %p145 = scmp.ne.s32.totalorder %s136, %s137
      %p146 = scmp.eq.s32.totalorder %s42, 0
      %p147 = por %p145, %p146
      %p148 = scmp.ne.s32.totalorder %s136, %s137
      %p149 = scmp.eq.s32.totalorder %s43, 1
      %p150 = por %p148, %p149
      %p152 = scmp.ne.s32.totalorder %s137, %s151
      %p153 = scmp.eq.s32.totalorder %s43, 0
      %p154 = por %p152, %p153
      %s156 = sadd.s32 %s155, 1
      %p159 = scmp.eq.s32.totalorder %s37, 1
      %p160 = scmp.ne.s32.totalorder %s155, %s157
      %p161 = scmp.eq.s32.totalorder %s37, 0
      %p162 = por %p160, %p161
      %p163 = scmp.ne.s32.totalorder %s155, %s157
      %p164 = scmp.eq.s32.totalorder %s42, 1
      %p165 = por %p163, %p164
      %p166 = scmp.ne.s32.totalorder %s157, %s158
      %p167 = scmp.eq.s32.totalorder %s42, 0
      %p168 = por %p166, %p167
      %p169 = scmp.ne.s32.totalorder %s157, %s158
      %p170 = scmp.eq.s32.totalorder %s43, 1
      %p171 = por %p169, %p170
      %p173 = scmp.ne.s32.totalorder %s158, %s172
      %p174 = scmp.eq.s32.totalorder %s43, 0
      %p175 = por %p173, %p174
      %s177 = sadd.s32 %s176, 1
      %p180 = scmp.eq.s32.totalorder %s37, 1
      %p181 = scmp.ne.s32.totalorder %s176, %s178
      %p182 = scmp.eq.s32.totalorder %s37, 0
      %p183 = por %p181, %p182
      %p184 = scmp.ne.s32.totalorder %s176, %s178
      %p185 = scmp.eq.s32.totalorder %s42, 1
      %p186 = por %p184, %p185
      %p187 = scmp.ne.s32.totalorder %s178, %s179
      %p188 = scmp.eq.s32.totalorder %s42, 0
      %p189 = por %p187, %p188
      %p190 = scmp.ne.s32.totalorder %s178, %s179
      %p191 = scmp.eq.s32.totalorder %s43, 1
      %p192 = por %p190, %p191
      %p194 = scmp.ne.s32.totalorder %s179, %s193
      %p195 = scmp.eq.s32.totalorder %s43, 0
      %p196 = por %p194, %p195
      %s198 = sadd.s32 %s197, 1
      %p201 = scmp.eq.s32.totalorder %s37, 1
      %p202 = scmp.ne.s32.totalorder %s197, %s199
      %p203 = scmp.eq.s32.totalorder %s37, 0
      %p204 = por %p202, %p203
      %p205 = scmp.ne.s32.totalorder %s197, %s199
      %p206 = scmp.eq.s32.totalorder %s42, 1
      %p207 = por %p205, %p206
      %p208 = scmp.ne.s32.totalorder %s199, %s200
      %p209 = scmp.eq.s32.totalorder %s42, 0
      %p210 = por %p208, %p209
      %p211 = scmp.ne.s32.totalorder %s199, %s200
      %p212 = scmp.eq.s32.totalorder %s43, 1
      %p213 = por %p211, %p212
      %p215 = scmp.ne.s32.totalorder %s200, %s214
      %p216 = scmp.eq.s32.totalorder %s43, 0
      %p217 = por %p215, %p216
      %s219 = sadd.s32 %s218, 1
      %p222 = scmp.eq.s32.totalorder %s37, 1
      %p223 = scmp.ne.s32.totalorder %s218, %s220
      %p224 = scmp.eq.s32.totalorder %s37, 0
      %p225 = por %p223, %p224
      %p226 = scmp.ne.s32.totalorder %s218, %s220
      %p227 = scmp.eq.s32.totalorder %s42, 1
      %p228 = por %p226, %p227
      %p229 = scmp.ne.s32.totalorder %s220, %s221
      %p230 = scmp.eq.s32.totalorder %s42, 0
      %p231 = por %p229, %p230
      %p232 = scmp.ne.s32.totalorder %s220, %s221
      %p233 = scmp.eq.s32.totalorder %s43, 1
      %p234 = por %p232, %p233
      %p236 = scmp.ne.s32.totalorder %s221, %s235
      %p237 = scmp.eq.s32.totalorder %s43, 0
      %p238 = por %p236, %p237
      %s240 = sadd.s32 %s239, 1
      %p243 = scmp.eq.s32.totalorder %s37, 1
      %p244 = scmp.ne.s32.totalorder %s239, %s241
      %p245 = scmp.eq.s32.totalorder %s37, 0
      %p246 = por %p244, %p245
      %p247 = scmp.ne.s32.totalorder %s239, %s241
      %p248 = scmp.eq.s32.totalorder %s42, 1
      %p249 = por %p247, %p248
      %p250 = scmp.ne.s32.totalorder %s241, %s242
      %p251 = scmp.eq.s32.totalorder %s42, 0
      %p252 = por %p250, %p251
      %p253 = scmp.ne.s32.totalorder %s241, %s242
      %p254 = scmp.eq.s32.totalorder %s43, 1
      %p255 = por %p253, %p254
      %p257 = scmp.ne.s32.totalorder %s242, %s256
      %p258 = scmp.eq.s32.totalorder %s43, 0
      %p259 = por %p257, %p258
      %s261 = sadd.s32 %s260, 1
      %p264 = scmp.eq.s32.totalorder %s37, 1
      %p265 = scmp.ne.s32.totalorder %s260, %s262
      %p266 = scmp.eq.s32.totalorder %s37, 0
      %p267 = por %p265, %p266
      %p268 = scmp.ne.s32.totalorder %s260, %s262
      %p269 = scmp.eq.s32.totalorder %s42, 1
      %p270 = por %p268, %p269
      %p271 = scmp.ne.s32.totalorder %s262, %s263
      %p272 = scmp.eq.s32.totalorder %s42, 0
      %p273 = por %p271, %p272
      %p274 = scmp.ne.s32.totalorder %s262, %s263
      %p275 = scmp.eq.s32.totalorder %s43, 1
      %p276 = por %p274, %p275
      %p278 = scmp.ne.s32.totalorder %s263, %s277
      %p279 = scmp.eq.s32.totalorder %s43, 0
      %p280 = por %p278, %p279
      %s282 = sadd.s32 %s281, 1
      %p285 = scmp.eq.s32.totalorder %s37, 1
      %p286 = scmp.ne.s32.totalorder %s281, %s283
      %p287 = scmp.eq.s32.totalorder %s37, 0
      %p288 = por %p286, %p287
      %p289 = scmp.ne.s32.totalorder %s281, %s283
      %p290 = scmp.eq.s32.totalorder %s42, 1
      %p291 = por %p289, %p290
      %p292 = scmp.ne.s32.totalorder %s283, %s284
      %p293 = scmp.eq.s32.totalorder %s42, 0
      %p294 = por %p292, %p293
      %p295 = scmp.ne.s32.totalorder %s283, %s284
      %p296 = scmp.eq.s32.totalorder %s43, 1
      %p297 = por %p295, %p296
      %p299 = scmp.ne.s32.totalorder %s284, %s298
      %p300 = scmp.eq.s32.totalorder %s43, 0
      %p301 = por %p299, %p300
      %s303 = sadd.s32 %s302, 1
      %p306 = scmp.eq.s32.totalorder %s37, 1
      %p307 = scmp.ne.s32.totalorder %s302, %s304
      %p308 = scmp.eq.s32.totalorder %s37, 0
      %p309 = por %p307, %p308
      %p310 = scmp.ne.s32.totalorder %s302, %s304
      %p311 = scmp.eq.s32.totalorder %s42, 1
      %p312 = por %p310, %p311
      %p313 = scmp.ne.s32.totalorder %s304, %s305
      %p314 = scmp.eq.s32.totalorder %s42, 0
      %p315 = por %p313, %p314
      %p316 = scmp.ne.s32.totalorder %s304, %s305
      %p317 = scmp.eq.s32.totalorder %s43, 1
      %p318 = por %p316, %p317
      %p320 = scmp.ne.s32.totalorder %s305, %s319
      %p321 = scmp.eq.s32.totalorder %s43, 0
      %p322 = por %p320, %p321
      %s324 = sadd.s32 %s323, 1
      %p327 = scmp.eq.s32.totalorder %s37, 1
      %p328 = scmp.ne.s32.totalorder %s323, %s325
      %p329 = scmp.eq.s32.totalorder %s37, 0
      %p330 = por %p328, %p329
      %p331 = scmp.ne.s32.totalorder %s323, %s325
      %p332 = scmp.eq.s32.totalorder %s42, 1
      %p333 = por %p331, %p332
      %p334 = scmp.ne.s32.totalorder %s325, %s326
      %p335 = scmp.eq.s32.totalorder %s42, 0
      %p336 = por %p334, %p335
      %p337 = scmp.ne.s32.totalorder %s325, %s326
      %p338 = scmp.eq.s32.totalorder %s43, 1
      %p339 = por %p337, %p338
      %p341 = scmp.ne.s32.totalorder %s326, %s340
      %p342 = scmp.eq.s32.totalorder %s43, 0
      %p343 = por %p341, %p342
      %s345 = sadd.s32 %s344, 1
      %p348 = scmp.eq.s32.totalorder %s37, 1
      %p349 = scmp.ne.s32.totalorder %s344, %s346
      %p350 = scmp.eq.s32.totalorder %s37, 0
      %p351 = por %p349, %p350
      %p352 = scmp.ne.s32.totalorder %s344, %s346
      %p353 = scmp.eq.s32.totalorder %s42, 1
      %p354 = por %p352, %p353
      %p355 = scmp.ne.s32.totalorder %s346, %s347
      %p356 = scmp.eq.s32.totalorder %s42, 0
      %p357 = por %p355, %p356
      %p358 = scmp.ne.s32.totalorder %s346, %s347
      %p359 = scmp.eq.s32.totalorder %s43, 1
      %p360 = por %p358, %p359
      %p362 = scmp.ne.s32.totalorder %s347, %s361
      %p363 = scmp.eq.s32.totalorder %s43, 0
      %p364 = por %p362, %p363
      %s366 = sadd.s32 %s365, 1
      %p369 = scmp.eq.s32.totalorder %s37, 1
      %p370 = scmp.ne.s32.totalorder %s365, %s367
      %p371 = scmp.eq.s32.totalorder %s37, 0
      %p372 = por %p370, %p371
      %p373 = scmp.ne.s32.totalorder %s365, %s367
      %p374 = scmp.eq.s32.totalorder %s42, 1
      %p375 = por %p373, %p374
      %p376 = scmp.ne.s32.totalorder %s367, %s368
      %p377 = scmp.eq.s32.totalorder %s42, 0
      %p378 = por %p376, %p377
      %p379 = scmp.ne.s32.totalorder %s367, %s368
      %p380 = scmp.eq.s32.totalorder %s43, 1
      %p381 = por %p379, %p380
      %p383 = scmp.ne.s32.totalorder %s368, %s382
      %p384 = scmp.eq.s32.totalorder %s43, 0
      %p385 = por %p383, %p384
      %s387 = sadd.s32 %s386, 1
      %p390 = scmp.eq.s32.totalorder %s37, 1
      %p391 = scmp.ne.s32.totalorder %s386, %s388
      %p392 = scmp.eq.s32.totalorder %s37, 0
      %p393 = por %p391, %p392
      %p394 = scmp.ne.s32.totalorder %s386, %s388
      %p395 = scmp.eq.s32.totalorder %s42, 1
      %p396 = por %p394, %p395
      %p397 = scmp.ne.s32.totalorder %s388, %s389
      %p398 = scmp.eq.s32.totalorder %s42, 0
      %p399 = por %p397, %p398
      %p400 = scmp.ne.s32.totalorder %s388, %s389
      %p401 = scmp.eq.s32.totalorder %s43, 1
      %p402 = por %p400, %p401
      %p404 = scmp.ne.s32.totalorder %s389, %s403
      %p405 = scmp.eq.s32.totalorder %s43, 0
      %p406 = por %p404, %p405
      %s408 = sadd.s32 %s407, 1
      %p411 = scmp.eq.s32.totalorder %s37, 1
      %p412 = scmp.ne.s32.totalorder %s407, %s409
      %p413 = scmp.eq.s32.totalorder %s37, 0
      %p414 = por %p412, %p413
      %p415 = scmp.ne.s32.totalorder %s407, %s409
      %p416 = scmp.eq.s32.totalorder %s42, 1
      %p417 = por %p415, %p416
      %p418 = scmp.ne.s32.totalorder %s409, %s410
      %p419 = scmp.eq.s32.totalorder %s42, 0
      %p420 = por %p418, %p419
      %p421 = scmp.ne.s32.totalorder %s409, %s410
      %p422 = scmp.eq.s32.totalorder %s43, 1
      %p423 = por %p421, %p422
      %p425 = scmp.ne.s32.totalorder %s410, %s424
      %p426 = scmp.eq.s32.totalorder %s43, 0
      %p427 = por %p425, %p426
      %s429 = sadd.s32 %s428, 1
      %p432 = scmp.eq.s32.totalorder %s37, 1
      %p433 = scmp.ne.s32.totalorder %s428, %s430
      %p434 = scmp.eq.s32.totalorder %s37, 0
      %p435 = por %p433, %p434
      %p436 = scmp.ne.s32.totalorder %s428, %s430
      %p437 = scmp.eq.s32.totalorder %s42, 1
      %p438 = por %p436, %p437
      %p439 = scmp.ne.s32.totalorder %s430, %s431
      %p440 = scmp.eq.s32.totalorder %s42, 0
      %p441 = por %p439, %p440
      %p442 = scmp.ne.s32.totalorder %s430, %s431
      %p443 = scmp.eq.s32.totalorder %s43, 1
      %p444 = por %p442, %p443
      %p446 = scmp.ne.s32.totalorder %s431, %s445
      %p447 = scmp.eq.s32.totalorder %s43, 0
      %p448 = por %p446, %p447
      %s450 = sadd.s32 %s449, 1
      %p453 = scmp.eq.s32.totalorder %s37, 1
      %p454 = scmp.ne.s32.totalorder %s449, %s451
      %p455 = scmp.eq.s32.totalorder %s37, 0
      %p456 = por %p454, %p455
      %p457 = scmp.ne.s32.totalorder %s449, %s451
      %p458 = scmp.eq.s32.totalorder %s42, 1
      %p459 = por %p457, %p458
      %p460 = scmp.ne.s32.totalorder %s451, %s452
      %p461 = scmp.eq.s32.totalorder %s42, 0
      %p462 = por %p460, %p461
      %p463 = scmp.ne.s32.totalorder %s451, %s452
      %p464 = scmp.eq.s32.totalorder %s43, 1
      %p465 = por %p463, %p464
      %p467 = scmp.ne.s32.totalorder %s452, %s466
      %p468 = scmp.eq.s32.totalorder %s43, 0
      %p469 = por %p467, %p468
      %s471 = sadd.s32 %s470, 1
      %p474 = scmp.eq.s32.totalorder %s37, 1
      %p475 = scmp.ne.s32.totalorder %s470, %s472
      %p476 = scmp.eq.s32.totalorder %s37, 0
      %p477 = por %p475, %p476
      %p478 = scmp.ne.s32.totalorder %s470, %s472
      %p479 = scmp.eq.s32.totalorder %s42, 1
      %p480 = por %p478, %p479
      %p481 = scmp.ne.s32.totalorder %s472, %s473
      %p482 = scmp.eq.s32.totalorder %s42, 0
      %p483 = por %p481, %p482
      %p484 = scmp.ne.s32.totalorder %s472, %s473
      %p485 = scmp.eq.s32.totalorder %s43, 1
      %p486 = por %p484, %p485
      %p488 = scmp.ne.s32.totalorder %s473, %s487
      %p489 = scmp.eq.s32.totalorder %s43, 0
      %p490 = por %p488, %p489
      %s491 = ssub.s32 %s37, %s44
      %p492 = scmp.eq.s32.totalorder %s491, 0
      %s494 = sadd.s32 %s493, 1
      %s495 = scalar_select %p492, %s493, %s494
      %p498 = pneg %p492
      %p499 = scmp.eq.s32.totalorder %s37, 1
      %p500 = por %p498, %p499
      %p501 = scmp.ne.s32.totalorder %s493, %s496
      %p502 = scmp.eq.s32.totalorder %s37, 0
      %p503 = por %p501, %p502
      %p504 = scmp.ne.s32.totalorder %s493, %s496
      %p505 = scmp.eq.s32.totalorder %s42, 1
      %p506 = por %p504, %p505
      %p507 = scmp.ne.s32.totalorder %s496, %s497
      %p508 = scmp.eq.s32.totalorder %s42, 0
      %p509 = por %p507, %p508
      %p510 = scmp.ne.s32.totalorder %s496, %s497
      %p511 = scmp.eq.s32.totalorder %s43, 1
      %p512 = por %p510, %p511
      %p514 = scmp.ne.s32.totalorder %s497, %s513
      %p515 = scmp.eq.s32.totalorder %s43, 0
      %p516 = por %p514, %p515
      %s517 = ssub.s32 %s37, %s44
      %p518 = scmp.eq.s32.totalorder %s517, 0
      %s520 = sadd.s32 %s519, 1
      %s521 = scalar_select %p518, %s519, %s520
      %p524 = pneg %p518
      %p525 = scmp.eq.s32.totalorder %s37, 1
      %p526 = por %p524, %p525
      %p527 = scmp.ne.s32.totalorder %s519, %s522
      %p528 = scmp.eq.s32.totalorder %s37, 0
      %p529 = por %p527, %p528
      %p530 = scmp.ne.s32.totalorder %s519, %s522
      %p531 = scmp.eq.s32.totalorder %s42, 1
      %p532 = por %p530, %p531
      %p533 = scmp.ne.s32.totalorder %s522, %s523
      %p534 = scmp.eq.s32.totalorder %s42, 0
      %p535 = por %p533, %p534
      %p536 = scmp.ne.s32.totalorder %s522, %s523
      %p537 = scmp.eq.s32.totalorder %s43, 1
      %p538 = por %p536, %p537
      %p540 = scmp.ne.s32.totalorder %s523, %s539
      %p541 = scmp.eq.s32.totalorder %s43, 0
      %p542 = por %p540, %p541
      %p543 = scmp.le.s32.totalorder 1, %s37
      %p544 = scmp.lt.s32.totalorder %s37, 3
      %p545 = pnand %p543, %p544
      %p546 = pneg %p545
      // Predicated region
      $region9: #{tpu_custom_call.1} parent=5 // pred_check
        _
      $region10: #{tpu_custom_call.1} parent=5 // pred_check_branch
        %548 = sbr.rel (%p545) target = $region12
      $region11: #{tpu_custom_call.1} parent=5 // pred_region
        %s549 = ssub.s32 %s37, 1
        // Predicated region
        $region13: #{tpu_custom_call.1} parent=11 // pred_check
          %p550 = pneg %p84
        $region14: #{tpu_custom_call.1} parent=11 // pred_check_branch
          %552 = sbr.rel (%p550) target = $region16
        $region15: #{tpu_custom_call.1} parent=11 // pred_region
          _
        $region16: #{tpu_custom_call.1} parent=11 // pred_fallthru
          _
        // Predicated region
        $region17: #{tpu_custom_call.1} parent=11 // pred_check
          %p553 = pneg %p105
        $region18: #{tpu_custom_call.1} parent=11 // pred_check_branch
          %555 = sbr.rel (%p553) target = $region20
        $region19: #{tpu_custom_call.1} parent=11 // pred_region
          _
        $region20: #{tpu_custom_call.1} parent=11 // pred_fallthru
          _
        // Predicated region
        $region21: #{tpu_custom_call.1} parent=11 // pred_check
          %p556 = pneg %p126
        $region22: #{tpu_custom_call.1} parent=11 // pred_check_branch
          %558 = sbr.rel (%p556) target = $region24
        $region23: #{tpu_custom_call.1} parent=11 // pred_region
          _
        $region24: #{tpu_custom_call.1} parent=11 // pred_fallthru
          _
        // Predicated region
        $region25: #{tpu_custom_call.1} parent=11 // pred_check
          %p559 = pneg %p147
        $region26: #{tpu_custom_call.1} parent=11 // pred_check_branch
          %561 = sbr.rel (%p559) target = $region28
        $region27: #{tpu_custom_call.1} parent=11 // pred_region
          _
        $region28: #{tpu_custom_call.1} parent=11 // pred_fallthru
          _
        // Predicated region
        $region29: #{tpu_custom_call.1} parent=11 // pred_check
          %p562 = pneg %p168
        $region30: #{tpu_custom_call.1} parent=11 // pred_check_branch
          %564 = sbr.rel (%p562) target = $region32
        $region31: #{tpu_custom_call.1} parent=11 // pred_region
          _
        $region32: #{tpu_custom_call.1} parent=11 // pred_fallthru
          _
        // Predicated region
        $region33: #{tpu_custom_call.1} parent=11 // pred_check
          %p565 = pneg %p189
        $region34: #{tpu_custom_call.1} parent=11 // pred_check_branch
          %567 = sbr.rel (%p565) target = $region36
        $region35: #{tpu_custom_call.1} parent=11 // pred_region
          _
        $region36: #{tpu_custom_call.1} parent=11 // pred_fallthru
          _
        // Predicated region
        $region37: #{tpu_custom_call.1} parent=11 // pred_check
          %p568 = pneg %p210
        $region38: #{tpu_custom_call.1} parent=11 // pred_check_branch
          %570 = sbr.rel (%p568) target = $region40
        $region39: #{tpu_custom_call.1} parent=11 // pred_region
          _
        $region40: #{tpu_custom_call.1} parent=11 // pred_fallthru
          _
        // Predicated region
        $region41: #{tpu_custom_call.1} parent=11 // pred_check
          %p571 = pneg %p231
        $region42: #{tpu_custom_call.1} parent=11 // pred_check_branch
          %573 = sbr.rel (%p571) target = $region44
        $region43: #{tpu_custom_call.1} parent=11 // pred_region
          _
        $region44: #{tpu_custom_call.1} parent=11 // pred_fallthru
          _
        // Predicated region
        $region45: #{tpu_custom_call.1} parent=11 // pred_check
          %p574 = pneg %p252
        $region46: #{tpu_custom_call.1} parent=11 // pred_check_branch
          %576 = sbr.rel (%p574) target = $region48
        $region47: #{tpu_custom_call.1} parent=11 // pred_region
          _
        $region48: #{tpu_custom_call.1} parent=11 // pred_fallthru
          _
        // Predicated region
        $region49: #{tpu_custom_call.1} parent=11 // pred_check
          %p577 = pneg %p273
        $region50: #{tpu_custom_call.1} parent=11 // pred_check_branch
          %579 = sbr.rel (%p577) target = $region52
        $region51: #{tpu_custom_call.1} parent=11 // pred_region
          _
        $region52: #{tpu_custom_call.1} parent=11 // pred_fallthru
          _
        // Predicated region
        $region53: #{tpu_custom_call.1} parent=11 // pred_check
          %p580 = pneg %p294
        $region54: #{tpu_custom_call.1} parent=11 // pred_check_branch
          %582 = sbr.rel (%p580) target = $region56
        $region55: #{tpu_custom_call.1} parent=11 // pred_region
          _
        $region56: #{tpu_custom_call.1} parent=11 // pred_fallthru
          _
        // Predicated region
        $region57: #{tpu_custom_call.1} parent=11 // pred_check
          %p583 = pneg %p315
        $region58: #{tpu_custom_call.1} parent=11 // pred_check_branch
          %585 = sbr.rel (%p583) target = $region60
        $region59: #{tpu_custom_call.1} parent=11 // pred_region
          _
        $region60: #{tpu_custom_call.1} parent=11 // pred_fallthru
          _
        // Predicated region
        $region61: #{tpu_custom_call.1} parent=11 // pred_check
          %p586 = pneg %p336
        $region62: #{tpu_custom_call.1} parent=11 // pred_check_branch
          %588 = sbr.rel (%p586) target = $region64
        $region63: #{tpu_custom_call.1} parent=11 // pred_region
          _
        $region64: #{tpu_custom_call.1} parent=11 // pred_fallthru
          _
        // Predicated region
        $region65: #{tpu_custom_call.1} parent=11 // pred_check
          %p589 = pneg %p357
        $region66: #{tpu_custom_call.1} parent=11 // pred_check_branch
          %591 = sbr.rel (%p589) target = $region68
        $region67: #{tpu_custom_call.1} parent=11 // pred_region
          _
        $region68: #{tpu_custom_call.1} parent=11 // pred_fallthru
          _
        // Predicated region
        $region69: #{tpu_custom_call.1} parent=11 // pred_check
          %p592 = pneg %p378
        $region70: #{tpu_custom_call.1} parent=11 // pred_check_branch
          %594 = sbr.rel (%p592) target = $region72
        $region71: #{tpu_custom_call.1} parent=11 // pred_region
          _
        $region72: #{tpu_custom_call.1} parent=11 // pred_fallthru
          _
        // Predicated region
        $region73: #{tpu_custom_call.1} parent=11 // pred_check
          %p595 = pneg %p399
        $region74: #{tpu_custom_call.1} parent=11 // pred_check_branch
          %597 = sbr.rel (%p595) target = $region76
        $region75: #{tpu_custom_call.1} parent=11 // pred_region
          _
        $region76: #{tpu_custom_call.1} parent=11 // pred_fallthru
          _
        // Predicated region
        $region77: #{tpu_custom_call.1} parent=11 // pred_check
          %p598 = pneg %p420
        $region78: #{tpu_custom_call.1} parent=11 // pred_check_branch
          %600 = sbr.rel (%p598) target = $region80
        $region79: #{tpu_custom_call.1} parent=11 // pred_region
          _
        $region80: #{tpu_custom_call.1} parent=11 // pred_fallthru
          _
        // Predicated region
        $region81: #{tpu_custom_call.1} parent=11 // pred_check
          %p601 = pneg %p441
        $region82: #{tpu_custom_call.1} parent=11 // pred_check_branch
          %603 = sbr.rel (%p601) target = $region84
        $region83: #{tpu_custom_call.1} parent=11 // pred_region
          _
        $region84: #{tpu_custom_call.1} parent=11 // pred_fallthru
          _
        // Predicated region
        $region85: #{tpu_custom_call.1} parent=11 // pred_check
          %p604 = pneg %p462
        $region86: #{tpu_custom_call.1} parent=11 // pred_check_branch
          %606 = sbr.rel (%p604) target = $region88
        $region87: #{tpu_custom_call.1} parent=11 // pred_region
          _
        $region88: #{tpu_custom_call.1} parent=11 // pred_fallthru
          _
        // Predicated region
        $region89: #{tpu_custom_call.1} parent=11 // pred_check
          %p607 = pneg %p483
        $region90: #{tpu_custom_call.1} parent=11 // pred_check_branch
          %609 = sbr.rel (%p607) target = $region92
        $region91: #{tpu_custom_call.1} parent=11 // pred_region
          _
        $region92: #{tpu_custom_call.1} parent=11 // pred_fallthru
          _
      $region12: #{tpu_custom_call.1} parent=5 // pred_fallthru
        _
      %p610 = scmp.lt.s32.totalorder %s37, 2
      // Predicated region
      $region93: #{tpu_custom_call.1} parent=5 // pred_check
        %p611 = pneg %p610
      $region94: #{tpu_custom_call.1} parent=5 // pred_check_branch
        %613 = sbr.rel (%p611) target = $region96
      $region95: #{tpu_custom_call.1} parent=5 // pred_region
        // Predicated region
        $region97: #{tpu_custom_call.1} parent=95 // pred_check
          %p614 = pneg %p57
        $region98: #{tpu_custom_call.1} parent=95 // pred_check_branch
          %616 = sbr.rel (%p614) target = $region100
        $region99: #{tpu_custom_call.1} parent=95 // pred_region
          %p617 = scmp.lt.s32.totalorder %s37, 1
          %s618 = scalar_select %p617, %s37, 1
          %s619 = smul.addr %s618, 2
          %s620 = scalar_lea.vmem %s0, %s619
        $region100: #{tpu_custom_call.1} parent=95 // pred_fallthru
          _
      $region96: #{tpu_custom_call.1} parent=5 // pred_fallthru
        _
      %p621 = scmp.le.s32.totalorder 1, %s37
      %p622 = scmp.lt.s32.totalorder %s37, 3
      %p623 = pnand %p621, %p622
      %p624 = pneg %p623
      // Predicated region
      $region101: #{tpu_custom_call.1} parent=5 // pred_check
        _
      $region102: #{tpu_custom_call.1} parent=5 // pred_check_branch
        %626 = sbr.rel (%p623) target = $region104
      $region103: #{tpu_custom_call.1} parent=5 // pred_region
        %s627 = ssub.s32 %s37, 1
        %p628 = scmp.lt.s32.totalorder %s42, 1
        %s629 = scalar_select %p628, %s42, 1
        %s630 = smul.addr %s629, 2
        %s631 = scalar_lea.vmem %s0, %s630
        %p632 = pneg %p63
        %p633 = pneg %p60
        %p634 = pneg %p84
        %p635 = pneg %p81
        %p636 = pneg %p105
        %p637 = pneg %p102
        %p638 = pneg %p126
        %p639 = pneg %p123
        %p640 = pneg %p147
        %p641 = pneg %p144
        %p642 = pneg %p168
        %p643 = pneg %p165
        %p644 = pneg %p189
        %p645 = pneg %p186
        %p646 = pneg %p210
        %p647 = pneg %p207
        %p648 = pneg %p231
        %p649 = pneg %p228
        %p650 = pneg %p252
        %p651 = pneg %p249
        %p652 = pneg %p273
        %p653 = pneg %p270
        %p654 = pneg %p294
        %p655 = pneg %p291
        %p656 = pneg %p315
        %p657 = pneg %p312
        %p658 = pneg %p336
        %p659 = pneg %p333
        %p660 = pneg %p357
        %p661 = pneg %p354
        %p662 = pneg %p378
        %p663 = pneg %p375
        %p664 = pneg %p399
        %p665 = pneg %p396
        %p666 = pneg %p420
        %p667 = pneg %p417
        %p668 = pneg %p441
        %p669 = pneg %p438
        %p670 = pneg %p462
        %p671 = pneg %p459
        %p672 = pneg %p483
        %p673 = pneg %p480
        %p674 = pneg %p509
        %p675 = pneg %p506
        %s676 = sand.u32 %s496, 1
        %s677 = scalar_lea.sflag [#allocation4], %s676
        %s678 = sand.u32 %s496, 1
        %s679 = smul.addr %s678, 2
        %s680 = scalar_lea.vmem [#allocation3], %s679
        %p681 = pneg %p535
        %p682 = pneg %p532
        %s683 = sand.u32 %s522, 1
        %s684 = scalar_lea.sflag [#allocation6], %s683
        %s685 = sand.u32 %s522, 1
        %s686 = scalar_lea.vmem [#allocation5], %s685
        %p687 = scmp.lt.s32.totalorder %s42, 1
        %s688 = scalar_select %p687, %s42, 1
        %s689 = smul.addr %s688, 2
        %s690 = scalar_lea.vmem %s0, %s689
        %v691 = vld [vmem:[%s690] sm:$0x3]
        %v692 = vld [vmem:[%s3] sm:$0xff]
        %v693 = vld [vmem:[%s3 + $0x8] sm:$0xff]
        %v694 = vld [vmem:[%s3 + $0x10] sm:$0x1]
        %v695 = vld [vmem:[%s3 + $0x18] sm:$0x1]
        %v697 = vlaneseq
        %v698 = vshrl.u32 %v697, 7
        %v699 = vsub.s32 1, %v698
        %v700 = vrot.slane %v691, %v699
        %701 = vrot.lane.b32.xlu0 %v700, 17
        %v702 = vpop.permute.xlu0 %701
        %v704 = vlaneseq
        %v705 = vshrl.u32 %v704, 7
        %v706 = vsub.s32 0, %v705
        %v707 = vrot.slane %v691, %v706
        %708 = vrot.lane.b32.xlu0 %v707, 17
        %v709 = vpop.permute.xlu0 %708
        %vm710 = vcmask 138240
        %v711 = vsel %vm710, %v709, %v702
        %v714 = vsel %vm710, %v702, %v709
        %v715 = vmul.f32 %v714, %v692
        %v716 = vmul.f32 %v711, %v693
        %717 = vrot.lane.b32.xlu0 %v700, 16
        %v718 = vpop.permute.xlu0 %717
        %720 = vrot.lane.b32.xlu0 %v707, 16
        %v721 = vpop.permute.xlu0 %720
        %vm722 = vcmask 130048
        %v723 = vsel %vm722, %v721, %v718
        %v726 = vsel %vm722, %v718, %v721
        %v729 = vrot.slane %v692, 1
        %v730 = vrot.slane %v693, 1
        %v733 = vmul.f32 %v726, %v729
        %v734 = vmul.f32 %v723, %v730
        %735 = vrot.lane.b32.xlu0 %v700, 15
        %v736 = vpop.permute.xlu0 %735
        %738 = vrot.lane.b32.xlu0 %v707, 15
        %v739 = vpop.permute.xlu0 %738
        %vm740 = vcmask 121856
        %v741 = vsel %vm740, %v739, %v736
        %v744 = vsel %vm740, %v736, %v739
        %v745 = vrot.slane %v692, 2
        %v746 = vrot.slane %v693, 2
        %v749 = vmul.f32 %v744, %v745
        %v750 = vmul.f32 %v741, %v746
        %751 = vrot.lane.b32.xlu0 %v700, 1
        %v752 = vpop.permute.xlu0 %751
        %754 = vrot.lane.b32.xlu0 %v707, 1
        %v755 = vpop.permute.xlu0 %754
        %vm756 = vcmask 7168
        %v757 = vsel %vm756, %v755, %v752
        %v760 = vsel %vm756, %v752, %v755
        %v761 = vrot.slane %v692, 3
        %v762 = vrot.slane %v693, 3
        %v765 = vmul.f32 %v760, %v761
        %v766 = vmul.f32 %v757, %v762
        %v767 = vcombine.high %v692, %v693
        %v769 = vunpack.c.l.s4 1966171168
        %v770 = vunpack.c.0.s8 %v769
        %v771 = vlaneseq
        %v772 = vshrl.u32 %v771, 7
        %v773 = vsub.s32 %v770, %v772
        %v774 = vrot.slane %v767, %v773
        %v776 = vunpack.c.l.s4 1966171168
        %v777 = vunpack.c.0.s8 %v776
        %v778 = vlaneseq
        %v779 = vshrl.u32 %v778, 7
        %v780 = vsub.s32 %v777, %v779
        %v781 = vrot.slane %v774, %v780
        %v783 = vmul.f32 %v691, %v781
        %784 = vrot.lane.b32.xlu0 %v707, 127
        %v785 = vpop.permute.xlu0 %784
        %786 = vrot.lane.b32.xlu0 %v700, 127
        %v787 = vpop.permute.xlu0 %786
        %vm788 = vcmask 1039360
        %v789 = vsel %vm788, %v785, %v787
        %v793 = vsel %vm788, %v787, %v785
        %v794 = vrot.slane %v692, 5
        %v795 = vrot.slane %v693, 5
        %v798 = vmul.f32 %v789, %v794
        %v799 = vmul.f32 %v793, %v795
        %800 = vrot.lane.b32.xlu0 %v707, 113
        %v801 = vpop.permute.xlu0 %800
        %802 = vrot.lane.b32.xlu0 %v700, 113
        %v803 = vpop.permute.xlu0 %802
        %vm804 = vcmask 924672
        %v805 = vsel %vm804, %v801, %v803
        %v809 = vsel %vm804, %v803, %v801
        %v810 = vrot.slane %v692, 6
        %v811 = vrot.slane %v693, 6
        %v814 = vmul.f32 %v805, %v810
        %v815 = vmul.f32 %v809, %v811
        %816 = vrot.lane.b32.xlu0 %v707, 112
        %v817 = vpop.permute.xlu0 %816
        %818 = vrot.lane.b32.xlu0 %v700, 112
        %v819 = vpop.permute.xlu0 %818
        %vm820 = vcmask 916480
        %v821 = vsel %vm820, %v817, %v819
        %v825 = vsel %vm820, %v819, %v817
        %v826 = vrot.slane %v692, 7
        %v827 = vrot.slane %v693, 7
        %v830 = vmul.f32 %v821, %v826
        %v831 = vmul.f32 %v825, %v827
        %832 = vrot.lane.b32.xlu0 %v707, 111
        %v833 = vpop.permute.xlu0 %832
        %834 = vrot.lane.b32.xlu0 %v700, 111
        %v835 = vpop.permute.xlu0 %834
        %vm836 = vcmask 908288
        %v837 = vsel %vm836, %v833, %v835
        %v841 = vsel %vm836, %v835, %v833
        %v842 = vmul.f32 %v837, %v694
        %v843 = vmul.f32 %v841, %v695
        %v846 = vrot.slane %v733, 7
        %v847 = vrot.slane %v734, 7
        %v852 = vrot.slane %v749, 6
        %v853 = vrot.slane %v750, 6
        %v858 = vrot.slane %v765, 5
        %v859 = vrot.slane %v766, 5
        %v863 = vlaneseq
        %v864 = vshrl.u32 %v863, 7
        %v865 = vsub.s32 0, %v864
        %v866 = vrot.slane %v783, %v865
        %v867 = vlaneseq
        %v868 = vshrl.u32 %v867, 7
        %v869 = vsub.s32 1, %v868
        %v870 = vrot.slane %v783, %v869
        %v875 = vrot.slane %v798, 3
        %v876 = vrot.slane %v799, 3
        %v881 = vrot.slane %v814, 2
        %v882 = vrot.slane %v815, 2
        %v887 = vrot.slane %v830, 1
        %v888 = vrot.slane %v831, 1
        %vm891 = vcmask 1040384
        %v892 = vsel %vm891, %v715, %v846
        %v893 = vsel %vm891, %v716, %v847
        %vm894 = vcmask 1041408
        %v895 = vsel %vm894, %v892, %v852
        %v896 = vsel %vm894, %v893, %v853
        %vm897 = vcmask 1042432
        %v898 = vsel %vm897, %v895, %v858
        %v899 = vsel %vm897, %v896, %v859
        %vm900 = vcmask 1043456
        %v901 = vsel %vm900, %v898, %v866
        %v902 = vsel %vm900, %v899, %v870
        %vm903 = vcmask 1044480
        %v904 = vsel %vm903, %v901, %v875
        %v905 = vsel %vm903, %v902, %v876
        %vm906 = vcmask 1045504
        %v907 = vsel %vm906, %v904, %v881
        %v908 = vsel %vm906, %v905, %v882
        %vm909 = vcmask 1046528
        %v910 = vsel %vm909, %v907, %v887
        %v911 = vsel %vm909, %v908, %v888
        %v912 = vld [vmem:[%s1] sm:$0xf]
        %vm913 = vcmask 72704
        %v915 = vsel %vm913, %v912, 0
        %v918 = vsel %vm891, %v842, 0
        %v921 = vsel %vm891, %v843, 0
        %923 = vmatprep.subr.mxu0 %v911
        %924 = vmatpush1.msra.mxu0 %v910
        %925 = vmatprep.subr.mxu0 %v921
        %926 = vmatpush1.msra.mxu0 %v918
        %927 = vmatprep.subr.mxu0 0.0
        %928 = vmatpush1.msra.mxu0 0.0
        %929 = vmatprep.subr.mxu0 0.0
        %930 = vmatpush1.msra.mxu0 0.0
        %931 = vmatprep.subr.mxu0 0.0
        %932 = vmatpush1.msra.mxu0 0.0
        %933 = vmatprep.subr.mxu0 0.0
        %934 = vmatpush1.msra.mxu0 0.0
        %935 = vmatprep.subr.mxu0 0.0
        %936 = vmatpush1.msra.mxu0 0.0
        %937 = vmatprep.subr.mxu0 0.0
        %938 = vmatpush1.msra.mxu0 0.0
        %939 = vmatprep.subr.mxu0 0.0
        %940 = vmatpush1.msra.mxu0 0.0
        %941 = vmatprep.subr.mxu0 0.0
        %942 = vmatpush1.msra.mxu0 0.0
        %943 = vmatprep.subr.mxu0 0.0
        %944 = vmatpush1.msra.mxu0 0.0
        %945 = vmatprep.subr.mxu0 0.0
        %946 = vmatpush1.msra.mxu0 0.0
        %947 = vmatprep.subr.mxu0 0.0
        %948 = vmatpush1.msra.mxu0 0.0
        %949 = vmatprep.subr.mxu0 0.0
        %950 = vmatpush1.msra.mxu0 0.0
        %951 = vmatprep.subr.mxu0 0.0
        %952 = vmatpush1.msra.mxu0 0.0
        %953 = vmatprep.subr.mxu0 0.0
        %954 = vmatpush1.msra.mxu0 0.0
        %955 = vmatprep.subr.mxu0 0.0
        %956 = vmatpush1.msra.mxu0 0.0
        %957 = vmatprep.subr.mxu0 0.0
        %958 = vmatpush1.msra.mxu0 0.0
        %959 = vmatprep.subr.mxu0 0.0
        %960 = vmatpush1.msra.mxu0 0.0
        %961 = vmatprep.subr.mxu0 0.0
        %962 = vmatpush1.msra.mxu0 0.0
        %963 = vmatprep.subr.mxu0 0.0
        %964 = vmatpush1.msra.mxu0 0.0
        %965 = vmatprep.subr.mxu0 0.0
        %966 = vmatpush1.msra.mxu0 0.0
        %967 = vmatprep.subr.mxu0 0.0
        %968 = vmatpush1.msra.mxu0 0.0
        %969 = vmatprep.subr.mxu0 0.0
        %970 = vmatpush1.msra.mxu0 0.0
        %971 = vmatprep.subr.mxu0 0.0
        %972 = vmatpush1.msra.mxu0 0.0
        %973 = vmatprep.subr.mxu0 0.0
        %974 = vmatpush1.msra.mxu0 0.0
        %975 = vmatprep.subr.mxu0 0.0
        %976 = vmatpush1.msra.mxu0 0.0
        %977 = vmatprep.subr.mxu0 0.0
        %978 = vmatpush1.msra.mxu0 0.0
        %979 = vmatprep.subr.mxu0 0.0
        %980 = vmatpush1.msra.mxu0 0.0
        %981 = vmatprep.subr.mxu0 0.0
        %982 = vmatpush1.msra.mxu0 0.0
        %983 = vmatprep.subr.mxu0 0.0
        %984 = vmatpush1.msra.mxu0 0.0
        %985 = vmatprep.subr.mxu0 0.0
        %986 = vmatpush1.msra.mxu0 0.0
        %987 = vmatprep.mubr.f32.mxu0 0.0
        %988 = vmatmul.mubr.f32.gmra.mrb[0].mxu0 %v915
        %v989 = vpop.f32.mrb[0].mxu0
        %v990 = vadd.f32 0.0, %v989
        %v991 = vpop.f32.mrb[0].mxu0
        %v992 = vadd.f32 0.0, %v991
        %993 = vdwg.mxu0
        %v994 = vld [vmem:[%s4] sm:$0xff]
        %v995 = vld [vmem:[%s4 + $0x8] sm:$0xff]
        %v996 = vld [vmem:[%s4 + $0x10] sm:$0xff]
        %v997 = vld [vmem:[%s4 + $0x18] sm:$0xff]
        %v998 = vld [vmem:[%s4 + $0x20] sm:$0xff]
        %v999 = vld [vmem:[%s4 + $0x28] sm:$0xff]
        %v1000 = vld [vmem:[%s4 + $0x30] sm:$0xff]
        %v1001 = vld [vmem:[%s4 + $0x38] sm:$0xff]
        %v1002 = vld [vmem:[%s4 + $0x40] sm:$0xff]
        %v1003 = vld [vmem:[%s4 + $0x48] sm:$0xff]
        %v1004 = vld [vmem:[%s4 + $0x50] sm:$0xff]
        %v1005 = vld [vmem:[%s4 + $0x58] sm:$0xff]
        %v1006 = vld [vmem:[%s4 + $0x60] sm:$0xff]
        %v1007 = vld [vmem:[%s4 + $0x68] sm:$0xff]
        %v1008 = vld [vmem:[%s4 + $0x70] sm:$0xff]
        %v1009 = vld [vmem:[%s4 + $0x78] sm:$0xff]
        %v1010 = vld [vmem:[%s4 + $0x80] sm:$0xff]
        %v1011 = vld [vmem:[%s4 + $0x88] sm:$0xff]
        %v1012 = vld [vmem:[%s4 + $0x90] sm:$0xff]
        %v1013 = vld [vmem:[%s4 + $0x98] sm:$0xff]
        %v1014 = vld [vmem:[%s4 + $0xa0] sm:$0xff]
        %v1015 = vld [vmem:[%s4 + $0xa8] sm:$0xff]
        %v1016 = vld [vmem:[%s4 + $0xb0] sm:$0xff]
        %v1017 = vld [vmem:[%s4 + $0xb8] sm:$0xff]
        %v1018 = vld [vmem:[%s4 + $0xc0] sm:$0xff]
        %v1019 = vld [vmem:[%s4 + $0xc8] sm:$0xff]
        %v1020 = vld [vmem:[%s4 + $0xd0] sm:$0xff]
        %v1021 = vld [vmem:[%s4 + $0xd8] sm:$0xff]
        %v1022 = vld [vmem:[%s4 + $0xe0] sm:$0xff]
        %v1023 = vld [vmem:[%s4 + $0xe8] sm:$0xff]
        %v1024 = vld [vmem:[%s4 + $0xf0] sm:$0xff]
        %v1025 = vld [vmem:[%s4 + $0xf8] sm:$0xff]
        %v1026 = vld [vmem:[%s2] sm:$0xf]
        %1028 = vset.pattern.permute.xlu0 0
        %1029 = vperm.xlu0 %1028, %v1026
        %v1030 = vpop.permute.xlu0 %1029
        %1032 = vmatprep.subr.mxu0 0.0
        %1033 = vmatpush1.msra.mxu0 %v994
        %1034 = vmatprep.subr.mxu0 0.0
        %1035 = vmatpush1.msra.mxu0 %v995
        %1036 = vmatprep.subr.mxu0 0.0
        %1037 = vmatpush1.msra.mxu0 %v996
        %1038 = vmatprep.subr.mxu0 0.0
        %1039 = vmatpush1.msra.mxu0 %v997
        %1040 = vmatprep.subr.mxu0 0.0
        %1041 = vmatpush1.msra.mxu0 %v998
        %1042 = vmatprep.subr.mxu0 0.0
        %1043 = vmatpush1.msra.mxu0 %v999
        %1044 = vmatprep.subr.mxu0 0.0
        %1045 = vmatpush1.msra.mxu0 %v1000
        %1046 = vmatprep.subr.mxu0 0.0
        %1047 = vmatpush1.msra.mxu0 %v1001
        %1048 = vmatprep.subr.mxu0 0.0
        %1049 = vmatpush1.msra.mxu0 %v1002
        %1050 = vmatprep.subr.mxu0 0.0
        %1051 = vmatpush1.msra.mxu0 %v1003
        %1052 = vmatprep.subr.mxu0 0.0
        %1053 = vmatpush1.msra.mxu0 %v1004
        %1054 = vmatprep.subr.mxu0 0.0
        %1055 = vmatpush1.msra.mxu0 %v1005
        %1056 = vmatprep.subr.mxu0 0.0
        %1057 = vmatpush1.msra.mxu0 %v1006
        %1058 = vmatprep.subr.mxu0 0.0
        %1059 = vmatpush1.msra.mxu0 %v1007
        %1060 = vmatprep.subr.mxu0 0.0
        %1061 = vmatpush1.msra.mxu0 %v1008
        %1062 = vmatprep.subr.mxu0 0.0
        %1063 = vmatpush1.msra.mxu0 %v1009
        %1064 = vmatprep.subr.mxu0 0.0
        %1065 = vmatpush1.msra.mxu0 %v1010
        %1066 = vmatprep.subr.mxu0 0.0
        %1067 = vmatpush1.msra.mxu0 %v1011
        %1068 = vmatprep.subr.mxu0 0.0
        %1069 = vmatpush1.msra.mxu0 %v1012
        %1070 = vmatprep.subr.mxu0 0.0
        %1071 = vmatpush1.msra.mxu0 %v1013
        %1072 = vmatprep.subr.mxu0 0.0
        %1073 = vmatpush1.msra.mxu0 %v1014
        %1074 = vmatprep.subr.mxu0 0.0
        %1075 = vmatpush1.msra.mxu0 %v1015
        %1076 = vmatprep.subr.mxu0 0.0
        %1077 = vmatpush1.msra.mxu0 %v1016
        %1078 = vmatprep.subr.mxu0 0.0
        %1079 = vmatpush1.msra.mxu0 %v1017
        %1080 = vmatprep.subr.mxu0 0.0
        %1081 = vmatpush1.msra.mxu0 %v1018
        %1082 = vmatprep.subr.mxu0 0.0
        %1083 = vmatpush1.msra.mxu0 %v1019
        %1084 = vmatprep.subr.mxu0 0.0
        %1085 = vmatpush1.msra.mxu0 %v1020
        %1086 = vmatprep.subr.mxu0 0.0
        %1087 = vmatpush1.msra.mxu0 %v1021
        %1088 = vmatprep.subr.mxu0 0.0
        %1089 = vmatpush1.msra.mxu0 %v1022
        %1090 = vmatprep.subr.mxu0 0.0
        %1091 = vmatpush1.msra.mxu0 %v1023
        %1092 = vmatprep.subr.mxu0 0.0
        %1093 = vmatpush1.msra.mxu0 %v1024
        %1094 = vmatprep.subr.mxu0 0.0
        %1095 = vmatpush1.msra.mxu0 %v1025
        %1096 = vmatprep.mubr.f32.mxu0 %v992
        %1097 = vmatmul.mubr.f32.gmra.mrb[0].mxu0 %v990
        %v1098 = vpop.f32.mrb[0].mxu0
        %v1099 = vadd.f32 %v1030, %v1098
        %v1100 = vpop.f32.mrb[0].mxu0
        %1101 = vdwg.mxu0
        %vm1102 = vcmp.ge.f32.partialorder %v1099, 0.0
        %v1103 = vmul.f32 %v1099, 0.01
        %v1104 = vsel %vm1102, %v1099, %v1103
        %v1105 = vld [vmem:[%s7] sm:$0xff]
        %v1106 = vld [vmem:[%s7 + $0x8] sm:$0x1]
        %1108 = vrot.lane.b32.xlu0 %v1104, 73
        %v1109 = vpop.permute.xlu0 %1108
        %1111 = vrot.lane.b32.xlu0 %v1104, 9
        %v1112 = vpop.permute.xlu0 %1111
        %v1114 = vsel %vm913, %v1109, %v1112
        %v1115 = vlaneseq
        %v1116 = vshrl.u32 %v1115, 7
        %v1117 = vsub.s32 0, %v1116
        %v1118 = vrot.slane %v1105, %v1117
        %v1119 = vmul.f32 %v1114, %v1118
        %1120 = vrot.lane.b32.xlu0 %v1104, 72
        %v1121 = vpop.permute.xlu0 %1120
        %1123 = vrot.lane.b32.xlu0 %v1104, 8
        %v1124 = vpop.permute.xlu0 %1123
        %vm1126 = vcmask 64512
        %v1127 = vsel %vm1126, %v1121, %v1124
        %v1128 = vlaneseq
        %v1129 = vshrl.u32 %v1128, 7
        %v1130 = vsub.s32 1, %v1129
        %v1131 = vrot.slane %v1105, %v1130
        %v1132 = vmul.f32 %v1127, %v1131
        %1133 = vrot.lane.b32.xlu0 %v1104, 71
        %v1134 = vpop.permute.xlu0 %1133
        %1136 = vrot.lane.b32.xlu0 %v1104, 7
        %v1137 = vpop.permute.xlu0 %1136
        %vm1139 = vcmask 56320
        %v1140 = vsel %vm1139, %v1134, %v1137
        %v1141 = vlaneseq
        %v1142 = vshrl.u32 %v1141, 7
        %v1143 = vsub.s32 2, %v1142
        %v1144 = vrot.slane %v1105, %v1143
        %v1145 = vmul.f32 %v1140, %v1144
        %1146 = vrot.lane.b32.xlu0 %v1104, 65
        %v1147 = vpop.permute.xlu0 %1146
        %1149 = vrot.lane.b32.xlu0 %v1104, 1
        %v1150 = vpop.permute.xlu0 %1149
        %v1152 = vsel %vm756, %v1147, %v1150
        %v1153 = vlaneseq
        %v1154 = vshrl.u32 %v1153, 7
        %v1155 = vsub.s32 3, %v1154
        %v1156 = vrot.slane %v1105, %v1155
        %v1157 = vmul.f32 %v1152, %v1156
        %v1158 = vlaneseq
        %v1159 = vshrl.u32 %v1158, 7
        %v1160 = vsub.s32 4, %v1159
        %v1161 = vrot.slane %v1105, %v1160
        %v1162 = vmul.f32 %v1104, %v1161
        %1163 = vrot.lane.b32.xlu0 %v1104, 127
        %v1164 = vpop.permute.xlu0 %1163
        %1166 = vrot.lane.b32.xlu0 %v1104, 63
        %v1167 = vpop.permute.xlu0 %1166
        %vm1169 = vcmask 515072
        %v1170 = vsel %vm1169, %v1164, %v1167
        %v1171 = vlaneseq
        %v1172 = vshrl.u32 %v1171, 7
        %v1173 = vsub.s32 5, %v1172
        %v1174 = vrot.slane %v1105, %v1173
        %v1175 = vmul.f32 %v1170, %v1174
        %1176 = vrot.lane.b32.xlu0 %v1104, 121
        %v1177 = vpop.permute.xlu0 %1176
        %1179 = vrot.lane.b32.xlu0 %v1104, 57
        %v1180 = vpop.permute.xlu0 %1179
        %vm1182 = vcmask 465920
        %v1183 = vsel %vm1182, %v1177, %v1180
        %v1184 = vlaneseq
        %v1185 = vshrl.u32 %v1184, 7
        %v1186 = vsub.s32 6, %v1185
        %v1187 = vrot.slane %v1105, %v1186
        %v1188 = vmul.f32 %v1183, %v1187
        %1189 = vrot.lane.b32.xlu0 %v1104, 120
        %v1190 = vpop.permute.xlu0 %1189
        %1192 = vrot.lane.b32.xlu0 %v1104, 56
        %v1193 = vpop.permute.xlu0 %1192
        %vm1195 = vcmask 457728
        %v1196 = vsel %vm1195, %v1190, %v1193
        %v1197 = vlaneseq
        %v1198 = vshrl.u32 %v1197, 7
        %v1199 = vsub.s32 7, %v1198
        %v1200 = vrot.slane %v1105, %v1199
        %v1201 = vmul.f32 %v1196, %v1200
        %1202 = vrot.lane.b32.xlu0 %v1104, 119
        %v1203 = vpop.permute.xlu0 %1202
        %1205 = vrot.lane.b32.xlu0 %v1104, 55
        %v1206 = vpop.permute.xlu0 %1205
        %vm1208 = vcmask 449536
        %v1209 = vsel %vm1208, %v1203, %v1206
        %v1210 = vlaneseq
        %v1211 = vshrl.u32 %v1210, 7
        %v1212 = vsub.s32 0, %v1211
        %v1213 = vrot.slane %v1106, %v1212
        %v1214 = vmul.f32 %v1209, %v1213
        %v1216 = vrot.slane %v1132, 4
        %v1219 = vrot.slane %v1157, 4
        %v1222 = vrot.slane %v1175, 4
        %v1225 = vrot.slane %v1201, 4
        %v1227 = vsel %vm900, %v1119, %v1216
        %v1228 = vsel %vm900, %v1145, %v1219
        %v1229 = vsel %vm900, %v1162, %v1222
        %v1230 = vsel %vm900, %v1188, %v1225
        %v1231 = vld [vmem:[%s5] sm:$0xff]
        %vm1232 = vcmask 293888
        %v1234 = vsel %vm1232, %v1231, 0
        %v1237 = vsel %vm900, %v1214, 0
        %1239 = vmatprep.subr.mxu0 0.0
        %1240 = vmatpush1.msra.mxu0 %v1227
        %1241 = vmatprep.subr.mxu0 0.0
        %1242 = vmatpush1.msra.mxu0 %v1228
        %1243 = vmatprep.subr.mxu0 0.0
        %1244 = vmatpush1.msra.mxu0 %v1229
        %1245 = vmatprep.subr.mxu0 0.0
        %1246 = vmatpush1.msra.mxu0 %v1230
        %1247 = vmatprep.subr.mxu0 0.0
        %1248 = vmatpush1.msra.mxu0 %v1237
        %1249 = vmatprep.subr.mxu0 0.0
        %1250 = vmatpush1.msra.mxu0 0.0
        %1251 = vmatprep.subr.mxu0 0.0
        %1252 = vmatpush1.msra.mxu0 0.0
        %1253 = vmatprep.subr.mxu0 0.0
        %1254 = vmatpush1.msra.mxu0 0.0
        %1255 = vmatprep.subr.mxu0 0.0
        %1256 = vmatpush1.msra.mxu0 0.0
        %1257 = vmatprep.subr.mxu0 0.0
        %1258 = vmatpush1.msra.mxu0 0.0
        %1259 = vmatprep.subr.mxu0 0.0
        %1260 = vmatpush1.msra.mxu0 0.0
        %1261 = vmatprep.subr.mxu0 0.0
        %1262 = vmatpush1.msra.mxu0 0.0
        %1263 = vmatprep.subr.mxu0 0.0
        %1264 = vmatpush1.msra.mxu0 0.0
        %1265 = vmatprep.subr.mxu0 0.0
        %1266 = vmatpush1.msra.mxu0 0.0
        %1267 = vmatprep.subr.mxu0 0.0
        %1268 = vmatpush1.msra.mxu0 0.0
        %1269 = vmatprep.subr.mxu0 0.0
        %1270 = vmatpush1.msra.mxu0 0.0
        %1271 = vmatprep.subr.mxu0 0.0
        %1272 = vmatpush1.msra.mxu0 0.0
        %1273 = vmatprep.subr.mxu0 0.0
        %1274 = vmatpush1.msra.mxu0 0.0
        %1275 = vmatprep.subr.mxu0 0.0
        %1276 = vmatpush1.msra.mxu0 0.0
        %1277 = vmatprep.subr.mxu0 0.0
        %1278 = vmatpush1.msra.mxu0 0.0
        %1279 = vmatprep.subr.mxu0 0.0
        %1280 = vmatpush1.msra.mxu0 0.0
        %1281 = vmatprep.subr.mxu0 0.0
        %1282 = vmatpush1.msra.mxu0 0.0
        %1283 = vmatprep.subr.mxu0 0.0
        %1284 = vmatpush1.msra.mxu0 0.0
        %1285 = vmatprep.subr.mxu0 0.0
        %1286 = vmatpush1.msra.mxu0 0.0
        %1287 = vmatprep.subr.mxu0 0.0
        %1288 = vmatpush1.msra.mxu0 0.0
        %1289 = vmatprep.subr.mxu0 0.0
        %1290 = vmatpush1.msra.mxu0 0.0
        %1291 = vmatprep.subr.mxu0 0.0
        %1292 = vmatpush1.msra.mxu0 0.0
        %1293 = vmatprep.subr.mxu0 0.0
        %1294 = vmatpush1.msra.mxu0 0.0
        %1295 = vmatprep.subr.mxu0 0.0
        %1296 = vmatpush1.msra.mxu0 0.0
        %1297 = vmatprep.subr.mxu0 0.0
        %1298 = vmatpush1.msra.mxu0 0.0
        %1299 = vmatprep.subr.mxu0 0.0
        %1300 = vmatpush1.msra.mxu0 0.0
        %1301 = vmatprep.subr.mxu0 0.0
        %1302 = vmatpush1.msra.mxu0 0.0
        %1303 = vmatprep.mubr.f32.mxu0 0.0
        %1304 = vmatmul.mubr.f32.gmra.mrb[0].mxu0 %v1234
        %v1305 = vpop.f32.mrb[0].mxu0
        %v1306 = vadd.f32 0.0, %v1305
        %v1307 = vpop.f32.mrb[0].mxu0
        %1308 = vdwg.mxu0
        %v1309 = vld [vmem:[%s8] sm:$0xff]
        %v1310 = vld [vmem:[%s8 + $0x8] sm:$0xff]
        %v1311 = vld [vmem:[%s8 + $0x10] sm:$0xff]
        %v1312 = vld [vmem:[%s8 + $0x18] sm:$0xff]
        %v1313 = vld [vmem:[%s8 + $0x20] sm:$0xff]
        %v1314 = vld [vmem:[%s8 + $0x28] sm:$0xff]
        %v1315 = vld [vmem:[%s8 + $0x30] sm:$0xff]
        %v1316 = vld [vmem:[%s8 + $0x38] sm:$0xff]
        %v1317 = vld [vmem:[%s6] sm:$0xff]
        %1319 = vset.pattern.permute.xlu0 0
        %1320 = vperm.xlu0 %1319, %v1317
        %v1321 = vpop.permute.xlu0 %1320
        %vm1323 = vcmask 523264
        %v1325 = vsel %vm1323, %v1306, 0
        %1327 = vmatprep.subr.mxu0 0.0
        %1328 = vmatpush1.msra.mxu0 %v1309
        %1329 = vmatprep.subr.mxu0 0.0
        %1330 = vmatpush1.msra.mxu0 %v1310
        %1331 = vmatprep.subr.mxu0 0.0
        %1332 = vmatpush1.msra.mxu0 %v1311
        %1333 = vmatprep.subr.mxu0 0.0
        %1334 = vmatpush1.msra.mxu0 %v1312
        %1335 = vmatprep.subr.mxu0 0.0
        %1336 = vmatpush1.msra.mxu0 %v1313
        %1337 = vmatprep.subr.mxu0 0.0
        %1338 = vmatpush1.msra.mxu0 %v1314
        %1339 = vmatprep.subr.mxu0 0.0
        %1340 = vmatpush1.msra.mxu0 %v1315
        %1341 = vmatprep.subr.mxu0 0.0
        %1342 = vmatpush1.msra.mxu0 %v1316
        %1343 = vmatprep.subr.mxu0 0.0
        %1344 = vmatpush1.msra.mxu0 0.0
        %1345 = vmatprep.subr.mxu0 0.0
        %1346 = vmatpush1.msra.mxu0 0.0
        %1347 = vmatprep.subr.mxu0 0.0
        %1348 = vmatpush1.msra.mxu0 0.0
        %1349 = vmatprep.subr.mxu0 0.0
        %1350 = vmatpush1.msra.mxu0 0.0
        %1351 = vmatprep.subr.mxu0 0.0
        %1352 = vmatpush1.msra.mxu0 0.0
        %1353 = vmatprep.subr.mxu0 0.0
        %1354 = vmatpush1.msra.mxu0 0.0
        %1355 = vmatprep.subr.mxu0 0.0
        %1356 = vmatpush1.msra.mxu0 0.0
        %1357 = vmatprep.subr.mxu0 0.0
        %1358 = vmatpush1.msra.mxu0 0.0
        %1359 = vmatprep.subr.mxu0 0.0
        %1360 = vmatpush1.msra.mxu0 0.0
        %1361 = vmatprep.subr.mxu0 0.0
        %1362 = vmatpush1.msra.mxu0 0.0
        %1363 = vmatprep.subr.mxu0 0.0
        %1364 = vmatpush1.msra.mxu0 0.0
        %1365 = vmatprep.subr.mxu0 0.0
        %1366 = vmatpush1.msra.mxu0 0.0
        %1367 = vmatprep.subr.mxu0 0.0
        %1368 = vmatpush1.msra.mxu0 0.0
        %1369 = vmatprep.subr.mxu0 0.0
        %1370 = vmatpush1.msra.mxu0 0.0
        %1371 = vmatprep.subr.mxu0 0.0
        %1372 = vmatpush1.msra.mxu0 0.0
        %1373 = vmatprep.subr.mxu0 0.0
        %1374 = vmatpush1.msra.mxu0 0.0
        %1375 = vmatprep.subr.mxu0 0.0
        %1376 = vmatpush1.msra.mxu0 0.0
        %1377 = vmatprep.subr.mxu0 0.0
        %1378 = vmatpush1.msra.mxu0 0.0
        %1379 = vmatprep.subr.mxu0 0.0
        %1380 = vmatpush1.msra.mxu0 0.0
        %1381 = vmatprep.subr.mxu0 0.0
        %1382 = vmatpush1.msra.mxu0 0.0
        %1383 = vmatprep.subr.mxu0 0.0
        %1384 = vmatpush1.msra.mxu0 0.0
        %1385 = vmatprep.subr.mxu0 0.0
        %1386 = vmatpush1.msra.mxu0 0.0
        %1387 = vmatprep.subr.mxu0 0.0
        %1388 = vmatpush1.msra.mxu0 0.0
        %1389 = vmatprep.subr.mxu0 0.0
        %1390 = vmatpush1.msra.mxu0 0.0
        %1391 = vmatprep.mubr.f32.mxu0 0.0
        %1392 = vmatmul.mubr.f32.gmra.mrb[0].mxu0 %v1325
        %v1393 = vpop.f32.mrb[0].mxu0
        %v1394 = vadd.f32 %v1321, %v1393
        %v1395 = vpop.f32.mrb[0].mxu0
        %1396 = vdwg.mxu0
        %vm1397 = vcmp.ge.f32.partialorder %v1394, 0.0
        %v1398 = vmul.f32 %v1394, 0.01
        %v1399 = vsel %vm1397, %v1394, %v1398
        %v1401 = vrot.slane %v1399, 1
        %1402 = vrot.lane.b32.xlu0 %v1401, 16
        %v1403 = vpop.permute.xlu0 %1402
        %v1405 = vrot.slane %v1399, 2
        %1406 = vrot.lane.b32.xlu0 %v1405, 32
        %v1407 = vpop.permute.xlu0 %1406
        %v1409 = vrot.slane %v1399, 3
        %1410 = vrot.lane.b32.xlu0 %v1409, 48
        %v1411 = vpop.permute.xlu0 %1410
        %v1413 = vrot.slane %v1399, 4
        %1414 = vrot.lane.b32.xlu0 %v1413, 64
        %v1415 = vpop.permute.xlu0 %1414
        %v1417 = vrot.slane %v1399, 5
        %1418 = vrot.lane.b32.xlu0 %v1417, 80
        %v1419 = vpop.permute.xlu0 %1418
        %v1421 = vrot.slane %v1399, 6
        %1422 = vrot.lane.b32.xlu0 %v1421, 96
        %v1423 = vpop.permute.xlu0 %1422
        %v1425 = vrot.slane %v1399, 7
        %1426 = vrot.lane.b32.xlu0 %v1425, 112
        %v1427 = vpop.permute.xlu0 %1426
        %v1429 = vsel %vm722, %v1399, %v1403
        %vm1430 = vcmask 261120
        %v1431 = vsel %vm1430, %v1429, %v1407
        %vm1432 = vcmask 392192
        %v1433 = vsel %vm1432, %v1431, %v1411
        %v1434 = vsel %vm1323, %v1433, %v1415
        %vm1435 = vcmask 654336
        %v1436 = vsel %vm1435, %v1434, %v1419
        %vm1437 = vcmask 785408
        %v1438 = vsel %vm1437, %v1436, %v1423
        %v1439 = vsel %vm820, %v1438, %v1427
        %v1440 = vld [vmem:[%s9] sm:$0xff]
        %v1441 = vld [vmem:[%s9 + $0x8] sm:$0xff]
        %v1442 = vld [vmem:[%s9 + $0x10] sm:$0xff]
        %v1443 = vld [vmem:[%s9 + $0x18] sm:$0xff]
        %v1444 = vld [vmem:[%s9 + $0x20] sm:$0xff]
        %v1445 = vld [vmem:[%s9 + $0x28] sm:$0xff]
        %v1446 = vld [vmem:[%s9 + $0x30] sm:$0xff]
        %v1447 = vld [vmem:[%s9 + $0x38] sm:$0xff]
        %v1448 = vld [vmem:[%s9 + $0x40] sm:$0xff]
        %v1449 = vld [vmem:[%s9 + $0x48] sm:$0xff]
        %v1450 = vld [vmem:[%s9 + $0x50] sm:$0xff]
        %v1451 = vld [vmem:[%s9 + $0x58] sm:$0xff]
        %v1452 = vld [vmem:[%s9 + $0x60] sm:$0xff]
        %v1453 = vld [vmem:[%s9 + $0x68] sm:$0xff]
        %v1454 = vld [vmem:[%s9 + $0x70] sm:$0xff]
        %v1455 = vld [vmem:[%s9 + $0x78] sm:$0xff]
        %v1456 = vld [vmem:[%s10] sm:$0x1]
        %1457 = vmatprep.subr.mxu0 0.0
        %1458 = vmatpush1.msra.mxu0 %v1440
        %1459 = vmatprep.subr.mxu0 0.0
        %1460 = vmatpush1.msra.mxu0 %v1441
        %1461 = vmatprep.subr.mxu0 0.0
        %1462 = vmatpush1.msra.mxu0 %v1442
        %1463 = vmatprep.subr.mxu0 0.0
        %1464 = vmatpush1.msra.mxu0 %v1443
        %1465 = vmatprep.subr.mxu0 0.0
        %1466 = vmatpush1.msra.mxu0 %v1444
        %1467 = vmatprep.subr.mxu0 0.0
        %1468 = vmatpush1.msra.mxu0 %v1445
        %1469 = vmatprep.subr.mxu0 0.0
        %1470 = vmatpush1.msra.mxu0 %v1446
        %1471 = vmatprep.subr.mxu0 0.0
        %1472 = vmatpush1.msra.mxu0 %v1447
        %1473 = vmatprep.subr.mxu0 0.0
        %1474 = vmatpush1.msra.mxu0 %v1448
        %1475 = vmatprep.subr.mxu0 0.0
        %1476 = vmatpush1.msra.mxu0 %v1449
        %1477 = vmatprep.subr.mxu0 0.0
        %1478 = vmatpush1.msra.mxu0 %v1450
        %1479 = vmatprep.subr.mxu0 0.0
        %1480 = vmatpush1.msra.mxu0 %v1451
        %1481 = vmatprep.subr.mxu0 0.0
        %1482 = vmatpush1.msra.mxu0 %v1452
        %1483 = vmatprep.subr.mxu0 0.0
        %1484 = vmatpush1.msra.mxu0 %v1453
        %1485 = vmatprep.subr.mxu0 0.0
        %1486 = vmatpush1.msra.mxu0 %v1454
        %1487 = vmatprep.subr.mxu0 0.0
        %1488 = vmatpush1.msra.mxu0 %v1455
        %1489 = vmatprep.subr.mxu0 0.0
        %1490 = vmatpush1.msra.mxu0 0.0
        %1491 = vmatprep.subr.mxu0 0.0
        %1492 = vmatpush1.msra.mxu0 0.0
        %1493 = vmatprep.subr.mxu0 0.0
        %1494 = vmatpush1.msra.mxu0 0.0
        %1495 = vmatprep.subr.mxu0 0.0
        %1496 = vmatpush1.msra.mxu0 0.0
        %1497 = vmatprep.subr.mxu0 0.0
        %1498 = vmatpush1.msra.mxu0 0.0
        %1499 = vmatprep.subr.mxu0 0.0
        %1500 = vmatpush1.msra.mxu0 0.0
        %1501 = vmatprep.subr.mxu0 0.0
        %1502 = vmatpush1.msra.mxu0 0.0
        %1503 = vmatprep.subr.mxu0 0.0
        %1504 = vmatpush1.msra.mxu0 0.0
        %1505 = vmatprep.subr.mxu0 0.0
        %1506 = vmatpush1.msra.mxu0 0.0
        %1507 = vmatprep.subr.mxu0 0.0
        %1508 = vmatpush1.msra.mxu0 0.0
        %1509 = vmatprep.subr.mxu0 0.0
        %1510 = vmatpush1.msra.mxu0 0.0
        %1511 = vmatprep.subr.mxu0 0.0
        %1512 = vmatpush1.msra.mxu0 0.0
        %1513 = vmatprep.subr.mxu0 0.0
        %1514 = vmatpush1.msra.mxu0 0.0
        %1515 = vmatprep.subr.mxu0 0.0
        %1516 = vmatpush1.msra.mxu0 0.0
        %1517 = vmatprep.subr.mxu0 0.0
        %1518 = vmatpush1.msra.mxu0 0.0
        %1519 = vmatprep.subr.mxu0 0.0
        %1520 = vmatpush1.msra.mxu0 0.0
        %1521 = vmatprep.mubr.f32.mxu0 0.0
        %1522 = vmatmul.mubr.f32.gmra.mrb[0].mxu0 %v1439
        %v1523 = vpop.f32.mrb[0].mxu0
        %v1524 = vadd.f32 %v1456, %v1523
        %v1525 = vpop.f32.mrb[0].mxu0
        %1526 = vdwg.mxu0
        %v1527 = vld [vmem:[%s11] sm:$0x3]
        %v1528 = vld [vmem:[%s12] sm:$0x1]
        %vm1529 = vcmask 15360
        %v1531 = vsel %vm1529, %v1524, 0
        %v1534 = vsel %vm894, %v1527, 0
        %1536 = vmatprep.subr.mxu0 0.0
        %1537 = vmatpush1.msra.mxu0 %v1534
        %1538 = vmatprep.subr.mxu0 0.0
        %1539 = vmatpush1.msra.mxu0 0.0
        %1540 = vmatprep.subr.mxu0 0.0
        %1541 = vmatpush1.msra.mxu0 0.0
        %1542 = vmatprep.subr.mxu0 0.0
        %1543 = vmatpush1.msra.mxu0 0.0
        %1544 = vmatprep.subr.mxu0 0.0
        %1545 = vmatpush1.msra.mxu0 0.0
        %1546 = vmatprep.subr.mxu0 0.0
        %1547 = vmatpush1.msra.mxu0 0.0
        %1548 = vmatprep.subr.mxu0 0.0
        %1549 = vmatpush1.msra.mxu0 0.0
        %1550 = vmatprep.subr.mxu0 0.0
        %1551 = vmatpush1.msra.mxu0 0.0
        %1552 = vmatprep.subr.mxu0 0.0
        %1553 = vmatpush1.msra.mxu0 0.0
        %1554 = vmatprep.subr.mxu0 0.0
        %1555 = vmatpush1.msra.mxu0 0.0
        %1556 = vmatprep.subr.mxu0 0.0
        %1557 = vmatpush1.msra.mxu0 0.0
        %1558 = vmatprep.subr.mxu0 0.0
        %1559 = vmatpush1.msra.mxu0 0.0
        %1560 = vmatprep.subr.mxu0 0.0
        %1561 = vmatpush1.msra.mxu0 0.0
        %1562 = vmatprep.subr.mxu0 0.0
        %1563 = vmatpush1.msra.mxu0 0.0
        %1564 = vmatprep.subr.mxu0 0.0
        %1565 = vmatpush1.msra.mxu0 0.0
        %1566 = vmatprep.subr.mxu0 0.0
        %1567 = vmatpush1.msra.mxu0 0.0
        %1568 = vmatprep.subr.mxu0 0.0
        %1569 = vmatpush1.msra.mxu0 0.0
        %1570 = vmatprep.subr.mxu0 0.0
        %1571 = vmatpush1.msra.mxu0 0.0
        %1572 = vmatprep.subr.mxu0 0.0
        %1573 = vmatpush1.msra.mxu0 0.0
        %1574 = vmatprep.subr.mxu0 0.0
        %1575 = vmatpush1.msra.mxu0 0.0
        %1576 = vmatprep.subr.mxu0 0.0
        %1577 = vmatpush1.msra.mxu0 0.0
        %1578 = vmatprep.subr.mxu0 0.0
        %1579 = vmatpush1.msra.mxu0 0.0
        %1580 = vmatprep.subr.mxu0 0.0
        %1581 = vmatpush1.msra.mxu0 0.0
        %1582 = vmatprep.subr.mxu0 0.0
        %1583 = vmatpush1.msra.mxu0 0.0
        %1584 = vmatprep.subr.mxu0 0.0
        %1585 = vmatpush1.msra.mxu0 0.0
        %1586 = vmatprep.subr.mxu0 0.0
        %1587 = vmatpush1.msra.mxu0 0.0
        %1588 = vmatprep.subr.mxu0 0.0
        %1589 = vmatpush1.msra.mxu0 0.0
        %1590 = vmatprep.subr.mxu0 0.0
        %1591 = vmatpush1.msra.mxu0 0.0
        %1592 = vmatprep.subr.mxu0 0.0
        %1593 = vmatpush1.msra.mxu0 0.0
        %1594 = vmatprep.subr.mxu0 0.0
        %1595 = vmatpush1.msra.mxu0 0.0
        %1596 = vmatprep.subr.mxu0 0.0
        %1597 = vmatpush1.msra.mxu0 0.0
        %1598 = vmatprep.subr.mxu0 0.0
        %1599 = vmatpush1.msra.mxu0 0.0
        %1600 = vmatprep.mubr.f32.mxu0 0.0
        %1601 = vmatmul.mubr.f32.gmra.mrb[0].mxu0 %v1531
        %v1602 = vpop.f32.mrb[0].mxu0
        %v1603 = vadd.f32 %v1528, %v1602
        %v1604 = vpop.f32.mrb[0].mxu0
        %1605 = vdwg.mxu0
        %v1607 = vrot.slane %v1603, 7
        %1608 = vrot.lane.b32.xlu0 %v1607, 112
        %v1609 = vpop.permute.xlu0 %1608
        %v1611 = vrot.slane %v1603, 6
        %1612 = vrot.lane.b32.xlu0 %v1611, 96
        %v1613 = vpop.permute.xlu0 %1612
        %v1615 = vrot.slane %v1603, 5
        %1616 = vrot.lane.b32.xlu0 %v1615, 80
        %v1617 = vpop.permute.xlu0 %1616
        %v1619 = vrot.slane %v1603, 4
        %1620 = vrot.lane.b32.xlu0 %v1619, 64
        %v1621 = vpop.permute.xlu0 %1620
        %v1623 = vrot.slane %v1603, 3
        %1624 = vrot.lane.b32.xlu0 %v1623, 48
        %v1625 = vpop.permute.xlu0 %1624
        %v1627 = vrot.slane %v1603, 2
        %1628 = vrot.lane.b32.xlu0 %v1627, 32
        %v1629 = vpop.permute.xlu0 %1628
        %v1631 = vrot.slane %v1603, 1
        %1632 = vrot.lane.b32.xlu0 %v1631, 16
        %v1633 = vpop.permute.xlu0 %1632
        %v1635 = vsel %vm891, %v1603, %v1609
        %v1636 = vsel %vm894, %v1635, %v1613
        %v1637 = vsel %vm897, %v1636, %v1617
        %v1638 = vsel %vm900, %v1637, %v1621
        %v1639 = vsel %vm903, %v1638, %v1625
        %v1640 = vsel %vm906, %v1639, %v1629
        %v1641 = vsel %vm909, %v1640, %v1633
        %v1642 = vld [vmem:[%s13] sm:$0xff]
        %v1643 = vld [vmem:[%s13 + $0x8] sm:$0xff]
        %v1645 = vsel %vm722, %v1641, 0
        %1647 = vmatprep.subr.mxu0 0.0
        %1648 = vmatpush1.msra.mxu0 %v1642
        %1649 = vmatprep.subr.mxu0 0.0
        %1650 = vmatpush1.msra.mxu0 %v1643
        %1651 = vmatprep.subr.mxu0 0.0
        %1652 = vmatpush1.msra.mxu0 0.0
        %1653 = vmatprep.subr.mxu0 0.0
        %1654 = vmatpush1.msra.mxu0 0.0
        %1655 = vmatprep.subr.mxu0 0.0
        %1656 = vmatpush1.msra.mxu0 0.0
        %1657 = vmatprep.subr.mxu0 0.0
        %1658 = vmatpush1.msra.mxu0 0.0
        %1659 = vmatprep.subr.mxu0 0.0
        %1660 = vmatpush1.msra.mxu0 0.0
        %1661 = vmatprep.subr.mxu0 0.0
        %1662 = vmatpush1.msra.mxu0 0.0
        %1663 = vmatprep.subr.mxu0 0.0
        %1664 = vmatpush1.msra.mxu0 0.0
        %1665 = vmatprep.subr.mxu0 0.0
        %1666 = vmatpush1.msra.mxu0 0.0
        %1667 = vmatprep.subr.mxu0 0.0
        %1668 = vmatpush1.msra.mxu0 0.0
        %1669 = vmatprep.subr.mxu0 0.0
        %1670 = vmatpush1.msra.mxu0 0.0
        %1671 = vmatprep.subr.mxu0 0.0
        %1672 = vmatpush1.msra.mxu0 0.0
        %1673 = vmatprep.subr.mxu0 0.0
        %1674 = vmatpush1.msra.mxu0 0.0
        %1675 = vmatprep.subr.mxu0 0.0
        %1676 = vmatpush1.msra.mxu0 0.0
        %1677 = vmatprep.subr.mxu0 0.0
        %1678 = vmatpush1.msra.mxu0 0.0
        %1679 = vmatprep.subr.mxu0 0.0
        %1680 = vmatpush1.msra.mxu0 0.0
        %1681 = vmatprep.subr.mxu0 0.0
        %1682 = vmatpush1.msra.mxu0 0.0
        %1683 = vmatprep.subr.mxu0 0.0
        %1684 = vmatpush1.msra.mxu0 0.0
        %1685 = vmatprep.subr.mxu0 0.0
        %1686 = vmatpush1.msra.mxu0 0.0
        %1687 = vmatprep.subr.mxu0 0.0
        %1688 = vmatpush1.msra.mxu0 0.0
        %1689 = vmatprep.subr.mxu0 0.0
        %1690 = vmatpush1.msra.mxu0 0.0
        %1691 = vmatprep.subr.mxu0 0.0
        %1692 = vmatpush1.msra.mxu0 0.0
        %1693 = vmatprep.subr.mxu0 0.0
        %1694 = vmatpush1.msra.mxu0 0.0
        %1695 = vmatprep.subr.mxu0 0.0
        %1696 = vmatpush1.msra.mxu0 0.0
        %1697 = vmatprep.subr.mxu0 0.0
        %1698 = vmatpush1.msra.mxu0 0.0
        %1699 = vmatprep.subr.mxu0 0.0
        %1700 = vmatpush1.msra.mxu0 0.0
        %1701 = vmatprep.subr.mxu0 0.0
        %1702 = vmatpush1.msra.mxu0 0.0
        %1703 = vmatprep.subr.mxu0 0.0
        %1704 = vmatpush1.msra.mxu0 0.0
        %1705 = vmatprep.subr.mxu0 0.0
        %1706 = vmatpush1.msra.mxu0 0.0
        %1707 = vmatprep.subr.mxu0 0.0
        %1708 = vmatpush1.msra.mxu0 0.0
        %1709 = vmatprep.subr.mxu0 0.0
        %1710 = vmatpush1.msra.mxu0 0.0
        %1711 = vmatprep.mubr.f32.mxu0 0.0
        %1712 = vmatmul.mubr.f32.gmra.mrb[0].mxu0 %v1645
        %v1713 = vpop.f32.mrb[0].mxu0
        %v1714 = vadd.f32 0.0, %v1713
        %v1715 = vpop.f32.mrb[0].mxu0
        %1716 = vdwg.mxu0
        %v1717 = vld [vmem:[%s16] sm:$0xff]
        %v1718 = vld [vmem:[%s16 + $0x8] sm:$0x1]
        %1720 = vrot.lane.b32.xlu0 %v1714, 73
        %v1721 = vpop.permute.xlu0 %1720
        %1723 = vrot.lane.b32.xlu0 %v1714, 9
        %v1724 = vpop.permute.xlu0 %1723
        %v1726 = vsel %vm913, %v1721, %v1724
        %v1727 = vlaneseq
        %v1728 = vshrl.u32 %v1727, 7
        %v1729 = vsub.s32 0, %v1728
        %v1730 = vrot.slane %v1717, %v1729
        %v1731 = vmul.f32 %v1726, %v1730
        %1732 = vrot.lane.b32.xlu0 %v1714, 72
        %v1733 = vpop.permute.xlu0 %1732
        %1735 = vrot.lane.b32.xlu0 %v1714, 8
        %v1736 = vpop.permute.xlu0 %1735
        %v1738 = vsel %vm1126, %v1733, %v1736
        %v1739 = vlaneseq
        %v1740 = vshrl.u32 %v1739, 7
        %v1741 = vsub.s32 1, %v1740
        %v1742 = vrot.slane %v1717, %v1741
        %v1743 = vmul.f32 %v1738, %v1742
        %1744 = vrot.lane.b32.xlu0 %v1714, 71
        %v1745 = vpop.permute.xlu0 %1744
        %1747 = vrot.lane.b32.xlu0 %v1714, 7
        %v1748 = vpop.permute.xlu0 %1747
        %v1750 = vsel %vm1139, %v1745, %v1748
        %v1751 = vlaneseq
        %v1752 = vshrl.u32 %v1751, 7
        %v1753 = vsub.s32 2, %v1752
        %v1754 = vrot.slane %v1717, %v1753
        %v1755 = vmul.f32 %v1750, %v1754
        %1756 = vrot.lane.b32.xlu0 %v1714, 65
        %v1757 = vpop.permute.xlu0 %1756
        %1759 = vrot.lane.b32.xlu0 %v1714, 1
        %v1760 = vpop.permute.xlu0 %1759
        %v1762 = vsel %vm756, %v1757, %v1760
        %v1763 = vlaneseq
        %v1764 = vshrl.u32 %v1763, 7
        %v1765 = vsub.s32 3, %v1764
        %v1766 = vrot.slane %v1717, %v1765
        %v1767 = vmul.f32 %v1762, %v1766
        %v1768 = vlaneseq
        %v1769 = vshrl.u32 %v1768, 7
        %v1770 = vsub.s32 4, %v1769
        %v1771 = vrot.slane %v1717, %v1770
        %v1772 = vmul.f32 %v1714, %v1771
        %1773 = vrot.lane.b32.xlu0 %v1714, 127
        %v1774 = vpop.permute.xlu0 %1773
        %1776 = vrot.lane.b32.xlu0 %v1714, 63
        %v1777 = vpop.permute.xlu0 %1776
        %v1779 = vsel %vm1169, %v1774, %v1777
        %v1780 = vlaneseq
        %v1781 = vshrl.u32 %v1780, 7
        %v1782 = vsub.s32 5, %v1781
        %v1783 = vrot.slane %v1717, %v1782
        %v1784 = vmul.f32 %v1779, %v1783
        %1785 = vrot.lane.b32.xlu0 %v1714, 121
        %v1786 = vpop.permute.xlu0 %1785
        %1788 = vrot.lane.b32.xlu0 %v1714, 57
        %v1789 = vpop.permute.xlu0 %1788
        %v1791 = vsel %vm1182, %v1786, %v1789
        %v1792 = vlaneseq
        %v1793 = vshrl.u32 %v1792, 7
        %v1794 = vsub.s32 6, %v1793
        %v1795 = vrot.slane %v1717, %v1794
        %v1796 = vmul.f32 %v1791, %v1795
        %1797 = vrot.lane.b32.xlu0 %v1714, 120
        %v1798 = vpop.permute.xlu0 %1797
        %1800 = vrot.lane.b32.xlu0 %v1714, 56
        %v1801 = vpop.permute.xlu0 %1800
        %v1803 = vsel %vm1195, %v1798, %v1801
        %v1804 = vlaneseq
        %v1805 = vshrl.u32 %v1804, 7
        %v1806 = vsub.s32 7, %v1805
        %v1807 = vrot.slane %v1717, %v1806
        %v1808 = vmul.f32 %v1803, %v1807
        %1809 = vrot.lane.b32.xlu0 %v1714, 119
        %v1810 = vpop.permute.xlu0 %1809
        %1812 = vrot.lane.b32.xlu0 %v1714, 55
        %v1813 = vpop.permute.xlu0 %1812
        %v1815 = vsel %vm1208, %v1810, %v1813
        %v1816 = vlaneseq
        %v1817 = vshrl.u32 %v1816, 7
        %v1818 = vsub.s32 0, %v1817
        %v1819 = vrot.slane %v1718, %v1818
        %v1820 = vmul.f32 %v1815, %v1819
        %v1821 = vld [vmem:[%s14] sm:$0xf]
        %v1822 = vld [vmem:[%s15] sm:$0xf]
        %1824 = vset.pattern.permute.xlu0 0
        %1825 = vperm.xlu0 %1824, %v1822
        %v1826 = vpop.permute.xlu0 %1825
        %vm1828 = vcmask 588800
        %v1830 = vsel %vm1828, %v1821, 0
        %1832 = vmatprep.subr.mxu0 0.0
        %1833 = vmatpush1.msra.mxu0 %v1731
        %1834 = vmatprep.subr.mxu0 0.0
        %1835 = vmatpush1.msra.mxu0 %v1743
        %1836 = vmatprep.subr.mxu0 0.0
        %1837 = vmatpush1.msra.mxu0 %v1755
        %1838 = vmatprep.subr.mxu0 0.0
        %1839 = vmatpush1.msra.mxu0 %v1767
        %1840 = vmatprep.subr.mxu0 0.0
        %1841 = vmatpush1.msra.mxu0 %v1772
        %1842 = vmatprep.subr.mxu0 0.0
        %1843 = vmatpush1.msra.mxu0 %v1784
        %1844 = vmatprep.subr.mxu0 0.0
        %1845 = vmatpush1.msra.mxu0 %v1796
        %1846 = vmatprep.subr.mxu0 0.0
        %1847 = vmatpush1.msra.mxu0 %v1808
        %1848 = vmatprep.subr.mxu0 0.0
        %1849 = vmatpush1.msra.mxu0 %v1820
        %1850 = vmatprep.subr.mxu0 0.0
        %1851 = vmatpush1.msra.mxu0 0.0
        %1852 = vmatprep.subr.mxu0 0.0
        %1853 = vmatpush1.msra.mxu0 0.0
        %1854 = vmatprep.subr.mxu0 0.0
        %1855 = vmatpush1.msra.mxu0 0.0
        %1856 = vmatprep.subr.mxu0 0.0
        %1857 = vmatpush1.msra.mxu0 0.0
        %1858 = vmatprep.subr.mxu0 0.0
        %1859 = vmatpush1.msra.mxu0 0.0
        %1860 = vmatprep.subr.mxu0 0.0
        %1861 = vmatpush1.msra.mxu0 0.0
        %1862 = vmatprep.subr.mxu0 0.0
        %1863 = vmatpush1.msra.mxu0 0.0
        %1864 = vmatprep.subr.mxu0 0.0
        %1865 = vmatpush1.msra.mxu0 0.0
        %1866 = vmatprep.subr.mxu0 0.0
        %1867 = vmatpush1.msra.mxu0 0.0
        %1868 = vmatprep.subr.mxu0 0.0
        %1869 = vmatpush1.msra.mxu0 0.0
        %1870 = vmatprep.subr.mxu0 0.0
        %1871 = vmatpush1.msra.mxu0 0.0
        %1872 = vmatprep.subr.mxu0 0.0
        %1873 = vmatpush1.msra.mxu0 0.0
        %1874 = vmatprep.subr.mxu0 0.0
        %1875 = vmatpush1.msra.mxu0 0.0
        %1876 = vmatprep.subr.mxu0 0.0
        %1877 = vmatpush1.msra.mxu0 0.0
        %1878 = vmatprep.subr.mxu0 0.0
        %1879 = vmatpush1.msra.mxu0 0.0
        %1880 = vmatprep.subr.mxu0 0.0
        %1881 = vmatpush1.msra.mxu0 0.0
        %1882 = vmatprep.subr.mxu0 0.0
        %1883 = vmatpush1.msra.mxu0 0.0
        %1884 = vmatprep.subr.mxu0 0.0
        %1885 = vmatpush1.msra.mxu0 0.0
        %1886 = vmatprep.subr.mxu0 0.0
        %1887 = vmatpush1.msra.mxu0 0.0
        %1888 = vmatprep.subr.mxu0 0.0
        %1889 = vmatpush1.msra.mxu0 0.0
        %1890 = vmatprep.subr.mxu0 0.0
        %1891 = vmatpush1.msra.mxu0 0.0
        %1892 = vmatprep.subr.mxu0 0.0
        %1893 = vmatpush1.msra.mxu0 0.0
        %1894 = vmatprep.subr.mxu0 0.0
        %1895 = vmatpush1.msra.mxu0 0.0
        %1896 = vmatprep.mubr.f32.mxu0 0.0
        %1897 = vmatmul.mubr.f32.gmra.mrb[0].mxu0 %v1830
        %v1898 = vpop.f32.mrb[0].mxu0
        %v1899 = vadd.f32 %v1826, %v1898
        %v1900 = vpop.f32.mrb[0].mxu0
        %1901 = vdwg.mxu0
        %vm1902 = vcmp.ge.f32.partialorder %v1899, 0.0
        %v1903 = vmul.f32 %v1899, 0.01
        %v1904 = vsel %vm1902, %v1899, %v1903
        %v1905 = vld [vmem:[%s17] sm:$0xff]
        %v1906 = vld [vmem:[%s17 + $0x8] sm:$0xff]
        %v1907 = vld [vmem:[%s17 + $0x10] sm:$0xff]
        %v1908 = vld [vmem:[%s17 + $0x18] sm:$0xff]
        %v1909 = vld [vmem:[%s17 + $0x20] sm:$0xff]
        %v1910 = vld [vmem:[%s17 + $0x28] sm:$0xff]
        %v1911 = vld [vmem:[%s17 + $0x30] sm:$0xff]
        %v1912 = vld [vmem:[%s17 + $0x38] sm:$0xff]
        %v1913 = vld [vmem:[%s17 + $0x40] sm:$0xff]
        %v1914 = vld [vmem:[%s17 + $0x48] sm:$0xff]
        %v1915 = vld [vmem:[%s17 + $0x50] sm:$0xff]
        %v1916 = vld [vmem:[%s17 + $0x58] sm:$0xff]
        %v1917 = vld [vmem:[%s17 + $0x60] sm:$0xff]
        %v1918 = vld [vmem:[%s17 + $0x68] sm:$0xff]
        %v1919 = vld [vmem:[%s17 + $0x70] sm:$0xff]
        %v1920 = vld [vmem:[%s17 + $0x78] sm:$0xff]
        %v1922 = vsel %vm1323, %v1904, 0
        %1924 = vmatprep.subr.mxu0 %v1906
        %1925 = vmatpush1.msra.mxu0 %v1905
        %1926 = vmatprep.subr.mxu0 %v1908
        %1927 = vmatpush1.msra.mxu0 %v1907
        %1928 = vmatprep.subr.mxu0 %v1910
        %1929 = vmatpush1.msra.mxu0 %v1909
        %1930 = vmatprep.subr.mxu0 %v1912
        %1931 = vmatpush1.msra.mxu0 %v1911
        %1932 = vmatprep.subr.mxu0 %v1914
        %1933 = vmatpush1.msra.mxu0 %v1913
        %1934 = vmatprep.subr.mxu0 %v1916
        %1935 = vmatpush1.msra.mxu0 %v1915
        %1936 = vmatprep.subr.mxu0 %v1918
        %1937 = vmatpush1.msra.mxu0 %v1917
        %1938 = vmatprep.subr.mxu0 %v1920
        %1939 = vmatpush1.msra.mxu0 %v1919
        %1940 = vmatprep.subr.mxu0 0.0
        %1941 = vmatpush1.msra.mxu0 0.0
        %1942 = vmatprep.subr.mxu0 0.0
        %1943 = vmatpush1.msra.mxu0 0.0
        %1944 = vmatprep.subr.mxu0 0.0
        %1945 = vmatpush1.msra.mxu0 0.0
        %1946 = vmatprep.subr.mxu0 0.0
        %1947 = vmatpush1.msra.mxu0 0.0
        %1948 = vmatprep.subr.mxu0 0.0
        %1949 = vmatpush1.msra.mxu0 0.0
        %1950 = vmatprep.subr.mxu0 0.0
        %1951 = vmatpush1.msra.mxu0 0.0
        %1952 = vmatprep.subr.mxu0 0.0
        %1953 = vmatpush1.msra.mxu0 0.0
        %1954 = vmatprep.subr.mxu0 0.0
        %1955 = vmatpush1.msra.mxu0 0.0
        %1956 = vmatprep.subr.mxu0 0.0
        %1957 = vmatpush1.msra.mxu0 0.0
        %1958 = vmatprep.subr.mxu0 0.0
        %1959 = vmatpush1.msra.mxu0 0.0
        %1960 = vmatprep.subr.mxu0 0.0
        %1961 = vmatpush1.msra.mxu0 0.0
        %1962 = vmatprep.subr.mxu0 0.0
        %1963 = vmatpush1.msra.mxu0 0.0
        %1964 = vmatprep.subr.mxu0 0.0
        %1965 = vmatpush1.msra.mxu0 0.0
        %1966 = vmatprep.subr.mxu0 0.0
        %1967 = vmatpush1.msra.mxu0 0.0
        %1968 = vmatprep.subr.mxu0 0.0
        %1969 = vmatpush1.msra.mxu0 0.0
        %1970 = vmatprep.subr.mxu0 0.0
        %1971 = vmatpush1.msra.mxu0 0.0
        %1972 = vmatprep.subr.mxu0 0.0
        %1973 = vmatpush1.msra.mxu0 0.0
        %1974 = vmatprep.subr.mxu0 0.0
        %1975 = vmatpush1.msra.mxu0 0.0
        %1976 = vmatprep.subr.mxu0 0.0
        %1977 = vmatpush1.msra.mxu0 0.0
        %1978 = vmatprep.subr.mxu0 0.0
        %1979 = vmatpush1.msra.mxu0 0.0
        %1980 = vmatprep.subr.mxu0 0.0
        %1981 = vmatpush1.msra.mxu0 0.0
        %1982 = vmatprep.subr.mxu0 0.0
        %1983 = vmatpush1.msra.mxu0 0.0
        %1984 = vmatprep.subr.mxu0 0.0
        %1985 = vmatpush1.msra.mxu0 0.0
        %1986 = vmatprep.subr.mxu0 0.0
        %1987 = vmatpush1.msra.mxu0 0.0
        %1988 = vmatprep.mubr.f32.mxu0 0.0
        %1989 = vmatmul.mubr.f32.gmra.mrb[0].mxu0 %v1922
        %v1990 = vpop.f32.mrb[0].mxu0
        %v1991 = vadd.f32 0.0, %v1990
        %v1992 = vpop.f32.mrb[0].mxu0
        %v1993 = vadd.f32 0.0, %v1992
        %1994 = vdwg.mxu0
        %v1995 = vld [vmem:[%s20] sm:$0xff]
        %v1996 = vld [vmem:[%s20 + $0x8] sm:$0xff]
        %v1997 = vld [vmem:[%s20 + $0x10] sm:$0x1]
        %v1998 = vld [vmem:[%s20 + $0x18] sm:$0x1]
        %2000 = vrot.lane.b32.xlu0 %v1993, 17
        %v2001 = vpop.permute.xlu0 %2000
        %2004 = vrot.lane.b32.xlu0 %v1991, 17
        %v2005 = vpop.permute.xlu0 %2004
        %v2006 = vsel %vm710, %v2005, %v2001
        %v2009 = vsel %vm710, %v2001, %v2005
        %v2010 = vlaneseq
        %v2011 = vshrl.u32 %v2010, 7
        %v2012 = vsub.s32 0, %v2011
        %v2013 = vrot.slane %v1995, %v2012
        %v2014 = vlaneseq
        %v2015 = vshrl.u32 %v2014, 7
        %v2016 = vsub.s32 0, %v2015
        %v2017 = vrot.slane %v1996, %v2016
        %v2018 = vmul.f32 %v2009, %v2013
        %v2019 = vmul.f32 %v2006, %v2017
        %2020 = vrot.lane.b32.xlu0 %v1993, 16
        %v2021 = vpop.permute.xlu0 %2020
        %2023 = vrot.lane.b32.xlu0 %v1991, 16
        %v2024 = vpop.permute.xlu0 %2023
        %v2025 = vsel %vm722, %v2024, %v2021
        %v2028 = vsel %vm722, %v2021, %v2024
        %v2029 = vlaneseq
        %v2030 = vshrl.u32 %v2029, 7
        %v2031 = vsub.s32 1, %v2030
        %v2032 = vrot.slane %v1995, %v2031
        %v2033 = vlaneseq
        %v2034 = vshrl.u32 %v2033, 7
        %v2035 = vsub.s32 1, %v2034
        %v2036 = vrot.slane %v1996, %v2035
        %v2037 = vmul.f32 %v2028, %v2032
        %v2038 = vmul.f32 %v2025, %v2036
        %2039 = vrot.lane.b32.xlu0 %v1993, 15
        %v2040 = vpop.permute.xlu0 %2039
        %2042 = vrot.lane.b32.xlu0 %v1991, 15
        %v2043 = vpop.permute.xlu0 %2042
        %v2044 = vsel %vm740, %v2043, %v2040
        %v2047 = vsel %vm740, %v2040, %v2043
        %v2048 = vlaneseq
        %v2049 = vshrl.u32 %v2048, 7
        %v2050 = vsub.s32 2, %v2049
        %v2051 = vrot.slane %v1995, %v2050
        %v2052 = vlaneseq
        %v2053 = vshrl.u32 %v2052, 7
        %v2054 = vsub.s32 2, %v2053
        %v2055 = vrot.slane %v1996, %v2054
        %v2056 = vmul.f32 %v2047, %v2051
        %v2057 = vmul.f32 %v2044, %v2055
        %2058 = vrot.lane.b32.xlu0 %v1993, 1
        %v2059 = vpop.permute.xlu0 %2058
        %2061 = vrot.lane.b32.xlu0 %v1991, 1
        %v2062 = vpop.permute.xlu0 %2061
        %v2063 = vsel %vm756, %v2062, %v2059
        %v2066 = vsel %vm756, %v2059, %v2062
        %v2067 = vlaneseq
        %v2068 = vshrl.u32 %v2067, 7
        %v2069 = vsub.s32 3, %v2068
        %v2070 = vrot.slane %v1995, %v2069
        %v2071 = vlaneseq
        %v2072 = vshrl.u32 %v2071, 7
        %v2073 = vsub.s32 3, %v2072
        %v2074 = vrot.slane %v1996, %v2073
        %v2075 = vmul.f32 %v2066, %v2070
        %v2076 = vmul.f32 %v2063, %v2074
        %v2077 = vlaneseq
        %v2078 = vshrl.u32 %v2077, 7
        %v2079 = vsub.s32 4, %v2078
        %v2080 = vrot.slane %v1995, %v2079
        %v2081 = vlaneseq
        %v2082 = vshrl.u32 %v2081, 7
        %v2083 = vsub.s32 4, %v2082
        %v2084 = vrot.slane %v1996, %v2083
        %v2085 = vmul.f32 %v1991, %v2080
        %v2086 = vmul.f32 %v1993, %v2084
        %2087 = vrot.lane.b32.xlu0 %v1991, 127
        %v2088 = vpop.permute.xlu0 %2087
        %2089 = vrot.lane.b32.xlu0 %v1993, 127
        %v2090 = vpop.permute.xlu0 %2089
        %v2091 = vsel %vm788, %v2088, %v2090
        %v2095 = vsel %vm788, %v2090, %v2088
        %v2096 = vlaneseq
        %v2097 = vshrl.u32 %v2096, 7
        %v2098 = vsub.s32 5, %v2097
        %v2099 = vrot.slane %v1995, %v2098
        %v2100 = vlaneseq
        %v2101 = vshrl.u32 %v2100, 7
        %v2102 = vsub.s32 5, %v2101
        %v2103 = vrot.slane %v1996, %v2102
        %v2104 = vmul.f32 %v2091, %v2099
        %v2105 = vmul.f32 %v2095, %v2103
        %2106 = vrot.lane.b32.xlu0 %v1991, 113
        %v2107 = vpop.permute.xlu0 %2106
        %2108 = vrot.lane.b32.xlu0 %v1993, 113
        %v2109 = vpop.permute.xlu0 %2108
        %v2110 = vsel %vm804, %v2107, %v2109
        %v2114 = vsel %vm804, %v2109, %v2107
        %v2115 = vlaneseq
        %v2116 = vshrl.u32 %v2115, 7
        %v2117 = vsub.s32 6, %v2116
        %v2118 = vrot.slane %v1995, %v2117
        %v2119 = vlaneseq
        %v2120 = vshrl.u32 %v2119, 7
        %v2121 = vsub.s32 6, %v2120
        %v2122 = vrot.slane %v1996, %v2121
        %v2123 = vmul.f32 %v2110, %v2118
        %v2124 = vmul.f32 %v2114, %v2122
        %2125 = vrot.lane.b32.xlu0 %v1991, 112
        %v2126 = vpop.permute.xlu0 %2125
        %2127 = vrot.lane.b32.xlu0 %v1993, 112
        %v2128 = vpop.permute.xlu0 %2127
        %v2129 = vsel %vm820, %v2126, %v2128
        %v2133 = vsel %vm820, %v2128, %v2126
        %v2134 = vlaneseq
        %v2135 = vshrl.u32 %v2134, 7
        %v2136 = vsub.s32 7, %v2135
        %v2137 = vrot.slane %v1995, %v2136
        %v2138 = vlaneseq
        %v2139 = vshrl.u32 %v2138, 7
        %v2140 = vsub.s32 7, %v2139
        %v2141 = vrot.slane %v1996, %v2140
        %v2142 = vmul.f32 %v2129, %v2137
        %v2143 = vmul.f32 %v2133, %v2141
        %2144 = vrot.lane.b32.xlu0 %v1991, 111
        %v2145 = vpop.permute.xlu0 %2144
        %2146 = vrot.lane.b32.xlu0 %v1993, 111
        %v2147 = vpop.permute.xlu0 %2146
        %v2148 = vsel %vm836, %v2145, %v2147
        %v2152 = vsel %vm836, %v2147, %v2145
        %v2153 = vlaneseq
        %v2154 = vshrl.u32 %v2153, 7
        %v2155 = vsub.s32 0, %v2154
        %v2156 = vrot.slane %v1997, %v2155
        %v2157 = vlaneseq
        %v2158 = vshrl.u32 %v2157, 7
        %v2159 = vsub.s32 0, %v2158
        %v2160 = vrot.slane %v1998, %v2159
        %v2161 = vmul.f32 %v2148, %v2156
        %v2162 = vmul.f32 %v2152, %v2160
        %v2165 = vrot.slane %v2037, 4
        %v2166 = vrot.slane %v2038, 4
        %v2171 = vrot.slane %v2075, 4
        %v2172 = vrot.slane %v2076, 4
        %v2177 = vrot.slane %v2104, 4
        %v2178 = vrot.slane %v2105, 4
        %v2183 = vrot.slane %v2142, 4
        %v2184 = vrot.slane %v2143, 4
        %v2187 = vsel %vm900, %v2018, %v2165
        %v2188 = vsel %vm900, %v2019, %v2166
        %v2189 = vsel %vm900, %v2056, %v2171
        %v2190 = vsel %vm900, %v2057, %v2172
        %v2191 = vsel %vm900, %v2085, %v2177
        %v2192 = vsel %vm900, %v2086, %v2178
        %v2193 = vsel %vm900, %v2123, %v2183
        %v2194 = vsel %vm900, %v2124, %v2184
        %v2195 = vld [vmem:[%s18] sm:$0x1]
        %v2196 = vld [vmem:[#allocation2] sm:$0x1]
        %2198 = vset.pattern.permute.xlu0 0
        %2199 = vperm.xlu0 %2198, %v2196
        %v2200 = vpop.permute.xlu0 %2199
        %v2202 = vlaneseq
        %v2203 = vshrl.u32 %v2202, 7
        %v2204 = vsub.s32 0, %v2203
        %v2205 = vrot.slane %v2200, %v2204
        %v2207 = vsel %vm1232, %v2195, 0
        %v2210 = vsel %vm900, %v2161, 0
        %v2213 = vsel %vm900, %v2162, 0
        %2215 = vmatprep.subr.mxu0 %v2188
        %2216 = vmatpush1.msra.mxu0 %v2187
        %2217 = vmatprep.subr.mxu0 %v2190
        %2218 = vmatpush1.msra.mxu0 %v2189
        %2219 = vmatprep.subr.mxu0 %v2192
        %2220 = vmatpush1.msra.mxu0 %v2191
        %2221 = vmatprep.subr.mxu0 %v2194
        %2222 = vmatpush1.msra.mxu0 %v2193
        %2223 = vmatprep.subr.mxu0 %v2213
        %2224 = vmatpush1.msra.mxu0 %v2210
        %2225 = vmatprep.subr.mxu0 0.0
        %2226 = vmatpush1.msra.mxu0 0.0
        %2227 = vmatprep.subr.mxu0 0.0
        %2228 = vmatpush1.msra.mxu0 0.0
        %2229 = vmatprep.subr.mxu0 0.0
        %2230 = vmatpush1.msra.mxu0 0.0
        %2231 = vmatprep.subr.mxu0 0.0
        %2232 = vmatpush1.msra.mxu0 0.0
        %2233 = vmatprep.subr.mxu0 0.0
        %2234 = vmatpush1.msra.mxu0 0.0
        %2235 = vmatprep.subr.mxu0 0.0
        %2236 = vmatpush1.msra.mxu0 0.0
        %2237 = vmatprep.subr.mxu0 0.0
        %2238 = vmatpush1.msra.mxu0 0.0
        %2239 = vmatprep.subr.mxu0 0.0
        %2240 = vmatpush1.msra.mxu0 0.0
        %2241 = vmatprep.subr.mxu0 0.0
        %2242 = vmatpush1.msra.mxu0 0.0
        %2243 = vmatprep.subr.mxu0 0.0
        %2244 = vmatpush1.msra.mxu0 0.0
        %2245 = vmatprep.subr.mxu0 0.0
        %2246 = vmatpush1.msra.mxu0 0.0
        %2247 = vmatprep.subr.mxu0 0.0
        %2248 = vmatpush1.msra.mxu0 0.0
        %2249 = vmatprep.subr.mxu0 0.0
        %2250 = vmatpush1.msra.mxu0 0.0
        %2251 = vmatprep.subr.mxu0 0.0
        %2252 = vmatpush1.msra.mxu0 0.0
        %2253 = vmatprep.subr.mxu0 0.0
        %2254 = vmatpush1.msra.mxu0 0.0
        %2255 = vmatprep.subr.mxu0 0.0
        %2256 = vmatpush1.msra.mxu0 0.0
        %2257 = vmatprep.subr.mxu0 0.0
        %2258 = vmatpush1.msra.mxu0 0.0
        %2259 = vmatprep.subr.mxu0 0.0
        %2260 = vmatpush1.msra.mxu0 0.0
        %2261 = vmatprep.subr.mxu0 0.0
        %2262 = vmatpush1.msra.mxu0 0.0
        %2263 = vmatprep.subr.mxu0 0.0
        %2264 = vmatpush1.msra.mxu0 0.0
        %2265 = vmatprep.subr.mxu0 0.0
        %2266 = vmatpush1.msra.mxu0 0.0
        %2267 = vmatprep.subr.mxu0 0.0
        %2268 = vmatpush1.msra.mxu0 0.0
        %2269 = vmatprep.subr.mxu0 0.0
        %2270 = vmatpush1.msra.mxu0 0.0
        %2271 = vmatprep.subr.mxu0 0.0
        %2272 = vmatpush1.msra.mxu0 0.0
        %2273 = vmatprep.subr.mxu0 0.0
        %2274 = vmatpush1.msra.mxu0 0.0
        %2275 = vmatprep.subr.mxu0 0.0
        %2276 = vmatpush1.msra.mxu0 0.0
        %2277 = vmatprep.subr.mxu0 0.0
        %2278 = vmatpush1.msra.mxu0 0.0
        %2279 = vmatprep.mubr.f32.mxu0 0.0
        %2280 = vmatmul.mubr.f32.gmra.mrb[0].mxu0 %v2207
        %v2281 = vpop.f32.mrb[0].mxu0
        %v2282 = vadd.f32 %v2205, %v2281
        %v2283 = vpop.f32.mrb[0].mxu0
        %v2284 = vadd.f32 %v2205, %v2283
        %2285 = vdwg.mxu0
        %v2286 = vsub.f32 0.0, %v2282
        %v2287 = vsub.f32 0.0, %v2284
        %v2288 = vmul.f32 %v2286, 1.442695
        %v2289 = vpow.pop %v2288
        %v2290 = vmul.f32 %v2287, 1.442695
        %v2291 = vpow.pop %v2290
        %v2292 = vadd.f32 %v2289, 1.0
        %v2293 = vadd.f32 %v2291, 1.0
        %v2294 = vrcp.pop %v2292
        %v2295 = vrcp.pop %v2293
        %v2298 = vcombine.low %v2294, %v2295
        %v2300 = vunpack.c.l.s4 1966171168
        %v2301 = vunpack.c.0.s8 %v2300
        %v2302 = vlaneseq
        %v2303 = vshrl.u32 %v2302, 7
        %v2304 = vsub.s32 %v2301, %v2303
        %v2305 = vrot.slane %v2298, %v2304
        %v2307 = vunpack.c.l.s4 1966171168
        %v2308 = vunpack.c.0.s8 %v2307
        %v2309 = vlaneseq
        %v2310 = vshrl.u32 %v2309, 7
        %v2311 = vsub.s32 %v2308, %v2310
        %v2312 = vrot.slane %v2305, %v2311
        %v2314 = vlaneseq
        %vm2315 = vcmp.ge.s32.totalorder %v2314, 0
        %vm2316 = vcmp.lt.s32.totalorder %v2314, 256
        %vm2317 = vmand %vm2315, %vm2316
        %2318 = vst.msk [vmem:[%s680] sm:$0x3] %vm2317, %v2312
        %vm2319 = vcmask 8192
        %2320 = vst.msk [vmem:[%s686] sm:$0x1] %vm2319, %v1524
        %s2321 = sand.u32 %s496, 1
        %s2322 = scalar_lea.sflag [#allocation4], %s2321
        %s2323 = sand.u32 %s496, 1
        %s2324 = smul.addr %s2323, 2
        %s2325 = scalar_lea.vmem [#allocation3], %s2324
        %s2326 = sand.u32 %s522, 1
        %s2327 = scalar_lea.sflag [#allocation6], %s2326
        %s2328 = sand.u32 %s522, 1
        %s2329 = scalar_lea.vmem [#allocation5], %s2328
        // Predicated region
        $region105: #{tpu_custom_call.1} parent=103 // pred_check
          %p2330 = pneg %p506
        $region106: #{tpu_custom_call.1} parent=103 // pred_check_branch
          %2332 = sbr.rel (%p2330) target = $region108
        $region107: #{tpu_custom_call.1} parent=103 // pred_region
          %s2334 = ssub.s32 32, 32
          %2335 = vsyncadd %s2322, %s2334
          %s2336 = smul.addr %s42, 2
          %s2337 = smul.addr %s2336, 16
          %s2338 = scalar_lea.hbm %s21, %s2337
          %s2340 = sshll.u32 %s2325, 4
          %s2341 = int_to_ptr.vmem [resolvable:$true] %s2340
          %2343 = dma.vmem_to_hbm [thread:$0]  %s2341, 32, %s2338, %s2322
        $region108: #{tpu_custom_call.1} parent=103 // pred_fallthru
          _
        // Predicated region
        $region109: #{tpu_custom_call.1} parent=103 // pred_check
          %p2344 = pneg %p532
        $region110: #{tpu_custom_call.1} parent=103 // pred_check_branch
          %2346 = sbr.rel (%p2344) target = $region112
        $region111: #{tpu_custom_call.1} parent=103 // pred_region
          %s2348 = ssub.s32 16, 16
          %2349 = vsyncadd %s2327, %s2348
          %s2350 = smul.addr %s42, 16
          %s2351 = scalar_lea.hbm %s22, %s2350
          %s2353 = sshll.u32 %s2329, 4
          %s2354 = int_to_ptr.vmem [resolvable:$true] %s2353
          %2356 = dma.vmem_to_hbm [thread:$0]  %s2354, 16, %s2351, %s2327
        $region112: #{tpu_custom_call.1} parent=103 // pred_fallthru
          _
      $region104: #{tpu_custom_call.1} parent=5 // pred_fallthru
        _
      %p2357 = scmp.le.s32.totalorder 2, %s37
      // Predicated region
      $region113: #{tpu_custom_call.1} parent=5 // pred_check
        %p2358 = pneg %p2357
      $region114: #{tpu_custom_call.1} parent=5 // pred_check_branch
        %2360 = sbr.rel (%p2358) target = $region116
      $region115: #{tpu_custom_call.1} parent=5 // pred_region
        %s2361 = ssub.s32 %s37, 2
        // Predicated region
        $region117: #{tpu_custom_call.1} parent=115 // pred_check
          %p2362 = pneg %p512
        $region118: #{tpu_custom_call.1} parent=115 // pred_check_branch
          %2364 = sbr.rel (%p2362) target = $region120
        $region119: #{tpu_custom_call.1} parent=115 // pred_region
          %s2365 = sand.u32 %s497, 1
          %s2366 = scalar_lea.sflag [#allocation4], %s2365
          %s2367 = sand.u32 %s497, 1
          %s2368 = smul.addr %s2367, 2
          %s2369 = scalar_lea.vmem [#allocation3], %s2368
          %2370 = dma.done %s2366, 32
        $region120: #{tpu_custom_call.1} parent=115 // pred_fallthru
          _
        // Predicated region
        $region121: #{tpu_custom_call.1} parent=115 // pred_check
          %p2371 = pneg %p538
        $region122: #{tpu_custom_call.1} parent=115 // pred_check_branch
          %2373 = sbr.rel (%p2371) target = $region124
        $region123: #{tpu_custom_call.1} parent=115 // pred_region
          %s2374 = sand.u32 %s523, 1
          %s2375 = scalar_lea.sflag [#allocation6], %s2374
          %s2376 = sand.u32 %s523, 1
          %s2377 = scalar_lea.vmem [#allocation5], %s2376
          %2378 = dma.done %s2375, 16
        $region124: #{tpu_custom_call.1} parent=115 // pred_fallthru
          _
      $region116: #{tpu_custom_call.1} parent=5 // pred_fallthru
        _
    $region6: #{tpu_custom_call.1} parent=1 // loop_footer
      %s41 = sadd.s32 1, %s37
    $region7: #{tpu_custom_call.1} parent=1 // loop_footer_branch
      %36 = sbr.rel target = $region3
    $region8: #{tpu_custom_call.1} parent=1 // loop_exit
      _
    %2379 = vsyncpa [#allocation4], 1
    %s2380 = scalar_lea.sflag [#allocation4], 1
    %2381 = vsyncpa %s2380, 1
    %2382 = vsyncpa [#allocation6], 1
    %s2383 = scalar_lea.sflag [#allocation6], 1
    %2384 = vsyncpa %s2383, 1

</llo_original>
